<compile_context>
chip_gen: v5e
topology: v5e:2x2
jax: 0.10.0
libtpu: 0.0.40
codegen_flags: <defaults>
</compile_context>

<pallas_src>
import jax
import jax.numpy as jnp
from jax.experimental import pallas as pl
from jax.experimental.pallas import tpu as pltpu

# Problem sizes implied by the module: classifier expects 840 = 20 * 42 features,
# AvgPool((1,62), stride=(1,12)) -> 42 windows  =>  conv2 output width 554  =>  T = 553.
T_IN = 553            # input time samples
T_C2 = T_IN + 1       # conv2 output width (padding 6, kernel 12)
N_EL = 22             # electrodes (conv1 kernel height / conv1 out channels)
N_EL_P = 24           # conv1 channels padded to a multiple of 8 (sublane-aligned im2col)
C2_OUT = 20           # conv2 output channels
K2 = 12               # conv2 kernel width
N_POOL = 42           # pooled windows
N_CLS = 4             # classes
POOL_W = 62
POOL_S = 12

TP = 640              # lane-padded time axis (multiple of 128)
TCP = 640             # lane-padded conv2 output width
PADW = 6 + TP + 10    # padded-h scratch width (>= 11 + TCP)  -> 656


def dsccnet_kernel(x_ref, w1_ref, b1_ref, w2_ref, b2_ref,
                   pool_ref, wc_ref, bc_ref, out_ref,
                   pad_ref, col_ref):
    # --- conv1 + BN1 (folded) on the summed hemispheres: one MXU matmul ------------------
    s = x_ref[0, 0, :, :] + x_ref[0, 1, :, :]                      # (22, TP)
    h = jnp.dot(w1_ref[...], s, preferred_element_type=jnp.float32) + b1_ref[...]
    # h: (24, TP); rows 22..23 and time columns >= T_IN are exactly zero by construction.

    # --- zero-padded conv2 operand (only the halos need zeroing; interior is overwritten) -
    pad_ref[:, 0:6] = jnp.zeros((N_EL_P, 6), jnp.float32)
    pad_ref[:, 6 + TP:PADW] = jnp.zeros((N_EL_P, PADW - 6 - TP), jnp.float32)
    pad_ref[:, 6:6 + TP] = h

    # --- im2col: tap-k row block = padded h shifted by k (sublane-aligned 24-row blocks) --
    for k in range(K2):
        col_ref[k * N_EL_P:(k + 1) * N_EL_P, :] = pad_ref[:, k:k + TCP]

    # --- conv2 + BN2 (folded) as one full-K matmul, then square ---------------------------
    acc = jnp.dot(w2_ref[...], col_ref[...], preferred_element_type=jnp.float32)
    g = acc + b2_ref[...]                                          # (20, TCP)
    g = g * g

    # --- AvgPool(1,62,stride 12) with 1/62 folded into the pool matrix, then log ----------
    lp = jnp.log(jnp.dot(g, pool_ref[...], preferred_element_type=jnp.float32))  # (20, 42)

    # --- classifier: 4 Frobenius inner products on VPU/XLU (avoids 20 tiny MXU pushes) ----
    lane = jax.lax.broadcasted_iota(jnp.int32, (1, N_CLS), 1)
    logits = bc_ref[...]                                           # (1, 4)
    for j in range(N_CLS):
        pj = lp * wc_ref[j]                                        # (20, 42)
        sj = jnp.sum(jnp.sum(pj, axis=1, keepdims=True), axis=0, keepdims=True)  # (1, 1)
        logits = logits + sj * (lane == j).astype(jnp.float32)
    out_ref[0] = logits


def dsccnet_forward(x5d, kparams):
    """x5d: (B, 2, 1, 22, T) float32, like the PyTorch input."""
    w1f, b1m, w2f, b2f, pool, wc4, bc = kparams
    x = jnp.squeeze(x5d, axis=2)                                   # (B, 2, 22, T)
    B, _, _, T = x.shape
    x = jnp.pad(x, ((0, 0), (0, 0), (0, 0), (0, TP - T)))          # lane-dense time axis

    grid_spec = pltpu.PrefetchScalarGridSpec(
        num_scalar_prefetch=0,
        grid=(B,),
        in_specs=[
            pl.BlockSpec((1, 2, N_EL, TP), lambda b: (b, 0, 0, 0)),   # per-batch input block
            pl.BlockSpec((N_EL_P, N_EL), lambda b: (0, 0)),           # w1 (BN1 folded, padded)
            pl.BlockSpec((N_EL_P, TP), lambda b: (0, 0)),             # b1 matrix (col-masked)
            pl.BlockSpec((C2_OUT, K2 * N_EL_P), lambda b: (0, 0)),    # im2col conv2 weight
            pl.BlockSpec((C2_OUT, 1), lambda b: (0, 0)),              # conv2 bias (BN2 folded)
            pl.BlockSpec((TCP, N_POOL), lambda b: (0, 0)),            # pooling matrix (1/62)
            pl.BlockSpec((N_CLS, C2_OUT, N_POOL), lambda b: (0, 0, 0)),  # classifier weight
            pl.BlockSpec((1, N_CLS), lambda b: (0, 0)),               # classifier bias
        ],
        out_specs=pl.BlockSpec((1, 1, N_CLS), lambda b: (b, 0, 0)),
        scratch_shapes=[
            pltpu.VMEM((N_EL_P, PADW), jnp.float32),       # zero-padded conv1 output
            pltpu.VMEM((K2 * N_EL_P, TCP), jnp.float32),   # im2col operand
        ],
    )
    out = pl.pallas_call(
        dsccnet_kernel,
        out_shape=jax.ShapeDtypeStruct((B, 1, N_CLS), jnp.float32),
        grid_spec=grid_spec,
        compiler_params=pltpu.CompilerParams(
            dimension_semantics=("parallel",)),            # batch shards across TCs on v7x
    )(x, w1f, b1m, w2f, b2f, pool, wc4, bc)
    return out.reshape(B, N_CLS)


def make_raw_params(key):
    ks = jax.random.split(key, 12)
    kc1, kc2 = jax.random.split(jax.random.fold_in(key, 123))
    f32 = jnp.float32
    return dict(
        w1=0.1 * jax.random.normal(ks[0], (N_EL, N_EL), f32),       # conv1 (out=22, elec=22)
        b1=0.1 * jax.random.normal(ks[1], (N_EL, 1), f32),
        g1=1.0 + 0.1 * jax.random.normal(ks[2], (N_EL, 1), f32),
        be1=0.1 * jax.random.normal(ks[3], (N_EL, 1), f32),
        rm1=0.1 * jax.random.normal(ks[4], (N_EL, 1), f32),
        rv1=0.5 + jax.random.uniform(ks[5], (N_EL, 1), f32),
        w2=0.1 * jax.random.normal(ks[6], (C2_OUT, N_EL, K2), f32),  # conv2 (out, in, tap)
        b2=0.1 * jax.random.normal(ks[7], (C2_OUT, 1), f32),
        g2=1.0 + 0.1 * jax.random.normal(ks[8], (C2_OUT, 1), f32),
        be2=0.1 * jax.random.normal(ks[9], (C2_OUT, 1), f32),
        rm2=0.1 * jax.random.normal(ks[10], (C2_OUT, 1), f32),
        rv2=0.5 + jax.random.uniform(ks[11], (C2_OUT, 1), f32),
        wc=0.1 * jax.random.normal(kc1, (N_CLS, C2_OUT * N_POOL), f32),
        bc=0.1 * jax.random.normal(kc2, (1, N_CLS), f32),
    )


def fold_params(raw):
    """Host-side folding of BN into the conv weights + kernel-friendly layouts."""
    eps = 1e-5
    s1 = raw["g1"] / jnp.sqrt(raw["rv1"] + eps)
    t1 = raw["be1"] - raw["rm1"] * s1
    s2 = raw["g2"] / jnp.sqrt(raw["rv2"] + eps)
    t2 = raw["be2"] - raw["rm2"] * s2

    # conv1 + BN1, hemispheres merged: h = (s1*W1) @ (l + r) + (2*s1*b1 + t1).
    w1f = jnp.pad(s1 * raw["w1"], ((0, N_EL_P - N_EL), (0, 0)))               # (24, 22)
    b1f = jnp.pad(2.0 * s1 * raw["b1"] + t1, ((0, N_EL_P - N_EL), (0, 0)))    # (24, 1)
    col_mask = (jnp.arange(TP) < T_IN).astype(jnp.float32)[None, :]           # (1, TP)
    b1m = b1f * col_mask                                                      # (24, TP)

    # conv2 + BN2 as an im2col weight (20, 12*24); the 2 pad columns per tap block are 0.
    w2s = raw["w2"] * s2[:, :, None]                                          # (20, 22, 12)
    blocks = [jnp.pad(w2s[:, :, k], ((0, 0), (0, N_EL_P - N_EL))) for k in range(K2)]
    w2f = jnp.concatenate(blocks, axis=1)                                     # (20, 288)
    b2f = s2 * raw["b2"] + t2                                                 # (20, 1)

    # AvgPool((1,62), stride 12) as a (TCP, 42) window matrix, 1/62 folded in, zero rows
    # beyond the valid conv2 width so lane-padding garbage never leaks into the pool.
    t_idx = jnp.arange(TCP)[:, None]
    start = jnp.arange(N_POOL)[None, :] * POOL_S
    pool = ((t_idx >= start) & (t_idx < start + POOL_W) & (t_idx < T_C2))
    pool = pool.astype(jnp.float32) / float(POOL_W)                           # (640, 42)

    wc4 = raw["wc"].reshape(N_CLS, C2_OUT, N_POOL)                            # (4, 20, 42)
    bc = raw["bc"]                                                            # (1, 4)
    return (w1f, b1m, w2f, b2f, pool, wc4, bc)


def reference(x5d, raw):
    """Pure-JAX reference of the original (unfused, inference-mode) module math."""
    eps = 1e-5
    x = jnp.squeeze(x5d, axis=2)
    w1, b1, w2, b2 = raw["w1"], raw["b1"], raw["w2"], raw["b2"]
    s1 = raw["g1"] / jnp.sqrt(raw["rv1"] + eps)
    t1 = raw["be1"] - raw["rm1"] * s1
    s2 = raw["g2"] / jnp.sqrt(raw["rv2"] + eps)
    t2 = raw["be2"] - raw["rm2"] * s2
    outs = []
    for b in range(x.shape[0]):
        l, r = x[b, 0], x[b, 1]
        h = (w1 @ l + b1) + (w1 @ r + b1)
        h = h * s1 + t1                                      # BN1 (inference); Dropout = id
        hp = jnp.pad(h, ((0, 0), (6, 6)))
        acc = jnp.zeros((C2_OUT, T_C2), jnp.float32) + b2
        for k in range(K2):
            acc = acc + w2[:, :, k] @ hp[:, k:k + T_C2]
        g = acc * s2 + t2                                    # BN2 (inference)
        g = g * g                                            # square; Dropout = id
        pooled = jnp.stack(
            [g[:, i * POOL_S:i * POOL_S + POOL_W].mean(axis=1) for i in range(N_POOL)],
            axis=1)                                          # (20, 42)
        lp = jnp.log(pooled)
        outs.append(lp.reshape(1, -1) @ raw["wc"].T + raw["bc"])
    return jnp.concatenate(outs, axis=0)


if __name__ == "__main__":
    key = jax.random.PRNGKey(0)
    kx, kp = jax.random.split(key)

    B = 2
    # Same 5-D convention as the PyTorch module: (B, side=2, C=1, 22, 553)
    x = jax.random.normal(kx, (B, 2, 1, N_EL, T_IN), jnp.float32)
    raw = make_raw_params(kp)
    kparams = fold_params(raw)

    out = dsccnet_forward(x, kparams)
    out = jax.block_until_ready(out)

    ref = reference(x, raw)
    assert out.shape == (B, N_CLS)
    assert jnp.allclose(out, ref, rtol=1e-3, atol=1e-3), (out, ref)

    print("KERNEL_OK")
</pallas_src>

<mosaic_0001>
module attributes {stable_mosaic.version = 11 : i64} {
  func.func @dsccnet_kernel(%arg0: i32, %arg1: memref<1x2x22x640xf32, #tpu.memory_space<vmem>>, %arg2: memref<24x22xf32, #tpu.memory_space<vmem>>, %arg3: memref<24x640xf32, #tpu.memory_space<vmem>>, %arg4: memref<20x288xf32, #tpu.memory_space<vmem>>, %arg5: memref<20x1xf32, #tpu.memory_space<vmem>>, %arg6: memref<640x42xf32, #tpu.memory_space<vmem>>, %arg7: memref<4x20x42xf32, #tpu.memory_space<vmem>>, %arg8: memref<1x4xf32, #tpu.memory_space<vmem>>, %arg9: memref<1x1x4xf32, #tpu.memory_space<vmem>>, %arg10: memref<24x656xf32, #tpu.memory_space<vmem>>, %arg11: memref<288x640xf32, #tpu.memory_space<vmem>>) attributes {dimension_semantics = [#tpu.dimension_semantics<parallel>], iteration_bounds = array<i64: 2>, scalar_prefetch = 0 : i64, scratch_operands = 2 : i64, tpu.core_type = #tpu.core_type<tc>, window_params = [{transform_indices = @transform_0, window_bounds = array<i64: 1, 2, 22, 640>}, {pipeline_mode = #tpu.pipeline_mode<synchronous>, transform_indices = @transform_1, window_bounds = array<i64: 24, 22>}, {pipeline_mode = #tpu.pipeline_mode<synchronous>, transform_indices = @transform_2, window_bounds = array<i64: 24, 640>}, {pipeline_mode = #tpu.pipeline_mode<synchronous>, transform_indices = @transform_3, window_bounds = array<i64: 20, 288>}, {pipeline_mode = #tpu.pipeline_mode<synchronous>, transform_indices = @transform_4, window_bounds = array<i64: 20, 1>}, {pipeline_mode = #tpu.pipeline_mode<synchronous>, transform_indices = @transform_5, window_bounds = array<i64: 640, 42>}, {pipeline_mode = #tpu.pipeline_mode<synchronous>, transform_indices = @transform_6, window_bounds = array<i64: 4, 20, 42>}, {pipeline_mode = #tpu.pipeline_mode<synchronous>, transform_indices = @transform_7, window_bounds = array<i64: 1, 4>}, {transform_indices = @transform_8, window_bounds = array<i64: 1, 1, 4>}]} {
    %c0 = arith.constant 0 : index
    %c0_0 = arith.constant 0 : index
    %c0_1 = arith.constant 0 : index
    %c0_2 = arith.constant 0 : index
    %0 = vector.load %arg1[%c0, %c0_0, %c0_1, %c0_2] : memref<1x2x22x640xf32, #tpu.memory_space<vmem>>, vector<1x1x22x640xf32>
    %1 = vector.shape_cast %0 : vector<1x1x22x640xf32> to vector<22x640xf32>
    %c0_3 = arith.constant 0 : index
    %c1 = arith.constant 1 : index
    %c0_4 = arith.constant 0 : index
    %c0_5 = arith.constant 0 : index
    %2 = vector.load %arg1[%c0_3, %c1, %c0_4, %c0_5] : memref<1x2x22x640xf32, #tpu.memory_space<vmem>>, vector<1x1x22x640xf32>
    %3 = vector.shape_cast %2 : vector<1x1x22x640xf32> to vector<22x640xf32>
    %4 = arith.addf %1, %3 : vector<22x640xf32>
    %c0_6 = arith.constant 0 : index
    %c0_7 = arith.constant 0 : index
    %5 = vector.load %arg2[%c0_6, %c0_7] : memref<24x22xf32, #tpu.memory_space<vmem>>, vector<24x22xf32>
    %cst = arith.constant dense<0.000000e+00> : vector<24x640xf32>
    %6 = tpu.matmul %5, %4, %cst {dimension_numbers = #tpu.dot_dimension_numbers<[1], [0], [0], [1], [0, 0, 1, 1], [], []>} : vector<24x22xf32>, vector<22x640xf32>, vector<24x640xf32> -> vector<24x640xf32>
    %c0_8 = arith.constant 0 : index
    %c0_9 = arith.constant 0 : index
    %7 = vector.load %arg3[%c0_8, %c0_9] : memref<24x640xf32, #tpu.memory_space<vmem>>, vector<24x640xf32>
    %8 = arith.addf %6, %7 : vector<24x640xf32>
    %cst_10 = arith.constant 0.000000e+00 : f32
    %9 = vector.broadcast %cst_10 : f32 to vector<24x6xf32>
    %c0_11 = arith.constant 0 : index
    %c0_12 = arith.constant 0 : index
    %10 = vector.load %arg10[%c0_11, %c0_12] : memref<24x656xf32, #tpu.memory_space<vmem>>, vector<24x6xf32>
    tpu.vector_store %arg10[%c0_11, %c0_12], %9 {strides = array<i32>} : memref<24x656xf32, #tpu.memory_space<vmem>>, vector<24x6xf32>,
    %cst_13 = arith.constant 0.000000e+00 : f32
    %11 = vector.broadcast %cst_13 : f32 to vector<24x10xf32>
    %c0_14 = arith.constant 0 : index
    %c646 = arith.constant 646 : index
    %12 = vector.load %arg10[%c0_14, %c646] : memref<24x656xf32, #tpu.memory_space<vmem>>, vector<24x10xf32>
    tpu.vector_store %arg10[%c0_14, %c646], %11 {strides = array<i32>} : memref<24x656xf32, #tpu.memory_space<vmem>>, vector<24x10xf32>,
    %c0_15 = arith.constant 0 : index
    %c6 = arith.constant 6 : index
    %13 = vector.load %arg10[%c0_15, %c6] : memref<24x656xf32, #tpu.memory_space<vmem>>, vector<24x640xf32>
    tpu.vector_store %arg10[%c0_15, %c6], %8 {strides = array<i32>} : memref<24x656xf32, #tpu.memory_space<vmem>>, vector<24x640xf32>,
    %c0_16 = arith.constant 0 : index
    %c0_17 = arith.constant 0 : index
    %14 = vector.load %arg10[%c0_16, %c0_17] : memref<24x656xf32, #tpu.memory_space<vmem>>, vector<24x640xf32>
    %c0_18 = arith.constant 0 : index
    %c0_19 = arith.constant 0 : index
    %15 = vector.load %arg11[%c0_18, %c0_19] : memref<288x640xf32, #tpu.memory_space<vmem>>, vector<24x640xf32>
    tpu.vector_store %arg11[%c0_18, %c0_19], %14 {strides = array<i32>} : memref<288x640xf32, #tpu.memory_space<vmem>>, vector<24x640xf32>,
    %c0_20 = arith.constant 0 : index
    %c1_21 = arith.constant 1 : index
    %16 = vector.load %arg10[%c0_20, %c1_21] : memref<24x656xf32, #tpu.memory_space<vmem>>, vector<24x640xf32>
    %c24 = arith.constant 24 : index
    %c0_22 = arith.constant 0 : index
    %17 = vector.load %arg11[%c24, %c0_22] : memref<288x640xf32, #tpu.memory_space<vmem>>, vector<24x640xf32>
    tpu.vector_store %arg11[%c24, %c0_22], %16 {strides = array<i32>} : memref<288x640xf32, #tpu.memory_space<vmem>>, vector<24x640xf32>,
    %c0_23 = arith.constant 0 : index
    %c2 = arith.constant 2 : index
    %18 = vector.load %arg10[%c0_23, %c2] : memref<24x656xf32, #tpu.memory_space<vmem>>, vector<24x640xf32>
    %c48 = arith.constant 48 : index
    %c0_24 = arith.constant 0 : index
    %19 = vector.load %arg11[%c48, %c0_24] : memref<288x640xf32, #tpu.memory_space<vmem>>, vector<24x640xf32>
    tpu.vector_store %arg11[%c48, %c0_24], %18 {strides = array<i32>} : memref<288x640xf32, #tpu.memory_space<vmem>>, vector<24x640xf32>,
    %c0_25 = arith.constant 0 : index
    %c3 = arith.constant 3 : index
    %20 = vector.load %arg10[%c0_25, %c3] : memref<24x656xf32, #tpu.memory_space<vmem>>, vector<24x640xf32>
    %c72 = arith.constant 72 : index
    %c0_26 = arith.constant 0 : index
    %21 = vector.load %arg11[%c72, %c0_26] : memref<288x640xf32, #tpu.memory_space<vmem>>, vector<24x640xf32>
    tpu.vector_store %arg11[%c72, %c0_26], %20 {strides = array<i32>} : memref<288x640xf32, #tpu.memory_space<vmem>>, vector<24x640xf32>,
    %c0_27 = arith.constant 0 : index
    %c4 = arith.constant 4 : index
    %22 = vector.load %arg10[%c0_27, %c4] : memref<24x656xf32, #tpu.memory_space<vmem>>, vector<24x640xf32>
    %c96 = arith.constant 96 : index
    %c0_28 = arith.constant 0 : index
    %23 = vector.load %arg11[%c96, %c0_28] : memref<288x640xf32, #tpu.memory_space<vmem>>, vector<24x640xf32>
    tpu.vector_store %arg11[%c96, %c0_28], %22 {strides = array<i32>} : memref<288x640xf32, #tpu.memory_space<vmem>>, vector<24x640xf32>,
    %c0_29 = arith.constant 0 : index
    %c5 = arith.constant 5 : index
    %24 = vector.load %arg10[%c0_29, %c5] : memref<24x656xf32, #tpu.memory_space<vmem>>, vector<24x640xf32>
    %c120 = arith.constant 120 : index
    %c0_30 = arith.constant 0 : index
    %25 = vector.load %arg11[%c120, %c0_30] : memref<288x640xf32, #tpu.memory_space<vmem>>, vector<24x640xf32>
    tpu.vector_store %arg11[%c120, %c0_30], %24 {strides = array<i32>} : memref<288x640xf32, #tpu.memory_space<vmem>>, vector<24x640xf32>,
    %c0_31 = arith.constant 0 : index
    %c6_32 = arith.constant 6 : index
    %26 = vector.load %arg10[%c0_31, %c6_32] : memref<24x656xf32, #tpu.memory_space<vmem>>, vector<24x640xf32>
    %c144 = arith.constant 144 : index
    %c0_33 = arith.constant 0 : index
    %27 = vector.load %arg11[%c144, %c0_33] : memref<288x640xf32, #tpu.memory_space<vmem>>, vector<24x640xf32>
    tpu.vector_store %arg11[%c144, %c0_33], %26 {strides = array<i32>} : memref<288x640xf32, #tpu.memory_space<vmem>>, vector<24x640xf32>,
    %c0_34 = arith.constant 0 : index
    %c7 = arith.constant 7 : index
    %28 = vector.load %arg10[%c0_34, %c7] : memref<24x656xf32, #tpu.memory_space<vmem>>, vector<24x640xf32>
    %c168 = arith.constant 168 : index
    %c0_35 = arith.constant 0 : index
    %29 = vector.load %arg11[%c168, %c0_35] : memref<288x640xf32, #tpu.memory_space<vmem>>, vector<24x640xf32>
    tpu.vector_store %arg11[%c168, %c0_35], %28 {strides = array<i32>} : memref<288x640xf32, #tpu.memory_space<vmem>>, vector<24x640xf32>,
    %c0_36 = arith.constant 0 : index
    %c8 = arith.constant 8 : index
    %30 = vector.load %arg10[%c0_36, %c8] : memref<24x656xf32, #tpu.memory_space<vmem>>, vector<24x640xf32>
    %c192 = arith.constant 192 : index
    %c0_37 = arith.constant 0 : index
    %31 = vector.load %arg11[%c192, %c0_37] : memref<288x640xf32, #tpu.memory_space<vmem>>, vector<24x640xf32>
    tpu.vector_store %arg11[%c192, %c0_37], %30 {strides = array<i32>} : memref<288x640xf32, #tpu.memory_space<vmem>>, vector<24x640xf32>,
    %c0_38 = arith.constant 0 : index
    %c9 = arith.constant 9 : index
    %32 = vector.load %arg10[%c0_38, %c9] : memref<24x656xf32, #tpu.memory_space<vmem>>, vector<24x640xf32>
    %c216 = arith.constant 216 : index
    %c0_39 = arith.constant 0 : index
    %33 = vector.load %arg11[%c216, %c0_39] : memref<288x640xf32, #tpu.memory_space<vmem>>, vector<24x640xf32>
    tpu.vector_store %arg11[%c216, %c0_39], %32 {strides = array<i32>} : memref<288x640xf32, #tpu.memory_space<vmem>>, vector<24x640xf32>,
    %c0_40 = arith.constant 0 : index
    %c10 = arith.constant 10 : index
    %34 = vector.load %arg10[%c0_40, %c10] : memref<24x656xf32, #tpu.memory_space<vmem>>, vector<24x640xf32>
    %c240 = arith.constant 240 : index
    %c0_41 = arith.constant 0 : index
    %35 = vector.load %arg11[%c240, %c0_41] : memref<288x640xf32, #tpu.memory_space<vmem>>, vector<24x640xf32>
    tpu.vector_store %arg11[%c240, %c0_41], %34 {strides = array<i32>} : memref<288x640xf32, #tpu.memory_space<vmem>>, vector<24x640xf32>,
    %c0_42 = arith.constant 0 : index
    %c11 = arith.constant 11 : index
    %36 = vector.load %arg10[%c0_42, %c11] : memref<24x656xf32, #tpu.memory_space<vmem>>, vector<24x640xf32>
    %c264 = arith.constant 264 : index
    %c0_43 = arith.constant 0 : index
    %37 = vector.load %arg11[%c264, %c0_43] : memref<288x640xf32, #tpu.memory_space<vmem>>, vector<24x640xf32>
    tpu.vector_store %arg11[%c264, %c0_43], %36 {strides = array<i32>} : memref<288x640xf32, #tpu.memory_space<vmem>>, vector<24x640xf32>,
    %c0_44 = arith.constant 0 : index
    %c0_45 = arith.constant 0 : index
    %38 = vector.load %arg4[%c0_44, %c0_45] : memref<20x288xf32, #tpu.memory_space<vmem>>, vector<20x288xf32>
    %c0_46 = arith.constant 0 : index
    %c0_47 = arith.constant 0 : index
    %39 = vector.load %arg11[%c0_46, %c0_47] : memref<288x640xf32, #tpu.memory_space<vmem>>, vector<288x640xf32>
    %cst_48 = arith.constant dense<0.000000e+00> : vector<20x640xf32>
    %40 = tpu.matmul %38, %39, %cst_48 {dimension_numbers = #tpu.dot_dimension_numbers<[1], [0], [0], [1], [0, 0, 1, 1], [], []>} : vector<20x288xf32>, vector<288x640xf32>, vector<20x640xf32> -> vector<20x640xf32>
    %c0_49 = arith.constant 0 : index
    %c0_50 = arith.constant 0 : index
    %41 = vector.load %arg5[%c0_49, %c0_50] : memref<20x1xf32, #tpu.memory_space<vmem>>, vector<20x1xf32>
    %42 = vector.broadcast %41 : vector<20x1xf32> to vector<20x640xf32>
    %43 = arith.addf %40, %42 : vector<20x640xf32>
    %44 = arith.mulf %43, %43 : vector<20x640xf32>
    %c0_51 = arith.constant 0 : index
    %c0_52 = arith.constant 0 : index
    %45 = vector.load %arg6[%c0_51, %c0_52] : memref<640x42xf32, #tpu.memory_space<vmem>>, vector<640x42xf32>
    %cst_53 = arith.constant dense<0.000000e+00> : vector<20x42xf32>
    %46 = tpu.matmul %44, %45, %cst_53 {dimension_numbers = #tpu.dot_dimension_numbers<[1], [0], [0], [1], [0, 0, 1, 1], [], []>} : vector<20x640xf32>, vector<640x42xf32>, vector<20x42xf32> -> vector<20x42xf32>
    %47 = math.log %46 : vector<20x42xf32>
    %48 = tpu.iota {dimensions = array<i32: 1>} : vector<1x4xi32>
    %c0_54 = arith.constant 0 : index
    %c0_55 = arith.constant 0 : index
    %49 = vector.load %arg8[%c0_54, %c0_55] : memref<1x4xf32, #tpu.memory_space<vmem>>, vector<1x4xf32>
    %c0_56 = arith.constant 0 : index
    %c0_57 = arith.constant 0 : index
    %c0_58 = arith.constant 0 : index
    %50 = vector.load %arg7[%c0_56, %c0_57, %c0_58] : memref<4x20x42xf32, #tpu.memory_space<vmem>>, vector<1x20x42xf32>
    %51 = vector.shape_cast %50 : vector<1x20x42xf32> to vector<20x42xf32>
    %52 = arith.mulf %47, %51 : vector<20x42xf32>
    %cst_59 = arith.constant dense<0.000000e+00> : vector<20xf32>
    %53 = vector.multi_reduction <add>, %52, %cst_59 [1] : vector<20x42xf32> to vector<20xf32>
    %54 = vector.shape_cast %53 : vector<20xf32> to vector<20x1xf32>
    %cst_60 = arith.constant dense<0.000000e+00> : vector<1xf32>
    %55 = vector.multi_reduction <add>, %54, %cst_60 [0] : vector<20x1xf32> to vector<1xf32>
    %56 = vector.shape_cast %55 : vector<1xf32> to vector<1x1xf32>
    %c0_i32 = arith.constant 0 : i32
    %57 = vector.broadcast %c0_i32 : i32 to vector<1x4xi32>
    %58 = arith.cmpi eq, %48, %57 : vector<1x4xi32>
    %59 = arith.extui %58 : vector<1x4xi1> to vector<1x4xi32>
    %60 = arith.sitofp %59 : vector<1x4xi32> to vector<1x4xf32>
    %61 = vector.broadcast %56 : vector<1x1xf32> to vector<1x4xf32>
    %62 = arith.mulf %61, %60 : vector<1x4xf32>
    %63 = arith.addf %49, %62 : vector<1x4xf32>
    %c1_61 = arith.constant 1 : index
    %c0_62 = arith.constant 0 : index
    %c0_63 = arith.constant 0 : index
    %64 = vector.load %arg7[%c1_61, %c0_62, %c0_63] : memref<4x20x42xf32, #tpu.memory_space<vmem>>, vector<1x20x42xf32>
    %65 = vector.shape_cast %64 : vector<1x20x42xf32> to vector<20x42xf32>
    %66 = arith.mulf %47, %65 : vector<20x42xf32>
    %cst_64 = arith.constant dense<0.000000e+00> : vector<20xf32>
    %67 = vector.multi_reduction <add>, %66, %cst_64 [1] : vector<20x42xf32> to vector<20xf32>
    %68 = vector.shape_cast %67 : vector<20xf32> to vector<20x1xf32>
    %cst_65 = arith.constant dense<0.000000e+00> : vector<1xf32>
    %69 = vector.multi_reduction <add>, %68, %cst_65 [0] : vector<20x1xf32> to vector<1xf32>
    %70 = vector.shape_cast %69 : vector<1xf32> to vector<1x1xf32>
    %c1_i32 = arith.constant 1 : i32
    %71 = vector.broadcast %c1_i32 : i32 to vector<1x4xi32>
    %72 = arith.cmpi eq, %48, %71 : vector<1x4xi32>
    %73 = arith.extui %72 : vector<1x4xi1> to vector<1x4xi32>
    %74 = arith.sitofp %73 : vector<1x4xi32> to vector<1x4xf32>
    %75 = vector.broadcast %70 : vector<1x1xf32> to vector<1x4xf32>
    %76 = arith.mulf %75, %74 : vector<1x4xf32>
    %77 = arith.addf %63, %76 : vector<1x4xf32>
    %c2_66 = arith.constant 2 : index
    %c0_67 = arith.constant 0 : index
    %c0_68 = arith.constant 0 : index
    %78 = vector.load %arg7[%c2_66, %c0_67, %c0_68] : memref<4x20x42xf32, #tpu.memory_space<vmem>>, vector<1x20x42xf32>
    %79 = vector.shape_cast %78 : vector<1x20x42xf32> to vector<20x42xf32>
    %80 = arith.mulf %47, %79 : vector<20x42xf32>
    %cst_69 = arith.constant dense<0.000000e+00> : vector<20xf32>
    %81 = vector.multi_reduction <add>, %80, %cst_69 [1] : vector<20x42xf32> to vector<20xf32>
    %82 = vector.shape_cast %81 : vector<20xf32> to vector<20x1xf32>
    %cst_70 = arith.constant dense<0.000000e+00> : vector<1xf32>
    %83 = vector.multi_reduction <add>, %82, %cst_70 [0] : vector<20x1xf32> to vector<1xf32>
    %84 = vector.shape_cast %83 : vector<1xf32> to vector<1x1xf32>
    %c2_i32 = arith.constant 2 : i32
    %85 = vector.broadcast %c2_i32 : i32 to vector<1x4xi32>
    %86 = arith.cmpi eq, %48, %85 : vector<1x4xi32>
    %87 = arith.extui %86 : vector<1x4xi1> to vector<1x4xi32>
    %88 = arith.sitofp %87 : vector<1x4xi32> to vector<1x4xf32>
    %89 = vector.broadcast %84 : vector<1x1xf32> to vector<1x4xf32>
    %90 = arith.mulf %89, %88 : vector<1x4xf32>
    %91 = arith.addf %77, %90 : vector<1x4xf32>
    %c3_71 = arith.constant 3 : index
    %c0_72 = arith.constant 0 : index
    %c0_73 = arith.constant 0 : index
    %92 = vector.load %arg7[%c3_71, %c0_72, %c0_73] : memref<4x20x42xf32, #tpu.memory_space<vmem>>, vector<1x20x42xf32>
    %93 = vector.shape_cast %92 : vector<1x20x42xf32> to vector<20x42xf32>
    %94 = arith.mulf %47, %93 : vector<20x42xf32>
    %cst_74 = arith.constant dense<0.000000e+00> : vector<20xf32>
    %95 = vector.multi_reduction <add>, %94, %cst_74 [1] : vector<20x42xf32> to vector<20xf32>
    %96 = vector.shape_cast %95 : vector<20xf32> to vector<20x1xf32>
    %cst_75 = arith.constant dense<0.000000e+00> : vector<1xf32>
    %97 = vector.multi_reduction <add>, %96, %cst_75 [0] : vector<20x1xf32> to vector<1xf32>
    %98 = vector.shape_cast %97 : vector<1xf32> to vector<1x1xf32>
    %c3_i32 = arith.constant 3 : i32
    %99 = vector.broadcast %c3_i32 : i32 to vector<1x4xi32>
    %100 = arith.cmpi eq, %48, %99 : vector<1x4xi32>
    %101 = arith.extui %100 : vector<1x4xi1> to vector<1x4xi32>
    %102 = arith.sitofp %101 : vector<1x4xi32> to vector<1x4xf32>
    %103 = vector.broadcast %98 : vector<1x1xf32> to vector<1x4xf32>
    %104 = arith.mulf %103, %102 : vector<1x4xf32>
    %105 = arith.addf %91, %104 : vector<1x4xf32>
    %c0_76 = arith.constant 0 : index
    %c0_77 = arith.constant 0 : index
    %c0_78 = arith.constant 0 : index
    %106 = vector.load %arg9[%c0_76, %c0_77, %c0_78] : memref<1x1x4xf32, #tpu.memory_space<vmem>>, vector<1x1x4xf32>
    %107 = vector.shape_cast %106 : vector<1x1x4xf32> to vector<1x4xf32>
    %108 = vector.shape_cast %105 : vector<1x4xf32> to vector<1x1x4xf32>
    tpu.vector_store %arg9[%c0_76, %c0_77, %c0_78], %108 {strides = array<i32>} : memref<1x1x4xf32, #tpu.memory_space<vmem>>, vector<1x1x4xf32>,
    return
  }
  func.func @transform_0(%arg0: i32) -> (i32, i32, i32, i32) {
    %c0_i32 = arith.constant 0 : i32
    %c0_i32_0 = arith.constant 0 : i32
    %c0_i32_1 = arith.constant 0 : i32
    %c0_i32_2 = arith.constant 0 : i32
    return %arg0, %c0_i32, %c0_i32_0, %c0_i32_1 : i32, i32, i32, i32
  }
  func.func @transform_1(%arg0: i32) -> (i32, i32) {
    %c0_i32 = arith.constant 0 : i32
    %c0_i32_0 = arith.constant 0 : i32
    %c0_i32_1 = arith.constant 0 : i32
    return %c0_i32, %c0_i32_0 : i32, i32
  }
  func.func @transform_2(%arg0: i32) -> (i32, i32) {
    %c0_i32 = arith.constant 0 : i32
    %c0_i32_0 = arith.constant 0 : i32
    %c0_i32_1 = arith.constant 0 : i32
    return %c0_i32, %c0_i32_0 : i32, i32
  }
  func.func @transform_3(%arg0: i32) -> (i32, i32) {
    %c0_i32 = arith.constant 0 : i32
    %c0_i32_0 = arith.constant 0 : i32
    %c0_i32_1 = arith.constant 0 : i32
    return %c0_i32, %c0_i32_0 : i32, i32
  }
  func.func @transform_4(%arg0: i32) -> (i32, i32) {
    %c0_i32 = arith.constant 0 : i32
    %c0_i32_0 = arith.constant 0 : i32
    %c0_i32_1 = arith.constant 0 : i32
    return %c0_i32, %c0_i32_0 : i32, i32
  }
  func.func @transform_5(%arg0: i32) -> (i32, i32) {
    %c0_i32 = arith.constant 0 : i32
    %c0_i32_0 = arith.constant 0 : i32
    %c0_i32_1 = arith.constant 0 : i32
    return %c0_i32, %c0_i32_0 : i32, i32
  }
  func.func @transform_6(%arg0: i32) -> (i32, i32, i32) {
    %c0_i32 = arith.constant 0 : i32
    %c0_i32_0 = arith.constant 0 : i32
    %c0_i32_1 = arith.constant 0 : i32
    %c0_i32_2 = arith.constant 0 : i32
    return %c0_i32, %c0_i32_0, %c0_i32_1 : i32, i32, i32
  }
  func.func @transform_7(%arg0: i32) -> (i32, i32) {
    %c0_i32 = arith.constant 0 : i32
    %c0_i32_0 = arith.constant 0 : i32
    %c0_i32_1 = arith.constant 0 : i32
    return %c0_i32, %c0_i32_0 : i32, i32
  }
  func.func @transform_8(%arg0: i32) -> (i32, i32, i32) {
    %c0_i32 = arith.constant 0 : i32
    %c0_i32_0 = arith.constant 0 : i32
    %c0_i32_1 = arith.constant 0 : i32
    return %arg0, %c0_i32, %c0_i32_0 : i32, i32, i32
  }
}

</mosaic_0001>

<llo_original>
// kernel: tpu_custom_call.1
$region0: #{tpu_custom_call.1}
  #allocation0 [shape = 'u32[]', space=smem, size = 0x4, offset = 0x4, fixed_abs, tag = 'smem constant byte address 0x4 - core index']
  #allocation1 [shape = 'u32[72,128]{1,0:T(1,128)}', space=vmem, size = 0x9000, scoped, tag = 'internal scratch']
  #allocation2 [shape = 'f32[24,656]{1,0:T(8,128)}', space=vmem, size = 0x12000, scoped, tag = 'scratch operand']
  #allocation3 [shape = 'f32[288,640]{1,0:T(8,128)}', space=vmem, size = 0xb4000, scoped, tag = 'scratch operand']
  %s0 = inlined_call_operand.vmem [shape: f32[2,2,22,640], index: 0, kind: input, shape index: {}]
  %s1 = inlined_call_operand.vmem [shape: f32[24,22], index: 1, kind: input, shape index: {}]
  %s2 = inlined_call_operand.vmem [shape: f32[24,640], index: 2, kind: input, shape index: {}]
  %s3 = inlined_call_operand.vmem [shape: f32[20,288], index: 3, kind: input, shape index: {}]
  %s4 = inlined_call_operand.vmem [shape: f32[20,1], index: 4, kind: input, shape index: {}]
  %s5 = inlined_call_operand.vmem [shape: f32[640,42], index: 5, kind: input, shape index: {}]
  %s6 = inlined_call_operand.vmem [shape: f32[4,20,42], index: 6, kind: input, shape index: {}]
  %s7 = inlined_call_operand.vmem [shape: f32[1,4], index: 7, kind: input, shape index: {}]
  %s8 = inlined_call_operand.hbm [shape: f32[2,1,4], index: 8, kind: output, shape index: {}]
  %s9 = sld [smem:[#allocation0]]
  $region65: #{tpu_custom_call.1} parent=0
    _
  %s11 = ssub.s32 1, %s9
  %s12 = scalar_select 0, %s11, %s9
  $region1: #{tpu_custom_call.1} parent=0
    #allocation4 [shape = 'u8[1024]{0}', space=vmem, size = 0x400, scoped, tag = 'output window, operand 0']
    #allocation5 [shape = 's32[2]{0}', space=sflag, size = 0x8, scoped, tag = 'scoped memory for tpu_custom_call.1']
    %13 = vsyncpa [#allocation5], 0
    %s14 = scalar_lea.sflag [#allocation5], 1
    %15 = vsyncpa %s14, 0
    loop: start=0, step=1, limit=4
    $region2: #{tpu_custom_call.1} parent=1 // loop_pre_header
      _
    $region3: #{tpu_custom_call.1} parent=1 // loop_header
      %s17 = sphi 0, %s21
      %p18 = scmp.ge.s32.totalorder %s17, 4
      %s27 = sphi 0, %s29
      %s30 = sphi 0, %s27
      %s31 = sphi 0, %s30
      %s47 = sphi 0, %s31
      %s51 = sphi 0, %s51
      %s53 = sphi 0, %s51
      %s54 = sphi 0, %s53
      %s68 = sphi 0, %s54
      %s72 = sphi 0, %s72
      %s74 = sphi 0, %s72
      %s75 = sphi 0, %s74
      %s89 = sphi 0, %s75
      %s93 = sphi 0, %s93
      %s95 = sphi 0, %s93
      %s96 = sphi 0, %s95
      %s110 = sphi 0, %s96
      %s114 = sphi 0, %s114
      %s116 = sphi 0, %s114
      %s117 = sphi 0, %s116
      %s131 = sphi 0, %s117
      %s135 = sphi 0, %s135
      %s137 = sphi 0, %s135
      %s138 = sphi 0, %s137
      %s152 = sphi 0, %s138
      %s156 = sphi 0, %s156
      %s158 = sphi 0, %s156
      %s159 = sphi 0, %s158
      %s173 = sphi 0, %s159
      %s177 = sphi 0, %s177
      %s179 = sphi 0, %s177
      %s180 = sphi 0, %s179
      %s194 = sphi 0, %s180
      %s200 = sphi 0, %s202
      %s203 = sphi 0, %s200
      %s204 = sphi 0, %s203
      %s220 = sphi 0, %s204
    $region4: #{tpu_custom_call.1} parent=1 // loop_header_branch
      %20 = sbr.rel (%p18) target = $region8
    $region5: #{tpu_custom_call.1} parent=1 // loop_body
      %s22 = ssub.s32 %s17, 1
      %s23 = ssub.s32 %s17, 2
      %s24 = sadd.s32 %s17, 1
      %s25 = ssub.s32 %s17, %s24
      %p26 = scmp.eq.s32.totalorder %s25, 0
      %s28 = sadd.s32 %s27, 1
      %s29 = scalar_select %p26, %s27, %s28
      %p32 = pneg %p26
      %p33 = scmp.eq.s32.totalorder %s17, 1
      %p34 = por %p32, %p33
      %p35 = scmp.ne.s32.totalorder %s27, %s30
      %p36 = scmp.eq.s32.totalorder %s17, 0
      %p37 = por %p35, %p36
      %p38 = scmp.ne.s32.totalorder %s27, %s30
      %p39 = scmp.eq.s32.totalorder %s22, 1
      %p40 = por %p38, %p39
      %p41 = scmp.ne.s32.totalorder %s30, %s31
      %p42 = scmp.eq.s32.totalorder %s22, 0
      %p43 = por %p41, %p42
      %p44 = scmp.ne.s32.totalorder %s30, %s31
      %p45 = scmp.eq.s32.totalorder %s23, 1
      %p46 = por %p44, %p45
      %p48 = scmp.ne.s32.totalorder %s31, %s47
      %p49 = scmp.eq.s32.totalorder %s23, 0
      %p50 = por %p48, %p49
      %s52 = sadd.s32 %s51, 1
      %p55 = scmp.eq.s32.totalorder %s17, 1
      %p56 = scmp.ne.s32.totalorder %s51, %s53
      %p57 = scmp.eq.s32.totalorder %s17, 0
      %p58 = por %p56, %p57
      %p59 = scmp.ne.s32.totalorder %s51, %s53
      %p60 = scmp.eq.s32.totalorder %s22, 1
      %p61 = por %p59, %p60
      %p62 = scmp.ne.s32.totalorder %s53, %s54
      %p63 = scmp.eq.s32.totalorder %s22, 0
      %p64 = por %p62, %p63
      %p65 = scmp.ne.s32.totalorder %s53, %s54
      %p66 = scmp.eq.s32.totalorder %s23, 1
      %p67 = por %p65, %p66
      %p69 = scmp.ne.s32.totalorder %s54, %s68
      %p70 = scmp.eq.s32.totalorder %s23, 0
      %p71 = por %p69, %p70
      %s73 = sadd.s32 %s72, 1
      %p76 = scmp.eq.s32.totalorder %s17, 1
      %p77 = scmp.ne.s32.totalorder %s72, %s74
      %p78 = scmp.eq.s32.totalorder %s17, 0
      %p79 = por %p77, %p78
      %p80 = scmp.ne.s32.totalorder %s72, %s74
      %p81 = scmp.eq.s32.totalorder %s22, 1
      %p82 = por %p80, %p81
      %p83 = scmp.ne.s32.totalorder %s74, %s75
      %p84 = scmp.eq.s32.totalorder %s22, 0
      %p85 = por %p83, %p84
      %p86 = scmp.ne.s32.totalorder %s74, %s75
      %p87 = scmp.eq.s32.totalorder %s23, 1
      %p88 = por %p86, %p87
      %p90 = scmp.ne.s32.totalorder %s75, %s89
      %p91 = scmp.eq.s32.totalorder %s23, 0
      %p92 = por %p90, %p91
      %s94 = sadd.s32 %s93, 1
      %p97 = scmp.eq.s32.totalorder %s17, 1
      %p98 = scmp.ne.s32.totalorder %s93, %s95
      %p99 = scmp.eq.s32.totalorder %s17, 0
      %p100 = por %p98, %p99
      %p101 = scmp.ne.s32.totalorder %s93, %s95
      %p102 = scmp.eq.s32.totalorder %s22, 1
      %p103 = por %p101, %p102
      %p104 = scmp.ne.s32.totalorder %s95, %s96
      %p105 = scmp.eq.s32.totalorder %s22, 0
      %p106 = por %p104, %p105
      %p107 = scmp.ne.s32.totalorder %s95, %s96
      %p108 = scmp.eq.s32.totalorder %s23, 1
      %p109 = por %p107, %p108
      %p111 = scmp.ne.s32.totalorder %s96, %s110
      %p112 = scmp.eq.s32.totalorder %s23, 0
      %p113 = por %p111, %p112
      %s115 = sadd.s32 %s114, 1
      %p118 = scmp.eq.s32.totalorder %s17, 1
      %p119 = scmp.ne.s32.totalorder %s114, %s116
      %p120 = scmp.eq.s32.totalorder %s17, 0
      %p121 = por %p119, %p120
      %p122 = scmp.ne.s32.totalorder %s114, %s116
      %p123 = scmp.eq.s32.totalorder %s22, 1
      %p124 = por %p122, %p123
      %p125 = scmp.ne.s32.totalorder %s116, %s117
      %p126 = scmp.eq.s32.totalorder %s22, 0
      %p127 = por %p125, %p126
      %p128 = scmp.ne.s32.totalorder %s116, %s117
      %p129 = scmp.eq.s32.totalorder %s23, 1
      %p130 = por %p128, %p129
      %p132 = scmp.ne.s32.totalorder %s117, %s131
      %p133 = scmp.eq.s32.totalorder %s23, 0
      %p134 = por %p132, %p133
      %s136 = sadd.s32 %s135, 1
      %p139 = scmp.eq.s32.totalorder %s17, 1
      %p140 = scmp.ne.s32.totalorder %s135, %s137
      %p141 = scmp.eq.s32.totalorder %s17, 0
      %p142 = por %p140, %p141
      %p143 = scmp.ne.s32.totalorder %s135, %s137
      %p144 = scmp.eq.s32.totalorder %s22, 1
      %p145 = por %p143, %p144
      %p146 = scmp.ne.s32.totalorder %s137, %s138
      %p147 = scmp.eq.s32.totalorder %s22, 0
      %p148 = por %p146, %p147
      %p149 = scmp.ne.s32.totalorder %s137, %s138
      %p150 = scmp.eq.s32.totalorder %s23, 1
      %p151 = por %p149, %p150
      %p153 = scmp.ne.s32.totalorder %s138, %s152
      %p154 = scmp.eq.s32.totalorder %s23, 0
      %p155 = por %p153, %p154
      %s157 = sadd.s32 %s156, 1
      %p160 = scmp.eq.s32.totalorder %s17, 1
      %p161 = scmp.ne.s32.totalorder %s156, %s158
      %p162 = scmp.eq.s32.totalorder %s17, 0
      %p163 = por %p161, %p162
      %p164 = scmp.ne.s32.totalorder %s156, %s158
      %p165 = scmp.eq.s32.totalorder %s22, 1
      %p166 = por %p164, %p165
      %p167 = scmp.ne.s32.totalorder %s158, %s159
      %p168 = scmp.eq.s32.totalorder %s22, 0
      %p169 = por %p167, %p168
      %p170 = scmp.ne.s32.totalorder %s158, %s159
      %p171 = scmp.eq.s32.totalorder %s23, 1
      %p172 = por %p170, %p171
      %p174 = scmp.ne.s32.totalorder %s159, %s173
      %p175 = scmp.eq.s32.totalorder %s23, 0
      %p176 = por %p174, %p175
      %s178 = sadd.s32 %s177, 1
      %p181 = scmp.eq.s32.totalorder %s17, 1
      %p182 = scmp.ne.s32.totalorder %s177, %s179
      %p183 = scmp.eq.s32.totalorder %s17, 0
      %p184 = por %p182, %p183
      %p185 = scmp.ne.s32.totalorder %s177, %s179
      %p186 = scmp.eq.s32.totalorder %s22, 1
      %p187 = por %p185, %p186
      %p188 = scmp.ne.s32.totalorder %s179, %s180
      %p189 = scmp.eq.s32.totalorder %s22, 0
      %p190 = por %p188, %p189
      %p191 = scmp.ne.s32.totalorder %s179, %s180
      %p192 = scmp.eq.s32.totalorder %s23, 1
      %p193 = por %p191, %p192
      %p195 = scmp.ne.s32.totalorder %s180, %s194
      %p196 = scmp.eq.s32.totalorder %s23, 0
      %p197 = por %p195, %p196
      %s198 = ssub.s32 %s17, %s24
      %p199 = scmp.eq.s32.totalorder %s198, 0
      %s201 = sadd.s32 %s200, 1
      %s202 = scalar_select %p199, %s200, %s201
      %p205 = pneg %p199
      %p206 = scmp.eq.s32.totalorder %s17, 1
      %p207 = por %p205, %p206
      %p208 = scmp.ne.s32.totalorder %s200, %s203
      %p209 = scmp.eq.s32.totalorder %s17, 0
      %p210 = por %p208, %p209
      %p211 = scmp.ne.s32.totalorder %s200, %s203
      %p212 = scmp.eq.s32.totalorder %s22, 1
      %p213 = por %p211, %p212
      %p214 = scmp.ne.s32.totalorder %s203, %s204
      %p215 = scmp.eq.s32.totalorder %s22, 0
      %p216 = por %p214, %p215
      %p217 = scmp.ne.s32.totalorder %s203, %s204
      %p218 = scmp.eq.s32.totalorder %s23, 1
      %p219 = por %p217, %p218
      %p221 = scmp.ne.s32.totalorder %s204, %s220
      %p222 = scmp.eq.s32.totalorder %s23, 0
      %p223 = por %p221, %p222
      %p224 = scmp.le.s32.totalorder 1, %s17
      %p225 = scmp.lt.s32.totalorder %s17, 3
      %p226 = pnand %p224, %p225
      %p227 = pneg %p226
      // Predicated region
      $region9: #{tpu_custom_call.1} parent=5 // pred_check
        _
      $region10: #{tpu_custom_call.1} parent=5 // pred_check_branch
        %229 = sbr.rel (%p226) target = $region12
      $region11: #{tpu_custom_call.1} parent=5 // pred_region
        %s230 = ssub.s32 %s17, 1
        // Predicated region
        $region13: #{tpu_custom_call.1} parent=11 // pred_check
          %p231 = pneg %p64
        $region14: #{tpu_custom_call.1} parent=11 // pred_check_branch
          %233 = sbr.rel (%p231) target = $region16
        $region15: #{tpu_custom_call.1} parent=11 // pred_region
          _
        $region16: #{tpu_custom_call.1} parent=11 // pred_fallthru
          _
        // Predicated region
        $region17: #{tpu_custom_call.1} parent=11 // pred_check
          %p234 = pneg %p85
        $region18: #{tpu_custom_call.1} parent=11 // pred_check_branch
          %236 = sbr.rel (%p234) target = $region20
        $region19: #{tpu_custom_call.1} parent=11 // pred_region
          _
        $region20: #{tpu_custom_call.1} parent=11 // pred_fallthru
          _
        // Predicated region
        $region21: #{tpu_custom_call.1} parent=11 // pred_check
          %p237 = pneg %p106
        $region22: #{tpu_custom_call.1} parent=11 // pred_check_branch
          %239 = sbr.rel (%p237) target = $region24
        $region23: #{tpu_custom_call.1} parent=11 // pred_region
          _
        $region24: #{tpu_custom_call.1} parent=11 // pred_fallthru
          _
        // Predicated region
        $region25: #{tpu_custom_call.1} parent=11 // pred_check
          %p240 = pneg %p127
        $region26: #{tpu_custom_call.1} parent=11 // pred_check_branch
          %242 = sbr.rel (%p240) target = $region28
        $region27: #{tpu_custom_call.1} parent=11 // pred_region
          _
        $region28: #{tpu_custom_call.1} parent=11 // pred_fallthru
          _
        // Predicated region
        $region29: #{tpu_custom_call.1} parent=11 // pred_check
          %p243 = pneg %p148
        $region30: #{tpu_custom_call.1} parent=11 // pred_check_branch
          %245 = sbr.rel (%p243) target = $region32
        $region31: #{tpu_custom_call.1} parent=11 // pred_region
          _
        $region32: #{tpu_custom_call.1} parent=11 // pred_fallthru
          _
        // Predicated region
        $region33: #{tpu_custom_call.1} parent=11 // pred_check
          %p246 = pneg %p169
        $region34: #{tpu_custom_call.1} parent=11 // pred_check_branch
          %248 = sbr.rel (%p246) target = $region36
        $region35: #{tpu_custom_call.1} parent=11 // pred_region
          _
        $region36: #{tpu_custom_call.1} parent=11 // pred_fallthru
          _
        // Predicated region
        $region37: #{tpu_custom_call.1} parent=11 // pred_check
          %p249 = pneg %p190
        $region38: #{tpu_custom_call.1} parent=11 // pred_check_branch
          %251 = sbr.rel (%p249) target = $region40
        $region39: #{tpu_custom_call.1} parent=11 // pred_region
          _
        $region40: #{tpu_custom_call.1} parent=11 // pred_fallthru
          _
      $region12: #{tpu_custom_call.1} parent=5 // pred_fallthru
        _
      %p252 = scmp.lt.s32.totalorder %s17, 2
      // Predicated region
      $region41: #{tpu_custom_call.1} parent=5 // pred_check
        %p253 = pneg %p252
      $region42: #{tpu_custom_call.1} parent=5 // pred_check_branch
        %255 = sbr.rel (%p253) target = $region44
      $region43: #{tpu_custom_call.1} parent=5 // pred_region
        // Predicated region
        $region45: #{tpu_custom_call.1} parent=43 // pred_check
          %p256 = pneg %p37
        $region46: #{tpu_custom_call.1} parent=43 // pred_check_branch
          %258 = sbr.rel (%p256) target = $region48
        $region47: #{tpu_custom_call.1} parent=43 // pred_region
          %p259 = scmp.lt.s32.totalorder %s17, 1
          %s260 = scalar_select %p259, %s17, 1
          %s261 = smul.addr %s260, 30
          %s262 = smul.addr %s261, 8
          %s263 = scalar_lea.vmem %s0, %s262
        $region48: #{tpu_custom_call.1} parent=43 // pred_fallthru
          _
      $region44: #{tpu_custom_call.1} parent=5 // pred_fallthru
        _
      %p264 = scmp.le.s32.totalorder 1, %s17
      %p265 = scmp.lt.s32.totalorder %s17, 3
      %p266 = pnand %p264, %p265
      %p267 = pneg %p266
      // Predicated region
      $region49: #{tpu_custom_call.1} parent=5 // pred_check
        _
      $region50: #{tpu_custom_call.1} parent=5 // pred_check_branch
        %269 = sbr.rel (%p266) target = $region52
      $region51: #{tpu_custom_call.1} parent=5 // pred_region
        %s270 = ssub.s32 %s17, 1
        %p271 = scmp.lt.s32.totalorder %s22, 1
        %s272 = scalar_select %p271, %s22, 1
        %s273 = smul.addr %s272, 30
        %s274 = smul.addr %s273, 8
        %s275 = scalar_lea.vmem %s0, %s274
        %p276 = pneg %p43
        %p277 = pneg %p40
        %p278 = pneg %p64
        %p279 = pneg %p61
        %p280 = pneg %p85
        %p281 = pneg %p82
        %p282 = pneg %p106
        %p283 = pneg %p103
        %p284 = pneg %p127
        %p285 = pneg %p124
        %p286 = pneg %p148
        %p287 = pneg %p145
        %p288 = pneg %p169
        %p289 = pneg %p166
        %p290 = pneg %p190
        %p291 = pneg %p187
        %p292 = pneg %p216
        %p293 = pneg %p213
        %s294 = sand.u32 %s203, 1
        %s295 = scalar_lea.sflag [#allocation5], %s294
        %s296 = sand.u32 %s203, 1
        %s297 = scalar_lea.vmem [#allocation4], %s296
        %p298 = scmp.lt.s32.totalorder %s22, 1
        %s299 = scalar_select %p298, %s22, 1
        %s300 = smul.addr %s299, 30
        %s301 = smul.addr %s300, 8
        %s302 = scalar_lea.vmem %s0, %s301
        %v303 = vld [vmem:[%s302] sm:$0xff]
        %v304 = vld [vmem:[%s302 + $0x8] sm:$0xff]
        %v305 = vld [vmem:[%s302 + $0x10] sm:$0xff]
        %v306 = vld [vmem:[%s302 + $0x18] sm:$0xff]
        %v307 = vld [vmem:[%s302 + $0x20] sm:$0xff]
        %v308 = vld [vmem:[%s302 + $0x28] sm:$0xff]
        %v309 = vld [vmem:[%s302 + $0x30] sm:$0xff]
        %v310 = vld [vmem:[%s302 + $0x38] sm:$0xff]
        %v311 = vld [vmem:[%s302 + $0x40] sm:$0xff]
        %v312 = vld [vmem:[%s302 + $0x48] sm:$0xff]
        %v313 = vld [vmem:[%s302 + $0x50] sm:$0x3f]
        %v314 = vld [vmem:[%s302 + $0x58] sm:$0x3f]
        %v315 = vld [vmem:[%s302 + $0x60] sm:$0x3f]
        %v316 = vld [vmem:[%s302 + $0x68] sm:$0x3f]
        %v317 = vld [vmem:[%s302 + $0x70] sm:$0x3f]
        %s318 = scalar_lea.vmem %s302, 120
        %v319 = vld [vmem:[%s318] sm:$0xff]
        %v320 = vld [vmem:[%s318 + $0x8] sm:$0xff]
        %v321 = vld [vmem:[%s318 + $0x10] sm:$0xff]
        %v322 = vld [vmem:[%s318 + $0x18] sm:$0xff]
        %v323 = vld [vmem:[%s318 + $0x20] sm:$0xff]
        %v324 = vld [vmem:[%s318 + $0x28] sm:$0xff]
        %v325 = vld [vmem:[%s318 + $0x30] sm:$0xff]
        %v326 = vld [vmem:[%s318 + $0x38] sm:$0xff]
        %v327 = vld [vmem:[%s318 + $0x40] sm:$0xff]
        %v328 = vld [vmem:[%s318 + $0x48] sm:$0xff]
        %v329 = vld [vmem:[%s318 + $0x50] sm:$0x3f]
        %v330 = vld [vmem:[%s318 + $0x58] sm:$0x3f]
        %v331 = vld [vmem:[%s318 + $0x60] sm:$0x3f]
        %v332 = vld [vmem:[%s318 + $0x68] sm:$0x3f]
        %v333 = vld [vmem:[%s318 + $0x70] sm:$0x3f]
        %v334 = vadd.f32 %v303, %v319
        %v335 = vadd.f32 %v304, %v320
        %v336 = vadd.f32 %v305, %v321
        %v337 = vadd.f32 %v306, %v322
        %v338 = vadd.f32 %v307, %v323
        %v339 = vadd.f32 %v308, %v324
        %v340 = vadd.f32 %v309, %v325
        %v341 = vadd.f32 %v310, %v326
        %v342 = vadd.f32 %v311, %v327
        %v343 = vadd.f32 %v312, %v328
        %v344 = vadd.f32 %v313, %v329
        %v345 = vadd.f32 %v314, %v330
        %v346 = vadd.f32 %v315, %v331
        %v347 = vadd.f32 %v316, %v332
        %v348 = vadd.f32 %v317, %v333
        %v349 = vld [vmem:[%s1] sm:$0xff]
        %v350 = vld [vmem:[%s1 + $0x8] sm:$0xff]
        %v351 = vld [vmem:[%s1 + $0x10] sm:$0xff]
        %v352 = vld [vmem:[%s2] sm:$0xff]
        %v353 = vld [vmem:[%s2 + $0x8] sm:$0xff]
        %v354 = vld [vmem:[%s2 + $0x10] sm:$0xff]
        %v355 = vld [vmem:[%s2 + $0x18] sm:$0xff]
        %v356 = vld [vmem:[%s2 + $0x20] sm:$0xff]
        %v357 = vld [vmem:[%s2 + $0x28] sm:$0xff]
        %v358 = vld [vmem:[%s2 + $0x30] sm:$0xff]
        %v359 = vld [vmem:[%s2 + $0x38] sm:$0xff]
        %v360 = vld [vmem:[%s2 + $0x40] sm:$0xff]
        %v361 = vld [vmem:[%s2 + $0x48] sm:$0xff]
        %v362 = vld [vmem:[%s2 + $0x50] sm:$0xff]
        %v363 = vld [vmem:[%s2 + $0x58] sm:$0xff]
        %v364 = vld [vmem:[%s2 + $0x60] sm:$0xff]
        %v365 = vld [vmem:[%s2 + $0x68] sm:$0xff]
        %v366 = vld [vmem:[%s2 + $0x70] sm:$0xff]
        %vm367 = vcmask 179200
        %v369 = vsel %vm367, %v349, 0
        %v372 = vsel %vm367, %v350, 0
        %v375 = vsel %vm367, %v351, 0
        %vm377 = vcmask 1045504
        %v379 = vsel %vm377, %v344, 0
        %v382 = vsel %vm377, %v345, 0
        %v385 = vsel %vm377, %v346, 0
        %v388 = vsel %vm377, %v347, 0
        %v391 = vsel %vm377, %v348, 0
        %393 = vmatpush.msra.mxu0 0.0
        %394 = vmatpush.msra.mxu0 0.0
        %395 = vmatpush.msra.mxu0 0.0
        %396 = vmatpush.msra.mxu0 0.0
        %397 = vmatpush.msra.mxu0 0.0
        %398 = vmatpush.msra.mxu0 0.0
        %399 = vmatpush.msra.mxu0 0.0
        %400 = vmatpush.msra.mxu0 0.0
        %401 = vmatpush.msra.mxu0 0.0
        %402 = vmatpush.msra.mxu0 0.0
        %403 = vmatpush.msra.mxu0 0.0
        %404 = vmatpush.msra.mxu0 0.0
        %405 = vmatpush.msra.mxu0 0.0
        %406 = vmatpush.msra.mxu0 %v379
        %407 = vmatpush.msra.mxu0 %v339
        %408 = vmatpush.msra.mxu0 %v334
        %409 = vmatmul.f32.gmra.mxu0 %v369
        %v410 = vpop.f32.mrf.mxu0
        %v411 = vadd.f32 %v352, %v410
        %412 = vmatmul.f32.gmra.mxu0 %v372
        %v413 = vpop.f32.mrf.mxu0
        %v414 = vadd.f32 %v357, %v413
        %415 = vmatmul.f32.gmra.mxu0 %v375
        %v416 = vpop.f32.mrf.mxu0
        %v417 = vadd.f32 %v362, %v416
        %418 = vdwg.mxu0
        %419 = vmatpush.msra.mxu0 0.0
        %420 = vmatpush.msra.mxu0 0.0
        %421 = vmatpush.msra.mxu0 0.0
        %422 = vmatpush.msra.mxu0 0.0
        %423 = vmatpush.msra.mxu0 0.0
        %424 = vmatpush.msra.mxu0 0.0
        %425 = vmatpush.msra.mxu0 0.0
        %426 = vmatpush.msra.mxu0 0.0
        %427 = vmatpush.msra.mxu0 0.0
        %428 = vmatpush.msra.mxu0 0.0
        %429 = vmatpush.msra.mxu0 0.0
        %430 = vmatpush.msra.mxu0 0.0
        %431 = vmatpush.msra.mxu0 0.0
        %432 = vmatpush.msra.mxu0 %v382
        %433 = vmatpush.msra.mxu0 %v340
        %434 = vmatpush.msra.mxu0 %v335
        %435 = vmatmul.f32.gmra.mxu0 %v369
        %v436 = vpop.f32.mrf.mxu0
        %v437 = vadd.f32 %v353, %v436
        %438 = vmatmul.f32.gmra.mxu0 %v372
        %v439 = vpop.f32.mrf.mxu0
        %v440 = vadd.f32 %v358, %v439
        %441 = vmatmul.f32.gmra.mxu0 %v375
        %v442 = vpop.f32.mrf.mxu0
        %v443 = vadd.f32 %v363, %v442
        %444 = vdwg.mxu0
        %445 = vmatpush.msra.mxu0 0.0
        %446 = vmatpush.msra.mxu0 0.0
        %447 = vmatpush.msra.mxu0 0.0
        %448 = vmatpush.msra.mxu0 0.0
        %449 = vmatpush.msra.mxu0 0.0
        %450 = vmatpush.msra.mxu0 0.0
        %451 = vmatpush.msra.mxu0 0.0
        %452 = vmatpush.msra.mxu0 0.0
        %453 = vmatpush.msra.mxu0 0.0
        %454 = vmatpush.msra.mxu0 0.0
        %455 = vmatpush.msra.mxu0 0.0
        %456 = vmatpush.msra.mxu0 0.0
        %457 = vmatpush.msra.mxu0 0.0
        %458 = vmatpush.msra.mxu0 %v385
        %459 = vmatpush.msra.mxu0 %v341
        %460 = vmatpush.msra.mxu0 %v336
        %461 = vmatmul.f32.gmra.mxu0 %v369
        %v462 = vpop.f32.mrf.mxu0
        %v463 = vadd.f32 %v354, %v462
        %464 = vmatmul.f32.gmra.mxu0 %v372
        %v465 = vpop.f32.mrf.mxu0
        %v466 = vadd.f32 %v359, %v465
        %467 = vmatmul.f32.gmra.mxu0 %v375
        %v468 = vpop.f32.mrf.mxu0
        %v469 = vadd.f32 %v364, %v468
        %470 = vdwg.mxu0
        %471 = vmatpush.msra.mxu0 0.0
        %472 = vmatpush.msra.mxu0 0.0
        %473 = vmatpush.msra.mxu0 0.0
        %474 = vmatpush.msra.mxu0 0.0
        %475 = vmatpush.msra.mxu0 0.0
        %476 = vmatpush.msra.mxu0 0.0
        %477 = vmatpush.msra.mxu0 0.0
        %478 = vmatpush.msra.mxu0 0.0
        %479 = vmatpush.msra.mxu0 0.0
        %480 = vmatpush.msra.mxu0 0.0
        %481 = vmatpush.msra.mxu0 0.0
        %482 = vmatpush.msra.mxu0 0.0
        %483 = vmatpush.msra.mxu0 0.0
        %484 = vmatpush.msra.mxu0 %v388
        %485 = vmatpush.msra.mxu0 %v342
        %486 = vmatpush.msra.mxu0 %v337
        %487 = vmatmul.f32.gmra.mxu0 %v369
        %v488 = vpop.f32.mrf.mxu0
        %v489 = vadd.f32 %v355, %v488
        %490 = vmatmul.f32.gmra.mxu0 %v372
        %v491 = vpop.f32.mrf.mxu0
        %v492 = vadd.f32 %v360, %v491
        %493 = vmatmul.f32.gmra.mxu0 %v375
        %v494 = vpop.f32.mrf.mxu0
        %v495 = vadd.f32 %v365, %v494
        %496 = vdwg.mxu0
        %497 = vmatpush.msra.mxu0 0.0
        %498 = vmatpush.msra.mxu0 0.0
        %499 = vmatpush.msra.mxu0 0.0
        %500 = vmatpush.msra.mxu0 0.0
        %501 = vmatpush.msra.mxu0 0.0
        %502 = vmatpush.msra.mxu0 0.0
        %503 = vmatpush.msra.mxu0 0.0
        %504 = vmatpush.msra.mxu0 0.0
        %505 = vmatpush.msra.mxu0 0.0
        %506 = vmatpush.msra.mxu0 0.0
        %507 = vmatpush.msra.mxu0 0.0
        %508 = vmatpush.msra.mxu0 0.0
        %509 = vmatpush.msra.mxu0 0.0
        %510 = vmatpush.msra.mxu0 %v391
        %511 = vmatpush.msra.mxu0 %v343
        %512 = vmatpush.msra.mxu0 %v338
        %513 = vmatmul.f32.gmra.mxu0 %v369
        %v514 = vpop.f32.mrf.mxu0
        %v515 = vadd.f32 %v356, %v514
        %516 = vmatmul.f32.gmra.mxu0 %v372
        %v517 = vpop.f32.mrf.mxu0
        %v518 = vadd.f32 %v361, %v517
        %519 = vmatmul.f32.gmra.mxu0 %v375
        %v520 = vpop.f32.mrf.mxu0
        %v521 = vadd.f32 %v366, %v520
        %522 = vdwg.mxu0
        %vm523 = vcmask 48128
        %524 = vst.msk [vmem:[#allocation2] sm:$0xff] %vm523, 0.0
        %525 = vst.msk [vmem:[#allocation2 + $0x30] sm:$0xff] %vm523, 0.0
        %526 = vst.msk [vmem:[#allocation2 + $0x60] sm:$0xff] %vm523, 0.0
        %vm527 = vcmask 130096
        %528 = vst.msk [vmem:[#allocation2 + $0x28] sm:$0xff] %vm527, 0.0
        %529 = vst.msk [vmem:[#allocation2 + $0x58] sm:$0xff] %vm527, 0.0
        %530 = vst.msk [vmem:[#allocation2 + $0x88] sm:$0xff] %vm527, 0.0
        %546 = vrot.lane.b32.xlu0 %v411, 6
        %v547 = vpop.permute.xlu0 %546
        %548 = vrot.lane.b32.xlu0 %v437, 6
        %v549 = vpop.permute.xlu0 %548
        %550 = vrot.lane.b32.xlu0 %v463, 6
        %v551 = vpop.permute.xlu0 %550
        %552 = vrot.lane.b32.xlu0 %v489, 6
        %v553 = vpop.permute.xlu0 %552
        %554 = vrot.lane.b32.xlu0 %v515, 6
        %v555 = vpop.permute.xlu0 %554
        %556 = vrot.lane.b32.xlu0 %v414, 6
        %v557 = vpop.permute.xlu0 %556
        %558 = vrot.lane.b32.xlu0 %v440, 6
        %v559 = vpop.permute.xlu0 %558
        %560 = vrot.lane.b32.xlu0 %v466, 6
        %v561 = vpop.permute.xlu0 %560
        %562 = vrot.lane.b32.xlu0 %v492, 6
        %v563 = vpop.permute.xlu0 %562
        %564 = vrot.lane.b32.xlu0 %v518, 6
        %v565 = vpop.permute.xlu0 %564
        %566 = vrot.lane.b32.xlu0 %v417, 6
        %v567 = vpop.permute.xlu0 %566
        %568 = vrot.lane.b32.xlu0 %v443, 6
        %v569 = vpop.permute.xlu0 %568
        %570 = vrot.lane.b32.xlu0 %v469, 6
        %v571 = vpop.permute.xlu0 %570
        %572 = vrot.lane.b32.xlu0 %v495, 6
        %v573 = vpop.permute.xlu0 %572
        %574 = vrot.lane.b32.xlu0 %v521, 6
        %v575 = vpop.permute.xlu0 %574
        %v576 = vsel %vm523, %v547, %v549
        %v577 = vsel %vm523, %v549, %v551
        %v578 = vsel %vm523, %v551, %v553
        %v579 = vsel %vm523, %v553, %v555
        %v580 = vsel %vm523, %v557, %v559
        %v581 = vsel %vm523, %v559, %v561
        %v582 = vsel %vm523, %v561, %v563
        %v583 = vsel %vm523, %v563, %v565
        %v584 = vsel %vm523, %v567, %v569
        %v585 = vsel %vm523, %v569, %v571
        %v586 = vsel %vm523, %v571, %v573
        %v587 = vsel %vm523, %v573, %v575
        %vm606 = vcmask 1047600
        %607 = vst.msk [vmem:[#allocation2] sm:$0xff] %vm606, %v547
        %608 = vst [vmem:[#allocation2 + $0x8] sm:$0xff] %v576
        %609 = vst [vmem:[#allocation2 + $0x10] sm:$0xff] %v577
        %610 = vst [vmem:[#allocation2 + $0x18] sm:$0xff] %v578
        %611 = vst [vmem:[#allocation2 + $0x20] sm:$0xff] %v579
        %612 = vst.msk [vmem:[#allocation2 + $0x28] sm:$0xff] %vm523, %v555
        %613 = vst.msk [vmem:[#allocation2 + $0x30] sm:$0xff] %vm606, %v557
        %614 = vst [vmem:[#allocation2 + $0x38] sm:$0xff] %v580
        %615 = vst [vmem:[#allocation2 + $0x40] sm:$0xff] %v581
        %616 = vst [vmem:[#allocation2 + $0x48] sm:$0xff] %v582
        %617 = vst [vmem:[#allocation2 + $0x50] sm:$0xff] %v583
        %618 = vst.msk [vmem:[#allocation2 + $0x58] sm:$0xff] %vm523, %v565
        %619 = vst.msk [vmem:[#allocation2 + $0x60] sm:$0xff] %vm606, %v567
        %620 = vst [vmem:[#allocation2 + $0x68] sm:$0xff] %v584
        %621 = vst [vmem:[#allocation2 + $0x70] sm:$0xff] %v585
        %622 = vst [vmem:[#allocation2 + $0x78] sm:$0xff] %v586
        %623 = vst [vmem:[#allocation2 + $0x80] sm:$0xff] %v587
        %624 = vst.msk [vmem:[#allocation2 + $0x88] sm:$0xff] %vm523, %v575
        %v625 = vld [vmem:[#allocation2] sm:$0xff]
        %v626 = vld [vmem:[#allocation2 + $0x8] sm:$0xff]
        %v627 = vld [vmem:[#allocation2 + $0x10] sm:$0xff]
        %v628 = vld [vmem:[#allocation2 + $0x18] sm:$0xff]
        %v629 = vld [vmem:[#allocation2 + $0x20] sm:$0xff]
        %v630 = vld [vmem:[#allocation2 + $0x30] sm:$0xff]
        %v631 = vld [vmem:[#allocation2 + $0x38] sm:$0xff]
        %v632 = vld [vmem:[#allocation2 + $0x40] sm:$0xff]
        %v633 = vld [vmem:[#allocation2 + $0x48] sm:$0xff]
        %v634 = vld [vmem:[#allocation2 + $0x50] sm:$0xff]
        %v635 = vld [vmem:[#allocation2 + $0x60] sm:$0xff]
        %v636 = vld [vmem:[#allocation2 + $0x68] sm:$0xff]
        %v637 = vld [vmem:[#allocation2 + $0x70] sm:$0xff]
        %v638 = vld [vmem:[#allocation2 + $0x78] sm:$0xff]
        %v639 = vld [vmem:[#allocation2 + $0x80] sm:$0xff]
        %640 = vst [vmem:[#allocation3] sm:$0xff] %v625
        %641 = vst [vmem:[#allocation3 + $0x8] sm:$0xff] %v626
        %642 = vst [vmem:[#allocation3 + $0x10] sm:$0xff] %v627
        %643 = vst [vmem:[#allocation3 + $0x18] sm:$0xff] %v628
        %644 = vst [vmem:[#allocation3 + $0x20] sm:$0xff] %v629
        %645 = vst [vmem:[#allocation3 + $0x28] sm:$0xff] %v630
        %646 = vst [vmem:[#allocation3 + $0x30] sm:$0xff] %v631
        %647 = vst [vmem:[#allocation3 + $0x38] sm:$0xff] %v632
        %648 = vst [vmem:[#allocation3 + $0x40] sm:$0xff] %v633
        %649 = vst [vmem:[#allocation3 + $0x48] sm:$0xff] %v634
        %650 = vst [vmem:[#allocation3 + $0x50] sm:$0xff] %v635
        %651 = vst [vmem:[#allocation3 + $0x58] sm:$0xff] %v636
        %652 = vst [vmem:[#allocation3 + $0x60] sm:$0xff] %v637
        %653 = vst [vmem:[#allocation3 + $0x68] sm:$0xff] %v638
        %654 = vst [vmem:[#allocation3 + $0x70] sm:$0xff] %v639
        %v655 = vld [vmem:[#allocation2] sm:$0xff]
        %v656 = vld [vmem:[#allocation2 + $0x8] sm:$0xff]
        %v657 = vld [vmem:[#allocation2 + $0x10] sm:$0xff]
        %v658 = vld [vmem:[#allocation2 + $0x18] sm:$0xff]
        %v659 = vld [vmem:[#allocation2 + $0x20] sm:$0xff]
        %v660 = vld [vmem:[#allocation2 + $0x28] sm:$0xff]
        %v661 = vld [vmem:[#allocation2 + $0x30] sm:$0xff]
        %v662 = vld [vmem:[#allocation2 + $0x38] sm:$0xff]
        %v663 = vld [vmem:[#allocation2 + $0x40] sm:$0xff]
        %v664 = vld [vmem:[#allocation2 + $0x48] sm:$0xff]
        %v665 = vld [vmem:[#allocation2 + $0x50] sm:$0xff]
        %v666 = vld [vmem:[#allocation2 + $0x58] sm:$0xff]
        %v667 = vld [vmem:[#allocation2 + $0x60] sm:$0xff]
        %v668 = vld [vmem:[#allocation2 + $0x68] sm:$0xff]
        %v669 = vld [vmem:[#allocation2 + $0x70] sm:$0xff]
        %v670 = vld [vmem:[#allocation2 + $0x78] sm:$0xff]
        %v671 = vld [vmem:[#allocation2 + $0x80] sm:$0xff]
        %v672 = vld [vmem:[#allocation2 + $0x88] sm:$0xff]
        %691 = vrot.lane.b32.xlu0 %v655, 127
        %v692 = vpop.permute.xlu0 %691
        %693 = vrot.lane.b32.xlu0 %v656, 127
        %v694 = vpop.permute.xlu0 %693
        %695 = vrot.lane.b32.xlu0 %v657, 127
        %v696 = vpop.permute.xlu0 %695
        %697 = vrot.lane.b32.xlu0 %v658, 127
        %v698 = vpop.permute.xlu0 %697
        %699 = vrot.lane.b32.xlu0 %v659, 127
        %v700 = vpop.permute.xlu0 %699
        %701 = vrot.lane.b32.xlu0 %v660, 127
        %v702 = vpop.permute.xlu0 %701
        %703 = vrot.lane.b32.xlu0 %v661, 127
        %v704 = vpop.permute.xlu0 %703
        %705 = vrot.lane.b32.xlu0 %v662, 127
        %v706 = vpop.permute.xlu0 %705
        %707 = vrot.lane.b32.xlu0 %v663, 127
        %v708 = vpop.permute.xlu0 %707
        %709 = vrot.lane.b32.xlu0 %v664, 127
        %v710 = vpop.permute.xlu0 %709
        %711 = vrot.lane.b32.xlu0 %v665, 127
        %v712 = vpop.permute.xlu0 %711
        %713 = vrot.lane.b32.xlu0 %v666, 127
        %v714 = vpop.permute.xlu0 %713
        %715 = vrot.lane.b32.xlu0 %v667, 127
        %v716 = vpop.permute.xlu0 %715
        %717 = vrot.lane.b32.xlu0 %v668, 127
        %v718 = vpop.permute.xlu0 %717
        %719 = vrot.lane.b32.xlu0 %v669, 127
        %v720 = vpop.permute.xlu0 %719
        %721 = vrot.lane.b32.xlu0 %v670, 127
        %v722 = vpop.permute.xlu0 %721
        %723 = vrot.lane.b32.xlu0 %v671, 127
        %v724 = vpop.permute.xlu0 %723
        %725 = vrot.lane.b32.xlu0 %v672, 127
        %v726 = vpop.permute.xlu0 %725
        %vm727 = vcmask 1039360
        %v728 = vsel %vm727, %v692, %v694
        %v729 = vsel %vm727, %v694, %v696
        %v730 = vsel %vm727, %v696, %v698
        %v731 = vsel %vm727, %v698, %v700
        %v732 = vsel %vm727, %v700, %v702
        %v733 = vsel %vm727, %v704, %v706
        %v734 = vsel %vm727, %v706, %v708
        %v735 = vsel %vm727, %v708, %v710
        %v736 = vsel %vm727, %v710, %v712
        %v737 = vsel %vm727, %v712, %v714
        %v738 = vsel %vm727, %v716, %v718
        %v739 = vsel %vm727, %v718, %v720
        %v740 = vsel %vm727, %v720, %v722
        %v741 = vsel %vm727, %v722, %v724
        %v742 = vsel %vm727, %v724, %v726
        %758 = vst [vmem:[#allocation3 + $0x78] sm:$0xff] %v728
        %759 = vst [vmem:[#allocation3 + $0x80] sm:$0xff] %v729
        %760 = vst [vmem:[#allocation3 + $0x88] sm:$0xff] %v730
        %761 = vst [vmem:[#allocation3 + $0x90] sm:$0xff] %v731
        %762 = vst [vmem:[#allocation3 + $0x98] sm:$0xff] %v732
        %763 = vst [vmem:[#allocation3 + $0xa0] sm:$0xff] %v733
        %764 = vst [vmem:[#allocation3 + $0xa8] sm:$0xff] %v734
        %765 = vst [vmem:[#allocation3 + $0xb0] sm:$0xff] %v735
        %766 = vst [vmem:[#allocation3 + $0xb8] sm:$0xff] %v736
        %767 = vst [vmem:[#allocation3 + $0xc0] sm:$0xff] %v737
        %768 = vst [vmem:[#allocation3 + $0xc8] sm:$0xff] %v738
        %769 = vst [vmem:[#allocation3 + $0xd0] sm:$0xff] %v739
        %770 = vst [vmem:[#allocation3 + $0xd8] sm:$0xff] %v740
        %771 = vst [vmem:[#allocation3 + $0xe0] sm:$0xff] %v741
        %772 = vst [vmem:[#allocation3 + $0xe8] sm:$0xff] %v742
        %v773 = vld [vmem:[#allocation2] sm:$0xff]
        %v774 = vld [vmem:[#allocation2 + $0x8] sm:$0xff]
        %v775 = vld [vmem:[#allocation2 + $0x10] sm:$0xff]
        %v776 = vld [vmem:[#allocation2 + $0x18] sm:$0xff]
        %v777 = vld [vmem:[#allocation2 + $0x20] sm:$0xff]
        %v778 = vld [vmem:[#allocation2 + $0x28] sm:$0xff]
        %v779 = vld [vmem:[#allocation2 + $0x30] sm:$0xff]
        %v780 = vld [vmem:[#allocation2 + $0x38] sm:$0xff]
        %v781 = vld [vmem:[#allocation2 + $0x40] sm:$0xff]
        %v782 = vld [vmem:[#allocation2 + $0x48] sm:$0xff]
        %v783 = vld [vmem:[#allocation2 + $0x50] sm:$0xff]
        %v784 = vld [vmem:[#allocation2 + $0x58] sm:$0xff]
        %v785 = vld [vmem:[#allocation2 + $0x60] sm:$0xff]
        %v786 = vld [vmem:[#allocation2 + $0x68] sm:$0xff]
        %v787 = vld [vmem:[#allocation2 + $0x70] sm:$0xff]
        %v788 = vld [vmem:[#allocation2 + $0x78] sm:$0xff]
        %v789 = vld [vmem:[#allocation2 + $0x80] sm:$0xff]
        %v790 = vld [vmem:[#allocation2 + $0x88] sm:$0xff]
        %809 = vrot.lane.b32.xlu0 %v773, 126
        %v810 = vpop.permute.xlu0 %809
        %811 = vrot.lane.b32.xlu0 %v774, 126
        %v812 = vpop.permute.xlu0 %811
        %813 = vrot.lane.b32.xlu0 %v775, 126
        %v814 = vpop.permute.xlu0 %813
        %815 = vrot.lane.b32.xlu0 %v776, 126
        %v816 = vpop.permute.xlu0 %815
        %817 = vrot.lane.b32.xlu0 %v777, 126
        %v818 = vpop.permute.xlu0 %817
        %819 = vrot.lane.b32.xlu0 %v778, 126
        %v820 = vpop.permute.xlu0 %819
        %821 = vrot.lane.b32.xlu0 %v779, 126
        %v822 = vpop.permute.xlu0 %821
        %823 = vrot.lane.b32.xlu0 %v780, 126
        %v824 = vpop.permute.xlu0 %823
        %825 = vrot.lane.b32.xlu0 %v781, 126
        %v826 = vpop.permute.xlu0 %825
        %827 = vrot.lane.b32.xlu0 %v782, 126
        %v828 = vpop.permute.xlu0 %827
        %829 = vrot.lane.b32.xlu0 %v783, 126
        %v830 = vpop.permute.xlu0 %829
        %831 = vrot.lane.b32.xlu0 %v784, 126
        %v832 = vpop.permute.xlu0 %831
        %833 = vrot.lane.b32.xlu0 %v785, 126
        %v834 = vpop.permute.xlu0 %833
        %835 = vrot.lane.b32.xlu0 %v786, 126
        %v836 = vpop.permute.xlu0 %835
        %837 = vrot.lane.b32.xlu0 %v787, 126
        %v838 = vpop.permute.xlu0 %837
        %839 = vrot.lane.b32.xlu0 %v788, 126
        %v840 = vpop.permute.xlu0 %839
        %841 = vrot.lane.b32.xlu0 %v789, 126
        %v842 = vpop.permute.xlu0 %841
        %843 = vrot.lane.b32.xlu0 %v790, 126
        %v844 = vpop.permute.xlu0 %843
        %vm845 = vcmask 1031168
        %v846 = vsel %vm845, %v810, %v812
        %v847 = vsel %vm845, %v812, %v814
        %v848 = vsel %vm845, %v814, %v816
        %v849 = vsel %vm845, %v816, %v818
        %v850 = vsel %vm845, %v818, %v820
        %v851 = vsel %vm845, %v822, %v824
        %v852 = vsel %vm845, %v824, %v826
        %v853 = vsel %vm845, %v826, %v828
        %v854 = vsel %vm845, %v828, %v830
        %v855 = vsel %vm845, %v830, %v832
        %v856 = vsel %vm845, %v834, %v836
        %v857 = vsel %vm845, %v836, %v838
        %v858 = vsel %vm845, %v838, %v840
        %v859 = vsel %vm845, %v840, %v842
        %v860 = vsel %vm845, %v842, %v844
        %876 = vst [vmem:[#allocation3 + $0xf0] sm:$0xff] %v846
        %877 = vst [vmem:[#allocation3 + $0xf8] sm:$0xff] %v847
        %878 = vst [vmem:[#allocation3 + $0x100] sm:$0xff] %v848
        %879 = vst [vmem:[#allocation3 + $0x108] sm:$0xff] %v849
        %880 = vst [vmem:[#allocation3 + $0x110] sm:$0xff] %v850
        %881 = vst [vmem:[#allocation3 + $0x118] sm:$0xff] %v851
        %882 = vst [vmem:[#allocation3 + $0x120] sm:$0xff] %v852
        %883 = vst [vmem:[#allocation3 + $0x128] sm:$0xff] %v853
        %884 = vst [vmem:[#allocation3 + $0x130] sm:$0xff] %v854
        %885 = vst [vmem:[#allocation3 + $0x138] sm:$0xff] %v855
        %886 = vst [vmem:[#allocation3 + $0x140] sm:$0xff] %v856
        %887 = vst [vmem:[#allocation3 + $0x148] sm:$0xff] %v857
        %888 = vst [vmem:[#allocation3 + $0x150] sm:$0xff] %v858
        %889 = vst [vmem:[#allocation3 + $0x158] sm:$0xff] %v859
        %890 = vst [vmem:[#allocation3 + $0x160] sm:$0xff] %v860
        %v891 = vld [vmem:[#allocation2] sm:$0xff]
        %v892 = vld [vmem:[#allocation2 + $0x8] sm:$0xff]
        %v893 = vld [vmem:[#allocation2 + $0x10] sm:$0xff]
        %v894 = vld [vmem:[#allocation2 + $0x18] sm:$0xff]
        %v895 = vld [vmem:[#allocation2 + $0x20] sm:$0xff]
        %v896 = vld [vmem:[#allocation2 + $0x28] sm:$0xff]
        %v897 = vld [vmem:[#allocation2 + $0x30] sm:$0xff]
        %v898 = vld [vmem:[#allocation2 + $0x38] sm:$0xff]
        %v899 = vld [vmem:[#allocation2 + $0x40] sm:$0xff]
        %v900 = vld [vmem:[#allocation2 + $0x48] sm:$0xff]
        %v901 = vld [vmem:[#allocation2 + $0x50] sm:$0xff]
        %v902 = vld [vmem:[#allocation2 + $0x58] sm:$0xff]
        %v903 = vld [vmem:[#allocation2 + $0x60] sm:$0xff]
        %v904 = vld [vmem:[#allocation2 + $0x68] sm:$0xff]
        %v905 = vld [vmem:[#allocation2 + $0x70] sm:$0xff]
        %v906 = vld [vmem:[#allocation2 + $0x78] sm:$0xff]
        %v907 = vld [vmem:[#allocation2 + $0x80] sm:$0xff]
        %v908 = vld [vmem:[#allocation2 + $0x88] sm:$0xff]
        %927 = vrot.lane.b32.xlu0 %v891, 125
        %v928 = vpop.permute.xlu0 %927
        %929 = vrot.lane.b32.xlu0 %v892, 125
        %v930 = vpop.permute.xlu0 %929
        %931 = vrot.lane.b32.xlu0 %v893, 125
        %v932 = vpop.permute.xlu0 %931
        %933 = vrot.lane.b32.xlu0 %v894, 125
        %v934 = vpop.permute.xlu0 %933
        %935 = vrot.lane.b32.xlu0 %v895, 125
        %v936 = vpop.permute.xlu0 %935
        %937 = vrot.lane.b32.xlu0 %v896, 125
        %v938 = vpop.permute.xlu0 %937
        %939 = vrot.lane.b32.xlu0 %v897, 125
        %v940 = vpop.permute.xlu0 %939
        %941 = vrot.lane.b32.xlu0 %v898, 125
        %v942 = vpop.permute.xlu0 %941
        %943 = vrot.lane.b32.xlu0 %v899, 125
        %v944 = vpop.permute.xlu0 %943
        %945 = vrot.lane.b32.xlu0 %v900, 125
        %v946 = vpop.permute.xlu0 %945
        %947 = vrot.lane.b32.xlu0 %v901, 125
        %v948 = vpop.permute.xlu0 %947
        %949 = vrot.lane.b32.xlu0 %v902, 125
        %v950 = vpop.permute.xlu0 %949
        %951 = vrot.lane.b32.xlu0 %v903, 125
        %v952 = vpop.permute.xlu0 %951
        %953 = vrot.lane.b32.xlu0 %v904, 125
        %v954 = vpop.permute.xlu0 %953
        %955 = vrot.lane.b32.xlu0 %v905, 125
        %v956 = vpop.permute.xlu0 %955
        %957 = vrot.lane.b32.xlu0 %v906, 125
        %v958 = vpop.permute.xlu0 %957
        %959 = vrot.lane.b32.xlu0 %v907, 125
        %v960 = vpop.permute.xlu0 %959
        %961 = vrot.lane.b32.xlu0 %v908, 125
        %v962 = vpop.permute.xlu0 %961
        %vm963 = vcmask 1022976
        %v964 = vsel %vm963, %v928, %v930
        %v965 = vsel %vm963, %v930, %v932
        %v966 = vsel %vm963, %v932, %v934
        %v967 = vsel %vm963, %v934, %v936
        %v968 = vsel %vm963, %v936, %v938
        %v969 = vsel %vm963, %v940, %v942
        %v970 = vsel %vm963, %v942, %v944
        %v971 = vsel %vm963, %v944, %v946
        %v972 = vsel %vm963, %v946, %v948
        %v973 = vsel %vm963, %v948, %v950
        %v974 = vsel %vm963, %v952, %v954
        %v975 = vsel %vm963, %v954, %v956
        %v976 = vsel %vm963, %v956, %v958
        %v977 = vsel %vm963, %v958, %v960
        %v978 = vsel %vm963, %v960, %v962
        %994 = vst [vmem:[#allocation3 + $0x168] sm:$0xff] %v964
        %995 = vst [vmem:[#allocation3 + $0x170] sm:$0xff] %v965
        %996 = vst [vmem:[#allocation3 + $0x178] sm:$0xff] %v966
        %997 = vst [vmem:[#allocation3 + $0x180] sm:$0xff] %v967
        %998 = vst [vmem:[#allocation3 + $0x188] sm:$0xff] %v968
        %999 = vst [vmem:[#allocation3 + $0x190] sm:$0xff] %v969
        %1000 = vst [vmem:[#allocation3 + $0x198] sm:$0xff] %v970
        %1001 = vst [vmem:[#allocation3 + $0x1a0] sm:$0xff] %v971
        %1002 = vst [vmem:[#allocation3 + $0x1a8] sm:$0xff] %v972
        %1003 = vst [vmem:[#allocation3 + $0x1b0] sm:$0xff] %v973
        %1004 = vst [vmem:[#allocation3 + $0x1b8] sm:$0xff] %v974
        %1005 = vst [vmem:[#allocation3 + $0x1c0] sm:$0xff] %v975
        %1006 = vst [vmem:[#allocation3 + $0x1c8] sm:$0xff] %v976
        %1007 = vst [vmem:[#allocation3 + $0x1d0] sm:$0xff] %v977
        %1008 = vst [vmem:[#allocation3 + $0x1d8] sm:$0xff] %v978
        %v1009 = vld [vmem:[#allocation2] sm:$0xff]
        %v1010 = vld [vmem:[#allocation2 + $0x8] sm:$0xff]
        %v1011 = vld [vmem:[#allocation2 + $0x10] sm:$0xff]
        %v1012 = vld [vmem:[#allocation2 + $0x18] sm:$0xff]
        %v1013 = vld [vmem:[#allocation2 + $0x20] sm:$0xff]
        %v1014 = vld [vmem:[#allocation2 + $0x28] sm:$0xff]
        %v1015 = vld [vmem:[#allocation2 + $0x30] sm:$0xff]
        %v1016 = vld [vmem:[#allocation2 + $0x38] sm:$0xff]
        %v1017 = vld [vmem:[#allocation2 + $0x40] sm:$0xff]
        %v1018 = vld [vmem:[#allocation2 + $0x48] sm:$0xff]
        %v1019 = vld [vmem:[#allocation2 + $0x50] sm:$0xff]
        %v1020 = vld [vmem:[#allocation2 + $0x58] sm:$0xff]
        %v1021 = vld [vmem:[#allocation2 + $0x60] sm:$0xff]
        %v1022 = vld [vmem:[#allocation2 + $0x68] sm:$0xff]
        %v1023 = vld [vmem:[#allocation2 + $0x70] sm:$0xff]
        %v1024 = vld [vmem:[#allocation2 + $0x78] sm:$0xff]
        %v1025 = vld [vmem:[#allocation2 + $0x80] sm:$0xff]
        %v1026 = vld [vmem:[#allocation2 + $0x88] sm:$0xff]
        %1045 = vrot.lane.b32.xlu0 %v1009, 124
        %v1046 = vpop.permute.xlu0 %1045
        %1047 = vrot.lane.b32.xlu0 %v1010, 124
        %v1048 = vpop.permute.xlu0 %1047
        %1049 = vrot.lane.b32.xlu0 %v1011, 124
        %v1050 = vpop.permute.xlu0 %1049
        %1051 = vrot.lane.b32.xlu0 %v1012, 124
        %v1052 = vpop.permute.xlu0 %1051
        %1053 = vrot.lane.b32.xlu0 %v1013, 124
        %v1054 = vpop.permute.xlu0 %1053
        %1055 = vrot.lane.b32.xlu0 %v1014, 124
        %v1056 = vpop.permute.xlu0 %1055
        %1057 = vrot.lane.b32.xlu0 %v1015, 124
        %v1058 = vpop.permute.xlu0 %1057
        %1059 = vrot.lane.b32.xlu0 %v1016, 124
        %v1060 = vpop.permute.xlu0 %1059
        %1061 = vrot.lane.b32.xlu0 %v1017, 124
        %v1062 = vpop.permute.xlu0 %1061
        %1063 = vrot.lane.b32.xlu0 %v1018, 124
        %v1064 = vpop.permute.xlu0 %1063
        %1065 = vrot.lane.b32.xlu0 %v1019, 124
        %v1066 = vpop.permute.xlu0 %1065
        %1067 = vrot.lane.b32.xlu0 %v1020, 124
        %v1068 = vpop.permute.xlu0 %1067
        %1069 = vrot.lane.b32.xlu0 %v1021, 124
        %v1070 = vpop.permute.xlu0 %1069
        %1071 = vrot.lane.b32.xlu0 %v1022, 124
        %v1072 = vpop.permute.xlu0 %1071
        %1073 = vrot.lane.b32.xlu0 %v1023, 124
        %v1074 = vpop.permute.xlu0 %1073
        %1075 = vrot.lane.b32.xlu0 %v1024, 124
        %v1076 = vpop.permute.xlu0 %1075
        %1077 = vrot.lane.b32.xlu0 %v1025, 124
        %v1078 = vpop.permute.xlu0 %1077
        %1079 = vrot.lane.b32.xlu0 %v1026, 124
        %v1080 = vpop.permute.xlu0 %1079
        %vm1081 = vcmask 1014784
        %v1082 = vsel %vm1081, %v1046, %v1048
        %v1083 = vsel %vm1081, %v1048, %v1050
        %v1084 = vsel %vm1081, %v1050, %v1052
        %v1085 = vsel %vm1081, %v1052, %v1054
        %v1086 = vsel %vm1081, %v1054, %v1056
        %v1087 = vsel %vm1081, %v1058, %v1060
        %v1088 = vsel %vm1081, %v1060, %v1062
        %v1089 = vsel %vm1081, %v1062, %v1064
        %v1090 = vsel %vm1081, %v1064, %v1066
        %v1091 = vsel %vm1081, %v1066, %v1068
        %v1092 = vsel %vm1081, %v1070, %v1072
        %v1093 = vsel %vm1081, %v1072, %v1074
        %v1094 = vsel %vm1081, %v1074, %v1076
        %v1095 = vsel %vm1081, %v1076, %v1078
        %v1096 = vsel %vm1081, %v1078, %v1080
        %1112 = vst [vmem:[#allocation3 + $0x1e0] sm:$0xff] %v1082
        %1113 = vst [vmem:[#allocation3 + $0x1e8] sm:$0xff] %v1083
        %1114 = vst [vmem:[#allocation3 + $0x1f0] sm:$0xff] %v1084
        %1115 = vst [vmem:[#allocation3 + $0x1f8] sm:$0xff] %v1085
        %1116 = vst [vmem:[#allocation3 + $0x200] sm:$0xff] %v1086
        %1117 = vst [vmem:[#allocation3 + $0x208] sm:$0xff] %v1087
        %1118 = vst [vmem:[#allocation3 + $0x210] sm:$0xff] %v1088
        %1119 = vst [vmem:[#allocation3 + $0x218] sm:$0xff] %v1089
        %1120 = vst [vmem:[#allocation3 + $0x220] sm:$0xff] %v1090
        %1121 = vst [vmem:[#allocation3 + $0x228] sm:$0xff] %v1091
        %1122 = vst [vmem:[#allocation3 + $0x230] sm:$0xff] %v1092
        %1123 = vst [vmem:[#allocation3 + $0x238] sm:$0xff] %v1093
        %1124 = vst [vmem:[#allocation3 + $0x240] sm:$0xff] %v1094
        %1125 = vst [vmem:[#allocation3 + $0x248] sm:$0xff] %v1095
        %1126 = vst [vmem:[#allocation3 + $0x250] sm:$0xff] %v1096
        %v1127 = vld [vmem:[#allocation2] sm:$0xff]
        %v1128 = vld [vmem:[#allocation2 + $0x8] sm:$0xff]
        %v1129 = vld [vmem:[#allocation2 + $0x10] sm:$0xff]
        %v1130 = vld [vmem:[#allocation2 + $0x18] sm:$0xff]
        %v1131 = vld [vmem:[#allocation2 + $0x20] sm:$0xff]
        %v1132 = vld [vmem:[#allocation2 + $0x28] sm:$0xff]
        %v1133 = vld [vmem:[#allocation2 + $0x30] sm:$0xff]
        %v1134 = vld [vmem:[#allocation2 + $0x38] sm:$0xff]
        %v1135 = vld [vmem:[#allocation2 + $0x40] sm:$0xff]
        %v1136 = vld [vmem:[#allocation2 + $0x48] sm:$0xff]
        %v1137 = vld [vmem:[#allocation2 + $0x50] sm:$0xff]
        %v1138 = vld [vmem:[#allocation2 + $0x58] sm:$0xff]
        %v1139 = vld [vmem:[#allocation2 + $0x60] sm:$0xff]
        %v1140 = vld [vmem:[#allocation2 + $0x68] sm:$0xff]
        %v1141 = vld [vmem:[#allocation2 + $0x70] sm:$0xff]
        %v1142 = vld [vmem:[#allocation2 + $0x78] sm:$0xff]
        %v1143 = vld [vmem:[#allocation2 + $0x80] sm:$0xff]
        %v1144 = vld [vmem:[#allocation2 + $0x88] sm:$0xff]
        %1163 = vrot.lane.b32.xlu0 %v1127, 123
        %v1164 = vpop.permute.xlu0 %1163
        %1165 = vrot.lane.b32.xlu0 %v1128, 123
        %v1166 = vpop.permute.xlu0 %1165
        %1167 = vrot.lane.b32.xlu0 %v1129, 123
        %v1168 = vpop.permute.xlu0 %1167
        %1169 = vrot.lane.b32.xlu0 %v1130, 123
        %v1170 = vpop.permute.xlu0 %1169
        %1171 = vrot.lane.b32.xlu0 %v1131, 123
        %v1172 = vpop.permute.xlu0 %1171
        %1173 = vrot.lane.b32.xlu0 %v1132, 123
        %v1174 = vpop.permute.xlu0 %1173
        %1175 = vrot.lane.b32.xlu0 %v1133, 123
        %v1176 = vpop.permute.xlu0 %1175
        %1177 = vrot.lane.b32.xlu0 %v1134, 123
        %v1178 = vpop.permute.xlu0 %1177
        %1179 = vrot.lane.b32.xlu0 %v1135, 123
        %v1180 = vpop.permute.xlu0 %1179
        %1181 = vrot.lane.b32.xlu0 %v1136, 123
        %v1182 = vpop.permute.xlu0 %1181
        %1183 = vrot.lane.b32.xlu0 %v1137, 123
        %v1184 = vpop.permute.xlu0 %1183
        %1185 = vrot.lane.b32.xlu0 %v1138, 123
        %v1186 = vpop.permute.xlu0 %1185
        %1187 = vrot.lane.b32.xlu0 %v1139, 123
        %v1188 = vpop.permute.xlu0 %1187
        %1189 = vrot.lane.b32.xlu0 %v1140, 123
        %v1190 = vpop.permute.xlu0 %1189
        %1191 = vrot.lane.b32.xlu0 %v1141, 123
        %v1192 = vpop.permute.xlu0 %1191
        %1193 = vrot.lane.b32.xlu0 %v1142, 123
        %v1194 = vpop.permute.xlu0 %1193
        %1195 = vrot.lane.b32.xlu0 %v1143, 123
        %v1196 = vpop.permute.xlu0 %1195
        %1197 = vrot.lane.b32.xlu0 %v1144, 123
        %v1198 = vpop.permute.xlu0 %1197
        %vm1199 = vcmask 1006592
        %v1200 = vsel %vm1199, %v1164, %v1166
        %v1201 = vsel %vm1199, %v1166, %v1168
        %v1202 = vsel %vm1199, %v1168, %v1170
        %v1203 = vsel %vm1199, %v1170, %v1172
        %v1204 = vsel %vm1199, %v1172, %v1174
        %v1205 = vsel %vm1199, %v1176, %v1178
        %v1206 = vsel %vm1199, %v1178, %v1180
        %v1207 = vsel %vm1199, %v1180, %v1182
        %v1208 = vsel %vm1199, %v1182, %v1184
        %v1209 = vsel %vm1199, %v1184, %v1186
        %v1210 = vsel %vm1199, %v1188, %v1190
        %v1211 = vsel %vm1199, %v1190, %v1192
        %v1212 = vsel %vm1199, %v1192, %v1194
        %v1213 = vsel %vm1199, %v1194, %v1196
        %v1214 = vsel %vm1199, %v1196, %v1198
        %1230 = vst [vmem:[#allocation3 + $0x258] sm:$0xff] %v1200
        %1231 = vst [vmem:[#allocation3 + $0x260] sm:$0xff] %v1201
        %1232 = vst [vmem:[#allocation3 + $0x268] sm:$0xff] %v1202
        %1233 = vst [vmem:[#allocation3 + $0x270] sm:$0xff] %v1203
        %1234 = vst [vmem:[#allocation3 + $0x278] sm:$0xff] %v1204
        %1235 = vst [vmem:[#allocation3 + $0x280] sm:$0xff] %v1205
        %1236 = vst [vmem:[#allocation3 + $0x288] sm:$0xff] %v1206
        %1237 = vst [vmem:[#allocation3 + $0x290] sm:$0xff] %v1207
        %1238 = vst [vmem:[#allocation3 + $0x298] sm:$0xff] %v1208
        %1239 = vst [vmem:[#allocation3 + $0x2a0] sm:$0xff] %v1209
        %1240 = vst [vmem:[#allocation3 + $0x2a8] sm:$0xff] %v1210
        %1241 = vst [vmem:[#allocation3 + $0x2b0] sm:$0xff] %v1211
        %1242 = vst [vmem:[#allocation3 + $0x2b8] sm:$0xff] %v1212
        %1243 = vst [vmem:[#allocation3 + $0x2c0] sm:$0xff] %v1213
        %1244 = vst [vmem:[#allocation3 + $0x2c8] sm:$0xff] %v1214
        %v1245 = vld [vmem:[#allocation2] sm:$0xff]
        %v1246 = vld [vmem:[#allocation2 + $0x8] sm:$0xff]
        %v1247 = vld [vmem:[#allocation2 + $0x10] sm:$0xff]
        %v1248 = vld [vmem:[#allocation2 + $0x18] sm:$0xff]
        %v1249 = vld [vmem:[#allocation2 + $0x20] sm:$0xff]
        %v1250 = vld [vmem:[#allocation2 + $0x28] sm:$0xff]
        %v1251 = vld [vmem:[#allocation2 + $0x30] sm:$0xff]
        %v1252 = vld [vmem:[#allocation2 + $0x38] sm:$0xff]
        %v1253 = vld [vmem:[#allocation2 + $0x40] sm:$0xff]
        %v1254 = vld [vmem:[#allocation2 + $0x48] sm:$0xff]
        %v1255 = vld [vmem:[#allocation2 + $0x50] sm:$0xff]
        %v1256 = vld [vmem:[#allocation2 + $0x58] sm:$0xff]
        %v1257 = vld [vmem:[#allocation2 + $0x60] sm:$0xff]
        %v1258 = vld [vmem:[#allocation2 + $0x68] sm:$0xff]
        %v1259 = vld [vmem:[#allocation2 + $0x70] sm:$0xff]
        %v1260 = vld [vmem:[#allocation2 + $0x78] sm:$0xff]
        %v1261 = vld [vmem:[#allocation2 + $0x80] sm:$0xff]
        %v1262 = vld [vmem:[#allocation2 + $0x88] sm:$0xff]
        %1281 = vrot.lane.b32.xlu0 %v1245, 122
        %v1282 = vpop.permute.xlu0 %1281
        %1283 = vrot.lane.b32.xlu0 %v1246, 122
        %v1284 = vpop.permute.xlu0 %1283
        %1285 = vrot.lane.b32.xlu0 %v1247, 122
        %v1286 = vpop.permute.xlu0 %1285
        %1287 = vrot.lane.b32.xlu0 %v1248, 122
        %v1288 = vpop.permute.xlu0 %1287
        %1289 = vrot.lane.b32.xlu0 %v1249, 122
        %v1290 = vpop.permute.xlu0 %1289
        %1291 = vrot.lane.b32.xlu0 %v1250, 122
        %v1292 = vpop.permute.xlu0 %1291
        %1293 = vrot.lane.b32.xlu0 %v1251, 122
        %v1294 = vpop.permute.xlu0 %1293
        %1295 = vrot.lane.b32.xlu0 %v1252, 122
        %v1296 = vpop.permute.xlu0 %1295
        %1297 = vrot.lane.b32.xlu0 %v1253, 122
        %v1298 = vpop.permute.xlu0 %1297
        %1299 = vrot.lane.b32.xlu0 %v1254, 122
        %v1300 = vpop.permute.xlu0 %1299
        %1301 = vrot.lane.b32.xlu0 %v1255, 122
        %v1302 = vpop.permute.xlu0 %1301
        %1303 = vrot.lane.b32.xlu0 %v1256, 122
        %v1304 = vpop.permute.xlu0 %1303
        %1305 = vrot.lane.b32.xlu0 %v1257, 122
        %v1306 = vpop.permute.xlu0 %1305
        %1307 = vrot.lane.b32.xlu0 %v1258, 122
        %v1308 = vpop.permute.xlu0 %1307
        %1309 = vrot.lane.b32.xlu0 %v1259, 122
        %v1310 = vpop.permute.xlu0 %1309
        %1311 = vrot.lane.b32.xlu0 %v1260, 122
        %v1312 = vpop.permute.xlu0 %1311
        %1313 = vrot.lane.b32.xlu0 %v1261, 122
        %v1314 = vpop.permute.xlu0 %1313
        %1315 = vrot.lane.b32.xlu0 %v1262, 122
        %v1316 = vpop.permute.xlu0 %1315
        %vm1317 = vcmask 998400
        %v1318 = vsel %vm1317, %v1282, %v1284
        %v1319 = vsel %vm1317, %v1284, %v1286
        %v1320 = vsel %vm1317, %v1286, %v1288
        %v1321 = vsel %vm1317, %v1288, %v1290
        %v1322 = vsel %vm1317, %v1290, %v1292
        %v1323 = vsel %vm1317, %v1294, %v1296
        %v1324 = vsel %vm1317, %v1296, %v1298
        %v1325 = vsel %vm1317, %v1298, %v1300
        %v1326 = vsel %vm1317, %v1300, %v1302
        %v1327 = vsel %vm1317, %v1302, %v1304
        %v1328 = vsel %vm1317, %v1306, %v1308
        %v1329 = vsel %vm1317, %v1308, %v1310
        %v1330 = vsel %vm1317, %v1310, %v1312
        %v1331 = vsel %vm1317, %v1312, %v1314
        %v1332 = vsel %vm1317, %v1314, %v1316
        %1348 = vst [vmem:[#allocation3 + $0x2d0] sm:$0xff] %v1318
        %1349 = vst [vmem:[#allocation3 + $0x2d8] sm:$0xff] %v1319
        %1350 = vst [vmem:[#allocation3 + $0x2e0] sm:$0xff] %v1320
        %1351 = vst [vmem:[#allocation3 + $0x2e8] sm:$0xff] %v1321
        %1352 = vst [vmem:[#allocation3 + $0x2f0] sm:$0xff] %v1322
        %1353 = vst [vmem:[#allocation3 + $0x2f8] sm:$0xff] %v1323
        %1354 = vst [vmem:[#allocation3 + $0x300] sm:$0xff] %v1324
        %1355 = vst [vmem:[#allocation3 + $0x308] sm:$0xff] %v1325
        %1356 = vst [vmem:[#allocation3 + $0x310] sm:$0xff] %v1326
        %1357 = vst [vmem:[#allocation3 + $0x318] sm:$0xff] %v1327
        %1358 = vst [vmem:[#allocation3 + $0x320] sm:$0xff] %v1328
        %1359 = vst [vmem:[#allocation3 + $0x328] sm:$0xff] %v1329
        %1360 = vst [vmem:[#allocation3 + $0x330] sm:$0xff] %v1330
        %1361 = vst [vmem:[#allocation3 + $0x338] sm:$0xff] %v1331
        %1362 = vst [vmem:[#allocation3 + $0x340] sm:$0xff] %v1332
        %v1363 = vld [vmem:[#allocation2] sm:$0xff]
        %v1364 = vld [vmem:[#allocation2 + $0x8] sm:$0xff]
        %v1365 = vld [vmem:[#allocation2 + $0x10] sm:$0xff]
        %v1366 = vld [vmem:[#allocation2 + $0x18] sm:$0xff]
        %v1367 = vld [vmem:[#allocation2 + $0x20] sm:$0xff]
        %v1368 = vld [vmem:[#allocation2 + $0x28] sm:$0xff]
        %v1369 = vld [vmem:[#allocation2 + $0x30] sm:$0xff]
        %v1370 = vld [vmem:[#allocation2 + $0x38] sm:$0xff]
        %v1371 = vld [vmem:[#allocation2 + $0x40] sm:$0xff]
        %v1372 = vld [vmem:[#allocation2 + $0x48] sm:$0xff]
        %v1373 = vld [vmem:[#allocation2 + $0x50] sm:$0xff]
        %v1374 = vld [vmem:[#allocation2 + $0x58] sm:$0xff]
        %v1375 = vld [vmem:[#allocation2 + $0x60] sm:$0xff]
        %v1376 = vld [vmem:[#allocation2 + $0x68] sm:$0xff]
        %v1377 = vld [vmem:[#allocation2 + $0x70] sm:$0xff]
        %v1378 = vld [vmem:[#allocation2 + $0x78] sm:$0xff]
        %v1379 = vld [vmem:[#allocation2 + $0x80] sm:$0xff]
        %v1380 = vld [vmem:[#allocation2 + $0x88] sm:$0xff]
        %1399 = vrot.lane.b32.xlu0 %v1363, 121
        %v1400 = vpop.permute.xlu0 %1399
        %1401 = vrot.lane.b32.xlu0 %v1364, 121
        %v1402 = vpop.permute.xlu0 %1401
        %1403 = vrot.lane.b32.xlu0 %v1365, 121
        %v1404 = vpop.permute.xlu0 %1403
        %1405 = vrot.lane.b32.xlu0 %v1366, 121
        %v1406 = vpop.permute.xlu0 %1405
        %1407 = vrot.lane.b32.xlu0 %v1367, 121
        %v1408 = vpop.permute.xlu0 %1407
        %1409 = vrot.lane.b32.xlu0 %v1368, 121
        %v1410 = vpop.permute.xlu0 %1409
        %1411 = vrot.lane.b32.xlu0 %v1369, 121
        %v1412 = vpop.permute.xlu0 %1411
        %1413 = vrot.lane.b32.xlu0 %v1370, 121
        %v1414 = vpop.permute.xlu0 %1413
        %1415 = vrot.lane.b32.xlu0 %v1371, 121
        %v1416 = vpop.permute.xlu0 %1415
        %1417 = vrot.lane.b32.xlu0 %v1372, 121
        %v1418 = vpop.permute.xlu0 %1417
        %1419 = vrot.lane.b32.xlu0 %v1373, 121
        %v1420 = vpop.permute.xlu0 %1419
        %1421 = vrot.lane.b32.xlu0 %v1374, 121
        %v1422 = vpop.permute.xlu0 %1421
        %1423 = vrot.lane.b32.xlu0 %v1375, 121
        %v1424 = vpop.permute.xlu0 %1423
        %1425 = vrot.lane.b32.xlu0 %v1376, 121
        %v1426 = vpop.permute.xlu0 %1425
        %1427 = vrot.lane.b32.xlu0 %v1377, 121
        %v1428 = vpop.permute.xlu0 %1427
        %1429 = vrot.lane.b32.xlu0 %v1378, 121
        %v1430 = vpop.permute.xlu0 %1429
        %1431 = vrot.lane.b32.xlu0 %v1379, 121
        %v1432 = vpop.permute.xlu0 %1431
        %1433 = vrot.lane.b32.xlu0 %v1380, 121
        %v1434 = vpop.permute.xlu0 %1433
        %vm1435 = vcmask 990208
        %v1436 = vsel %vm1435, %v1400, %v1402
        %v1437 = vsel %vm1435, %v1402, %v1404
        %v1438 = vsel %vm1435, %v1404, %v1406
        %v1439 = vsel %vm1435, %v1406, %v1408
        %v1440 = vsel %vm1435, %v1408, %v1410
        %v1441 = vsel %vm1435, %v1412, %v1414
        %v1442 = vsel %vm1435, %v1414, %v1416
        %v1443 = vsel %vm1435, %v1416, %v1418
        %v1444 = vsel %vm1435, %v1418, %v1420
        %v1445 = vsel %vm1435, %v1420, %v1422
        %v1446 = vsel %vm1435, %v1424, %v1426
        %v1447 = vsel %vm1435, %v1426, %v1428
        %v1448 = vsel %vm1435, %v1428, %v1430
        %v1449 = vsel %vm1435, %v1430, %v1432
        %v1450 = vsel %vm1435, %v1432, %v1434
        %1466 = vst [vmem:[#allocation3 + $0x348] sm:$0xff] %v1436
        %1467 = vst [vmem:[#allocation3 + $0x350] sm:$0xff] %v1437
        %1468 = vst [vmem:[#allocation3 + $0x358] sm:$0xff] %v1438
        %1469 = vst [vmem:[#allocation3 + $0x360] sm:$0xff] %v1439
        %1470 = vst [vmem:[#allocation3 + $0x368] sm:$0xff] %v1440
        %1471 = vst [vmem:[#allocation3 + $0x370] sm:$0xff] %v1441
        %1472 = vst [vmem:[#allocation3 + $0x378] sm:$0xff] %v1442
        %1473 = vst [vmem:[#allocation3 + $0x380] sm:$0xff] %v1443
        %1474 = vst [vmem:[#allocation3 + $0x388] sm:$0xff] %v1444
        %1475 = vst [vmem:[#allocation3 + $0x390] sm:$0xff] %v1445
        %1476 = vst [vmem:[#allocation3 + $0x398] sm:$0xff] %v1446
        %1477 = vst [vmem:[#allocation3 + $0x3a0] sm:$0xff] %v1447
        %1478 = vst [vmem:[#allocation3 + $0x3a8] sm:$0xff] %v1448
        %1479 = vst [vmem:[#allocation3 + $0x3b0] sm:$0xff] %v1449
        %1480 = vst [vmem:[#allocation3 + $0x3b8] sm:$0xff] %v1450
        %v1481 = vld [vmem:[#allocation2] sm:$0xff]
        %v1482 = vld [vmem:[#allocation2 + $0x8] sm:$0xff]
        %v1483 = vld [vmem:[#allocation2 + $0x10] sm:$0xff]
        %v1484 = vld [vmem:[#allocation2 + $0x18] sm:$0xff]
        %v1485 = vld [vmem:[#allocation2 + $0x20] sm:$0xff]
        %v1486 = vld [vmem:[#allocation2 + $0x28] sm:$0xff]
        %v1487 = vld [vmem:[#allocation2 + $0x30] sm:$0xff]
        %v1488 = vld [vmem:[#allocation2 + $0x38] sm:$0xff]
        %v1489 = vld [vmem:[#allocation2 + $0x40] sm:$0xff]
        %v1490 = vld [vmem:[#allocation2 + $0x48] sm:$0xff]
        %v1491 = vld [vmem:[#allocation2 + $0x50] sm:$0xff]
        %v1492 = vld [vmem:[#allocation2 + $0x58] sm:$0xff]
        %v1493 = vld [vmem:[#allocation2 + $0x60] sm:$0xff]
        %v1494 = vld [vmem:[#allocation2 + $0x68] sm:$0xff]
        %v1495 = vld [vmem:[#allocation2 + $0x70] sm:$0xff]
        %v1496 = vld [vmem:[#allocation2 + $0x78] sm:$0xff]
        %v1497 = vld [vmem:[#allocation2 + $0x80] sm:$0xff]
        %v1498 = vld [vmem:[#allocation2 + $0x88] sm:$0xff]
        %1517 = vrot.lane.b32.xlu0 %v1481, 120
        %v1518 = vpop.permute.xlu0 %1517
        %1519 = vrot.lane.b32.xlu0 %v1482, 120
        %v1520 = vpop.permute.xlu0 %1519
        %1521 = vrot.lane.b32.xlu0 %v1483, 120
        %v1522 = vpop.permute.xlu0 %1521
        %1523 = vrot.lane.b32.xlu0 %v1484, 120
        %v1524 = vpop.permute.xlu0 %1523
        %1525 = vrot.lane.b32.xlu0 %v1485, 120
        %v1526 = vpop.permute.xlu0 %1525
        %1527 = vrot.lane.b32.xlu0 %v1486, 120
        %v1528 = vpop.permute.xlu0 %1527
        %1529 = vrot.lane.b32.xlu0 %v1487, 120
        %v1530 = vpop.permute.xlu0 %1529
        %1531 = vrot.lane.b32.xlu0 %v1488, 120
        %v1532 = vpop.permute.xlu0 %1531
        %1533 = vrot.lane.b32.xlu0 %v1489, 120
        %v1534 = vpop.permute.xlu0 %1533
        %1535 = vrot.lane.b32.xlu0 %v1490, 120
        %v1536 = vpop.permute.xlu0 %1535
        %1537 = vrot.lane.b32.xlu0 %v1491, 120
        %v1538 = vpop.permute.xlu0 %1537
        %1539 = vrot.lane.b32.xlu0 %v1492, 120
        %v1540 = vpop.permute.xlu0 %1539
        %1541 = vrot.lane.b32.xlu0 %v1493, 120
        %v1542 = vpop.permute.xlu0 %1541
        %1543 = vrot.lane.b32.xlu0 %v1494, 120
        %v1544 = vpop.permute.xlu0 %1543
        %1545 = vrot.lane.b32.xlu0 %v1495, 120
        %v1546 = vpop.permute.xlu0 %1545
        %1547 = vrot.lane.b32.xlu0 %v1496, 120
        %v1548 = vpop.permute.xlu0 %1547
        %1549 = vrot.lane.b32.xlu0 %v1497, 120
        %v1550 = vpop.permute.xlu0 %1549
        %1551 = vrot.lane.b32.xlu0 %v1498, 120
        %v1552 = vpop.permute.xlu0 %1551
        %vm1553 = vcmask 982016
        %v1554 = vsel %vm1553, %v1518, %v1520
        %v1555 = vsel %vm1553, %v1520, %v1522
        %v1556 = vsel %vm1553, %v1522, %v1524
        %v1557 = vsel %vm1553, %v1524, %v1526
        %v1558 = vsel %vm1553, %v1526, %v1528
        %v1559 = vsel %vm1553, %v1530, %v1532
        %v1560 = vsel %vm1553, %v1532, %v1534
        %v1561 = vsel %vm1553, %v1534, %v1536
        %v1562 = vsel %vm1553, %v1536, %v1538
        %v1563 = vsel %vm1553, %v1538, %v1540
        %v1564 = vsel %vm1553, %v1542, %v1544
        %v1565 = vsel %vm1553, %v1544, %v1546
        %v1566 = vsel %vm1553, %v1546, %v1548
        %v1567 = vsel %vm1553, %v1548, %v1550
        %v1568 = vsel %vm1553, %v1550, %v1552
        %1584 = vst [vmem:[#allocation3 + $0x3c0] sm:$0xff] %v1554
        %1585 = vst [vmem:[#allocation3 + $0x3c8] sm:$0xff] %v1555
        %1586 = vst [vmem:[#allocation3 + $0x3d0] sm:$0xff] %v1556
        %1587 = vst [vmem:[#allocation3 + $0x3d8] sm:$0xff] %v1557
        %1588 = vst [vmem:[#allocation3 + $0x3e0] sm:$0xff] %v1558
        %1589 = vst [vmem:[#allocation3 + $0x3e8] sm:$0xff] %v1559
        %1590 = vst [vmem:[#allocation3 + $0x3f0] sm:$0xff] %v1560
        %1591 = vst [vmem:[#allocation3 + $0x3f8] sm:$0xff] %v1561
        %1592 = vst [vmem:[#allocation3 + $0x400] sm:$0xff] %v1562
        %1593 = vst [vmem:[#allocation3 + $0x408] sm:$0xff] %v1563
        %1594 = vst [vmem:[#allocation3 + $0x410] sm:$0xff] %v1564
        %1595 = vst [vmem:[#allocation3 + $0x418] sm:$0xff] %v1565
        %1596 = vst [vmem:[#allocation3 + $0x420] sm:$0xff] %v1566
        %1597 = vst [vmem:[#allocation3 + $0x428] sm:$0xff] %v1567
        %1598 = vst [vmem:[#allocation3 + $0x430] sm:$0xff] %v1568
        %v1599 = vld [vmem:[#allocation2] sm:$0xff]
        %v1600 = vld [vmem:[#allocation2 + $0x8] sm:$0xff]
        %v1601 = vld [vmem:[#allocation2 + $0x10] sm:$0xff]
        %v1602 = vld [vmem:[#allocation2 + $0x18] sm:$0xff]
        %v1603 = vld [vmem:[#allocation2 + $0x20] sm:$0xff]
        %v1604 = vld [vmem:[#allocation2 + $0x28] sm:$0xff]
        %v1605 = vld [vmem:[#allocation2 + $0x30] sm:$0xff]
        %v1606 = vld [vmem:[#allocation2 + $0x38] sm:$0xff]
        %v1607 = vld [vmem:[#allocation2 + $0x40] sm:$0xff]
        %v1608 = vld [vmem:[#allocation2 + $0x48] sm:$0xff]
        %v1609 = vld [vmem:[#allocation2 + $0x50] sm:$0xff]
        %v1610 = vld [vmem:[#allocation2 + $0x58] sm:$0xff]
        %v1611 = vld [vmem:[#allocation2 + $0x60] sm:$0xff]
        %v1612 = vld [vmem:[#allocation2 + $0x68] sm:$0xff]
        %v1613 = vld [vmem:[#allocation2 + $0x70] sm:$0xff]
        %v1614 = vld [vmem:[#allocation2 + $0x78] sm:$0xff]
        %v1615 = vld [vmem:[#allocation2 + $0x80] sm:$0xff]
        %v1616 = vld [vmem:[#allocation2 + $0x88] sm:$0xff]
        %1635 = vrot.lane.b32.xlu0 %v1599, 119
        %v1636 = vpop.permute.xlu0 %1635
        %1637 = vrot.lane.b32.xlu0 %v1600, 119
        %v1638 = vpop.permute.xlu0 %1637
        %1639 = vrot.lane.b32.xlu0 %v1601, 119
        %v1640 = vpop.permute.xlu0 %1639
        %1641 = vrot.lane.b32.xlu0 %v1602, 119
        %v1642 = vpop.permute.xlu0 %1641
        %1643 = vrot.lane.b32.xlu0 %v1603, 119
        %v1644 = vpop.permute.xlu0 %1643
        %1645 = vrot.lane.b32.xlu0 %v1604, 119
        %v1646 = vpop.permute.xlu0 %1645
        %1647 = vrot.lane.b32.xlu0 %v1605, 119
        %v1648 = vpop.permute.xlu0 %1647
        %1649 = vrot.lane.b32.xlu0 %v1606, 119
        %v1650 = vpop.permute.xlu0 %1649
        %1651 = vrot.lane.b32.xlu0 %v1607, 119
        %v1652 = vpop.permute.xlu0 %1651
        %1653 = vrot.lane.b32.xlu0 %v1608, 119
        %v1654 = vpop.permute.xlu0 %1653
        %1655 = vrot.lane.b32.xlu0 %v1609, 119
        %v1656 = vpop.permute.xlu0 %1655
        %1657 = vrot.lane.b32.xlu0 %v1610, 119
        %v1658 = vpop.permute.xlu0 %1657
        %1659 = vrot.lane.b32.xlu0 %v1611, 119
        %v1660 = vpop.permute.xlu0 %1659
        %1661 = vrot.lane.b32.xlu0 %v1612, 119
        %v1662 = vpop.permute.xlu0 %1661
        %1663 = vrot.lane.b32.xlu0 %v1613, 119
        %v1664 = vpop.permute.xlu0 %1663
        %1665 = vrot.lane.b32.xlu0 %v1614, 119
        %v1666 = vpop.permute.xlu0 %1665
        %1667 = vrot.lane.b32.xlu0 %v1615, 119
        %v1668 = vpop.permute.xlu0 %1667
        %1669 = vrot.lane.b32.xlu0 %v1616, 119
        %v1670 = vpop.permute.xlu0 %1669
        %vm1671 = vcmask 973824
        %v1672 = vsel %vm1671, %v1636, %v1638
        %v1673 = vsel %vm1671, %v1638, %v1640
        %v1674 = vsel %vm1671, %v1640, %v1642
        %v1675 = vsel %vm1671, %v1642, %v1644
        %v1676 = vsel %vm1671, %v1644, %v1646
        %v1677 = vsel %vm1671, %v1648, %v1650
        %v1678 = vsel %vm1671, %v1650, %v1652
        %v1679 = vsel %vm1671, %v1652, %v1654
        %v1680 = vsel %vm1671, %v1654, %v1656
        %v1681 = vsel %vm1671, %v1656, %v1658
        %v1682 = vsel %vm1671, %v1660, %v1662
        %v1683 = vsel %vm1671, %v1662, %v1664
        %v1684 = vsel %vm1671, %v1664, %v1666
        %v1685 = vsel %vm1671, %v1666, %v1668
        %v1686 = vsel %vm1671, %v1668, %v1670
        %1702 = vst [vmem:[#allocation3 + $0x438] sm:$0xff] %v1672
        %1703 = vst [vmem:[#allocation3 + $0x440] sm:$0xff] %v1673
        %1704 = vst [vmem:[#allocation3 + $0x448] sm:$0xff] %v1674
        %1705 = vst [vmem:[#allocation3 + $0x450] sm:$0xff] %v1675
        %1706 = vst [vmem:[#allocation3 + $0x458] sm:$0xff] %v1676
        %1707 = vst [vmem:[#allocation3 + $0x460] sm:$0xff] %v1677
        %1708 = vst [vmem:[#allocation3 + $0x468] sm:$0xff] %v1678
        %1709 = vst [vmem:[#allocation3 + $0x470] sm:$0xff] %v1679
        %1710 = vst [vmem:[#allocation3 + $0x478] sm:$0xff] %v1680
        %1711 = vst [vmem:[#allocation3 + $0x480] sm:$0xff] %v1681
        %1712 = vst [vmem:[#allocation3 + $0x488] sm:$0xff] %v1682
        %1713 = vst [vmem:[#allocation3 + $0x490] sm:$0xff] %v1683
        %1714 = vst [vmem:[#allocation3 + $0x498] sm:$0xff] %v1684
        %1715 = vst [vmem:[#allocation3 + $0x4a0] sm:$0xff] %v1685
        %1716 = vst [vmem:[#allocation3 + $0x4a8] sm:$0xff] %v1686
        %v1717 = vld [vmem:[#allocation2] sm:$0xff]
        %v1718 = vld [vmem:[#allocation2 + $0x8] sm:$0xff]
        %v1719 = vld [vmem:[#allocation2 + $0x10] sm:$0xff]
        %v1720 = vld [vmem:[#allocation2 + $0x18] sm:$0xff]
        %v1721 = vld [vmem:[#allocation2 + $0x20] sm:$0xff]
        %v1722 = vld [vmem:[#allocation2 + $0x28] sm:$0xff]
        %v1723 = vld [vmem:[#allocation2 + $0x30] sm:$0xff]
        %v1724 = vld [vmem:[#allocation2 + $0x38] sm:$0xff]
        %v1725 = vld [vmem:[#allocation2 + $0x40] sm:$0xff]
        %v1726 = vld [vmem:[#allocation2 + $0x48] sm:$0xff]
        %v1727 = vld [vmem:[#allocation2 + $0x50] sm:$0xff]
        %v1728 = vld [vmem:[#allocation2 + $0x58] sm:$0xff]
        %v1729 = vld [vmem:[#allocation2 + $0x60] sm:$0xff]
        %v1730 = vld [vmem:[#allocation2 + $0x68] sm:$0xff]
        %v1731 = vld [vmem:[#allocation2 + $0x70] sm:$0xff]
        %v1732 = vld [vmem:[#allocation2 + $0x78] sm:$0xff]
        %v1733 = vld [vmem:[#allocation2 + $0x80] sm:$0xff]
        %v1734 = vld [vmem:[#allocation2 + $0x88] sm:$0xff]
        %1753 = vrot.lane.b32.xlu0 %v1717, 118
        %v1754 = vpop.permute.xlu0 %1753
        %1755 = vrot.lane.b32.xlu0 %v1718, 118
        %v1756 = vpop.permute.xlu0 %1755
        %1757 = vrot.lane.b32.xlu0 %v1719, 118
        %v1758 = vpop.permute.xlu0 %1757
        %1759 = vrot.lane.b32.xlu0 %v1720, 118
        %v1760 = vpop.permute.xlu0 %1759
        %1761 = vrot.lane.b32.xlu0 %v1721, 118
        %v1762 = vpop.permute.xlu0 %1761
        %1763 = vrot.lane.b32.xlu0 %v1722, 118
        %v1764 = vpop.permute.xlu0 %1763
        %1765 = vrot.lane.b32.xlu0 %v1723, 118
        %v1766 = vpop.permute.xlu0 %1765
        %1767 = vrot.lane.b32.xlu0 %v1724, 118
        %v1768 = vpop.permute.xlu0 %1767
        %1769 = vrot.lane.b32.xlu0 %v1725, 118
        %v1770 = vpop.permute.xlu0 %1769
        %1771 = vrot.lane.b32.xlu0 %v1726, 118
        %v1772 = vpop.permute.xlu0 %1771
        %1773 = vrot.lane.b32.xlu0 %v1727, 118
        %v1774 = vpop.permute.xlu0 %1773
        %1775 = vrot.lane.b32.xlu0 %v1728, 118
        %v1776 = vpop.permute.xlu0 %1775
        %1777 = vrot.lane.b32.xlu0 %v1729, 118
        %v1778 = vpop.permute.xlu0 %1777
        %1779 = vrot.lane.b32.xlu0 %v1730, 118
        %v1780 = vpop.permute.xlu0 %1779
        %1781 = vrot.lane.b32.xlu0 %v1731, 118
        %v1782 = vpop.permute.xlu0 %1781
        %1783 = vrot.lane.b32.xlu0 %v1732, 118
        %v1784 = vpop.permute.xlu0 %1783
        %1785 = vrot.lane.b32.xlu0 %v1733, 118
        %v1786 = vpop.permute.xlu0 %1785
        %1787 = vrot.lane.b32.xlu0 %v1734, 118
        %v1788 = vpop.permute.xlu0 %1787
        %vm1789 = vcmask 965632
        %v1790 = vsel %vm1789, %v1754, %v1756
        %v1791 = vsel %vm1789, %v1756, %v1758
        %v1792 = vsel %vm1789, %v1758, %v1760
        %v1793 = vsel %vm1789, %v1760, %v1762
        %v1794 = vsel %vm1789, %v1762, %v1764
        %v1795 = vsel %vm1789, %v1766, %v1768
        %v1796 = vsel %vm1789, %v1768, %v1770
        %v1797 = vsel %vm1789, %v1770, %v1772
        %v1798 = vsel %vm1789, %v1772, %v1774
        %v1799 = vsel %vm1789, %v1774, %v1776
        %v1800 = vsel %vm1789, %v1778, %v1780
        %v1801 = vsel %vm1789, %v1780, %v1782
        %v1802 = vsel %vm1789, %v1782, %v1784
        %v1803 = vsel %vm1789, %v1784, %v1786
        %v1804 = vsel %vm1789, %v1786, %v1788
        %1820 = vst [vmem:[#allocation3 + $0x4b0] sm:$0xff] %v1790
        %1821 = vst [vmem:[#allocation3 + $0x4b8] sm:$0xff] %v1791
        %1822 = vst [vmem:[#allocation3 + $0x4c0] sm:$0xff] %v1792
        %1823 = vst [vmem:[#allocation3 + $0x4c8] sm:$0xff] %v1793
        %1824 = vst [vmem:[#allocation3 + $0x4d0] sm:$0xff] %v1794
        %1825 = vst [vmem:[#allocation3 + $0x4d8] sm:$0xff] %v1795
        %1826 = vst [vmem:[#allocation3 + $0x4e0] sm:$0xff] %v1796
        %1827 = vst [vmem:[#allocation3 + $0x4e8] sm:$0xff] %v1797
        %1828 = vst [vmem:[#allocation3 + $0x4f0] sm:$0xff] %v1798
        %1829 = vst [vmem:[#allocation3 + $0x4f8] sm:$0xff] %v1799
        %1830 = vst [vmem:[#allocation3 + $0x500] sm:$0xff] %v1800
        %1831 = vst [vmem:[#allocation3 + $0x508] sm:$0xff] %v1801
        %1832 = vst [vmem:[#allocation3 + $0x510] sm:$0xff] %v1802
        %1833 = vst [vmem:[#allocation3 + $0x518] sm:$0xff] %v1803
        %1834 = vst [vmem:[#allocation3 + $0x520] sm:$0xff] %v1804
        %v1835 = vld [vmem:[#allocation2] sm:$0xff]
        %v1836 = vld [vmem:[#allocation2 + $0x8] sm:$0xff]
        %v1837 = vld [vmem:[#allocation2 + $0x10] sm:$0xff]
        %v1838 = vld [vmem:[#allocation2 + $0x18] sm:$0xff]
        %v1839 = vld [vmem:[#allocation2 + $0x20] sm:$0xff]
        %v1840 = vld [vmem:[#allocation2 + $0x28] sm:$0xff]
        %v1841 = vld [vmem:[#allocation2 + $0x30] sm:$0xff]
        %v1842 = vld [vmem:[#allocation2 + $0x38] sm:$0xff]
        %v1843 = vld [vmem:[#allocation2 + $0x40] sm:$0xff]
        %v1844 = vld [vmem:[#allocation2 + $0x48] sm:$0xff]
        %v1845 = vld [vmem:[#allocation2 + $0x50] sm:$0xff]
        %v1846 = vld [vmem:[#allocation2 + $0x58] sm:$0xff]
        %v1847 = vld [vmem:[#allocation2 + $0x60] sm:$0xff]
        %v1848 = vld [vmem:[#allocation2 + $0x68] sm:$0xff]
        %v1849 = vld [vmem:[#allocation2 + $0x70] sm:$0xff]
        %v1850 = vld [vmem:[#allocation2 + $0x78] sm:$0xff]
        %v1851 = vld [vmem:[#allocation2 + $0x80] sm:$0xff]
        %v1852 = vld [vmem:[#allocation2 + $0x88] sm:$0xff]
        %1871 = vrot.lane.b32.xlu0 %v1835, 117
        %v1872 = vpop.permute.xlu0 %1871
        %1873 = vrot.lane.b32.xlu0 %v1836, 117
        %v1874 = vpop.permute.xlu0 %1873
        %1875 = vrot.lane.b32.xlu0 %v1837, 117
        %v1876 = vpop.permute.xlu0 %1875
        %1877 = vrot.lane.b32.xlu0 %v1838, 117
        %v1878 = vpop.permute.xlu0 %1877
        %1879 = vrot.lane.b32.xlu0 %v1839, 117
        %v1880 = vpop.permute.xlu0 %1879
        %1881 = vrot.lane.b32.xlu0 %v1840, 117
        %v1882 = vpop.permute.xlu0 %1881
        %1883 = vrot.lane.b32.xlu0 %v1841, 117
        %v1884 = vpop.permute.xlu0 %1883
        %1885 = vrot.lane.b32.xlu0 %v1842, 117
        %v1886 = vpop.permute.xlu0 %1885
        %1887 = vrot.lane.b32.xlu0 %v1843, 117
        %v1888 = vpop.permute.xlu0 %1887
        %1889 = vrot.lane.b32.xlu0 %v1844, 117
        %v1890 = vpop.permute.xlu0 %1889
        %1891 = vrot.lane.b32.xlu0 %v1845, 117
        %v1892 = vpop.permute.xlu0 %1891
        %1893 = vrot.lane.b32.xlu0 %v1846, 117
        %v1894 = vpop.permute.xlu0 %1893
        %1895 = vrot.lane.b32.xlu0 %v1847, 117
        %v1896 = vpop.permute.xlu0 %1895
        %1897 = vrot.lane.b32.xlu0 %v1848, 117
        %v1898 = vpop.permute.xlu0 %1897
        %1899 = vrot.lane.b32.xlu0 %v1849, 117
        %v1900 = vpop.permute.xlu0 %1899
        %1901 = vrot.lane.b32.xlu0 %v1850, 117
        %v1902 = vpop.permute.xlu0 %1901
        %1903 = vrot.lane.b32.xlu0 %v1851, 117
        %v1904 = vpop.permute.xlu0 %1903
        %1905 = vrot.lane.b32.xlu0 %v1852, 117
        %v1906 = vpop.permute.xlu0 %1905
        %vm1907 = vcmask 957440
        %v1908 = vsel %vm1907, %v1872, %v1874
        %v1909 = vsel %vm1907, %v1874, %v1876
        %v1910 = vsel %vm1907, %v1876, %v1878
        %v1911 = vsel %vm1907, %v1878, %v1880
        %v1912 = vsel %vm1907, %v1880, %v1882
        %v1913 = vsel %vm1907, %v1884, %v1886
        %v1914 = vsel %vm1907, %v1886, %v1888
        %v1915 = vsel %vm1907, %v1888, %v1890
        %v1916 = vsel %vm1907, %v1890, %v1892
        %v1917 = vsel %vm1907, %v1892, %v1894
        %v1918 = vsel %vm1907, %v1896, %v1898
        %v1919 = vsel %vm1907, %v1898, %v1900
        %v1920 = vsel %vm1907, %v1900, %v1902
        %v1921 = vsel %vm1907, %v1902, %v1904
        %v1922 = vsel %vm1907, %v1904, %v1906
        %1938 = vst [vmem:[#allocation3 + $0x528] sm:$0xff] %v1908
        %1939 = vst [vmem:[#allocation3 + $0x530] sm:$0xff] %v1909
        %1940 = vst [vmem:[#allocation3 + $0x538] sm:$0xff] %v1910
        %1941 = vst [vmem:[#allocation3 + $0x540] sm:$0xff] %v1911
        %1942 = vst [vmem:[#allocation3 + $0x548] sm:$0xff] %v1912
        %1943 = vst [vmem:[#allocation3 + $0x550] sm:$0xff] %v1913
        %1944 = vst [vmem:[#allocation3 + $0x558] sm:$0xff] %v1914
        %1945 = vst [vmem:[#allocation3 + $0x560] sm:$0xff] %v1915
        %1946 = vst [vmem:[#allocation3 + $0x568] sm:$0xff] %v1916
        %1947 = vst [vmem:[#allocation3 + $0x570] sm:$0xff] %v1917
        %1948 = vst [vmem:[#allocation3 + $0x578] sm:$0xff] %v1918
        %1949 = vst [vmem:[#allocation3 + $0x580] sm:$0xff] %v1919
        %1950 = vst [vmem:[#allocation3 + $0x588] sm:$0xff] %v1920
        %1951 = vst [vmem:[#allocation3 + $0x590] sm:$0xff] %v1921
        %1952 = vst [vmem:[#allocation3 + $0x598] sm:$0xff] %v1922
        %v1953 = vld [vmem:[%s3] sm:$0xff]
        %v1954 = vld [vmem:[%s3 + $0x8] sm:$0xff]
        %v1955 = vld [vmem:[%s3 + $0x10] sm:$0xff]
        %v1956 = vld [vmem:[%s3 + $0x18] sm:$0xff]
        %v1957 = vld [vmem:[%s3 + $0x20] sm:$0xff]
        %v1958 = vld [vmem:[%s3 + $0x28] sm:$0xff]
        %v1959 = vld [vmem:[%s3 + $0x30] sm:$0xf]
        %v1960 = vld [vmem:[%s3 + $0x38] sm:$0xf]
        %v1961 = vld [vmem:[%s3 + $0x40] sm:$0xf]
        %v1962 = vld [vmem:[#allocation3] sm:$0xff]
        %v1963 = vld [vmem:[#allocation3 + $0x8] sm:$0xff]
        %v1964 = vld [vmem:[#allocation3 + $0x10] sm:$0xff]
        %v1965 = vld [vmem:[#allocation3 + $0x18] sm:$0xff]
        %v1966 = vld [vmem:[#allocation3 + $0x20] sm:$0xff]
        %v1967 = vld [vmem:[#allocation3 + $0x28] sm:$0xff]
        %v1968 = vld [vmem:[#allocation3 + $0x30] sm:$0xff]
        %v1969 = vld [vmem:[#allocation3 + $0x38] sm:$0xff]
        %v1970 = vld [vmem:[#allocation3 + $0x40] sm:$0xff]
        %v1971 = vld [vmem:[#allocation3 + $0x48] sm:$0xff]
        %v1972 = vld [vmem:[#allocation3 + $0x50] sm:$0xff]
        %v1973 = vld [vmem:[#allocation3 + $0x58] sm:$0xff]
        %v1974 = vld [vmem:[#allocation3 + $0x60] sm:$0xff]
        %v1975 = vld [vmem:[#allocation3 + $0x68] sm:$0xff]
        %v1976 = vld [vmem:[#allocation3 + $0x70] sm:$0xff]
        %v1977 = vld [vmem:[#allocation3 + $0x78] sm:$0xff]
        %v1978 = vld [vmem:[#allocation3 + $0x80] sm:$0xff]
        %v1979 = vld [vmem:[#allocation3 + $0x88] sm:$0xff]
        %v1980 = vld [vmem:[#allocation3 + $0x90] sm:$0xff]
        %v1981 = vld [vmem:[#allocation3 + $0x98] sm:$0xff]
        %v1982 = vld [vmem:[#allocation3 + $0xa0] sm:$0xff]
        %v1983 = vld [vmem:[#allocation3 + $0xa8] sm:$0xff]
        %v1984 = vld [vmem:[#allocation3 + $0xb0] sm:$0xff]
        %v1985 = vld [vmem:[#allocation3 + $0xb8] sm:$0xff]
        %v1986 = vld [vmem:[#allocation3 + $0xc0] sm:$0xff]
        %v1987 = vld [vmem:[#allocation3 + $0xc8] sm:$0xff]
        %v1988 = vld [vmem:[#allocation3 + $0xd0] sm:$0xff]
        %v1989 = vld [vmem:[#allocation3 + $0xd8] sm:$0xff]
        %v1990 = vld [vmem:[#allocation3 + $0xe0] sm:$0xff]
        %v1991 = vld [vmem:[#allocation3 + $0xe8] sm:$0xff]
        %v1992 = vld [vmem:[#allocation3 + $0xf0] sm:$0xff]
        %v1993 = vld [vmem:[#allocation3 + $0xf8] sm:$0xff]
        %v1994 = vld [vmem:[#allocation3 + $0x100] sm:$0xff]
        %v1995 = vld [vmem:[#allocation3 + $0x108] sm:$0xff]
        %v1996 = vld [vmem:[#allocation3 + $0x110] sm:$0xff]
        %v1997 = vld [vmem:[#allocation3 + $0x118] sm:$0xff]
        %v1998 = vld [vmem:[#allocation3 + $0x120] sm:$0xff]
        %v1999 = vld [vmem:[#allocation3 + $0x128] sm:$0xff]
        %v2000 = vld [vmem:[#allocation3 + $0x130] sm:$0xff]
        %v2001 = vld [vmem:[#allocation3 + $0x138] sm:$0xff]
        %v2002 = vld [vmem:[#allocation3 + $0x140] sm:$0xff]
        %v2003 = vld [vmem:[#allocation3 + $0x148] sm:$0xff]
        %v2004 = vld [vmem:[#allocation3 + $0x150] sm:$0xff]
        %v2005 = vld [vmem:[#allocation3 + $0x158] sm:$0xff]
        %v2006 = vld [vmem:[#allocation3 + $0x160] sm:$0xff]
        %v2007 = vld [vmem:[#allocation3 + $0x168] sm:$0xff]
        %v2008 = vld [vmem:[#allocation3 + $0x170] sm:$0xff]
        %v2009 = vld [vmem:[#allocation3 + $0x178] sm:$0xff]
        %v2010 = vld [vmem:[#allocation3 + $0x180] sm:$0xff]
        %v2011 = vld [vmem:[#allocation3 + $0x188] sm:$0xff]
        %v2012 = vld [vmem:[#allocation3 + $0x190] sm:$0xff]
        %v2013 = vld [vmem:[#allocation3 + $0x198] sm:$0xff]
        %v2014 = vld [vmem:[#allocation3 + $0x1a0] sm:$0xff]
        %v2015 = vld [vmem:[#allocation3 + $0x1a8] sm:$0xff]
        %v2016 = vld [vmem:[#allocation3 + $0x1b0] sm:$0xff]
        %v2017 = vld [vmem:[#allocation3 + $0x1b8] sm:$0xff]
        %v2018 = vld [vmem:[#allocation3 + $0x1c0] sm:$0xff]
        %v2019 = vld [vmem:[#allocation3 + $0x1c8] sm:$0xff]
        %v2020 = vld [vmem:[#allocation3 + $0x1d0] sm:$0xff]
        %v2021 = vld [vmem:[#allocation3 + $0x1d8] sm:$0xff]
        %v2022 = vld [vmem:[#allocation3 + $0x1e0] sm:$0xff]
        %v2023 = vld [vmem:[#allocation3 + $0x1e8] sm:$0xff]
        %v2024 = vld [vmem:[#allocation3 + $0x1f0] sm:$0xff]
        %v2025 = vld [vmem:[#allocation3 + $0x1f8] sm:$0xff]
        %v2026 = vld [vmem:[#allocation3 + $0x200] sm:$0xff]
        %v2027 = vld [vmem:[#allocation3 + $0x208] sm:$0xff]
        %v2028 = vld [vmem:[#allocation3 + $0x210] sm:$0xff]
        %v2029 = vld [vmem:[#allocation3 + $0x218] sm:$0xff]
        %v2030 = vld [vmem:[#allocation3 + $0x220] sm:$0xff]
        %v2031 = vld [vmem:[#allocation3 + $0x228] sm:$0xff]
        %v2032 = vld [vmem:[#allocation3 + $0x230] sm:$0xff]
        %v2033 = vld [vmem:[#allocation3 + $0x238] sm:$0xff]
        %v2034 = vld [vmem:[#allocation3 + $0x240] sm:$0xff]
        %v2035 = vld [vmem:[#allocation3 + $0x248] sm:$0xff]
        %v2036 = vld [vmem:[#allocation3 + $0x250] sm:$0xff]
        %v2037 = vld [vmem:[#allocation3 + $0x258] sm:$0xff]
        %v2038 = vld [vmem:[#allocation3 + $0x260] sm:$0xff]
        %v2039 = vld [vmem:[#allocation3 + $0x268] sm:$0xff]
        %v2040 = vld [vmem:[#allocation3 + $0x270] sm:$0xff]
        %v2041 = vld [vmem:[#allocation3 + $0x278] sm:$0xff]
        %v2042 = vld [vmem:[#allocation3 + $0x280] sm:$0xff]
        %v2043 = vld [vmem:[#allocation3 + $0x288] sm:$0xff]
        %v2044 = vld [vmem:[#allocation3 + $0x290] sm:$0xff]
        %v2045 = vld [vmem:[#allocation3 + $0x298] sm:$0xff]
        %v2046 = vld [vmem:[#allocation3 + $0x2a0] sm:$0xff]
        %v2047 = vld [vmem:[#allocation3 + $0x2a8] sm:$0xff]
        %v2048 = vld [vmem:[#allocation3 + $0x2b0] sm:$0xff]
        %v2049 = vld [vmem:[#allocation3 + $0x2b8] sm:$0xff]
        %v2050 = vld [vmem:[#allocation3 + $0x2c0] sm:$0xff]
        %v2051 = vld [vmem:[#allocation3 + $0x2c8] sm:$0xff]
        %v2052 = vld [vmem:[#allocation3 + $0x2d0] sm:$0xff]
        %v2053 = vld [vmem:[#allocation3 + $0x2d8] sm:$0xff]
        %v2054 = vld [vmem:[#allocation3 + $0x2e0] sm:$0xff]
        %v2055 = vld [vmem:[#allocation3 + $0x2e8] sm:$0xff]
        %v2056 = vld [vmem:[#allocation3 + $0x2f0] sm:$0xff]
        %v2057 = vld [vmem:[#allocation3 + $0x2f8] sm:$0xff]
        %v2058 = vld [vmem:[#allocation3 + $0x300] sm:$0xff]
        %v2059 = vld [vmem:[#allocation3 + $0x308] sm:$0xff]
        %v2060 = vld [vmem:[#allocation3 + $0x310] sm:$0xff]
        %v2061 = vld [vmem:[#allocation3 + $0x318] sm:$0xff]
        %v2062 = vld [vmem:[#allocation3 + $0x320] sm:$0xff]
        %v2063 = vld [vmem:[#allocation3 + $0x328] sm:$0xff]
        %v2064 = vld [vmem:[#allocation3 + $0x330] sm:$0xff]
        %v2065 = vld [vmem:[#allocation3 + $0x338] sm:$0xff]
        %v2066 = vld [vmem:[#allocation3 + $0x340] sm:$0xff]
        %v2067 = vld [vmem:[#allocation3 + $0x348] sm:$0xff]
        %v2068 = vld [vmem:[#allocation3 + $0x350] sm:$0xff]
        %v2069 = vld [vmem:[#allocation3 + $0x358] sm:$0xff]
        %v2070 = vld [vmem:[#allocation3 + $0x360] sm:$0xff]
        %v2071 = vld [vmem:[#allocation3 + $0x368] sm:$0xff]
        %v2072 = vld [vmem:[#allocation3 + $0x370] sm:$0xff]
        %v2073 = vld [vmem:[#allocation3 + $0x378] sm:$0xff]
        %v2074 = vld [vmem:[#allocation3 + $0x380] sm:$0xff]
        %v2075 = vld [vmem:[#allocation3 + $0x388] sm:$0xff]
        %v2076 = vld [vmem:[#allocation3 + $0x390] sm:$0xff]
        %v2077 = vld [vmem:[#allocation3 + $0x398] sm:$0xff]
        %v2078 = vld [vmem:[#allocation3 + $0x3a0] sm:$0xff]
        %v2079 = vld [vmem:[#allocation3 + $0x3a8] sm:$0xff]
        %v2080 = vld [vmem:[#allocation3 + $0x3b0] sm:$0xff]
        %v2081 = vld [vmem:[#allocation3 + $0x3b8] sm:$0xff]
        %v2082 = vld [vmem:[#allocation3 + $0x3c0] sm:$0xff]
        %v2083 = vld [vmem:[#allocation3 + $0x3c8] sm:$0xff]
        %v2084 = vld [vmem:[#allocation3 + $0x3d0] sm:$0xff]
        %v2085 = vld [vmem:[#allocation3 + $0x3d8] sm:$0xff]
        %v2086 = vld [vmem:[#allocation3 + $0x3e0] sm:$0xff]
        %v2087 = vld [vmem:[#allocation3 + $0x3e8] sm:$0xff]
        %v2088 = vld [vmem:[#allocation3 + $0x3f0] sm:$0xff]
        %v2089 = vld [vmem:[#allocation3 + $0x3f8] sm:$0xff]
        %v2090 = vld [vmem:[#allocation3 + $0x400] sm:$0xff]
        %v2091 = vld [vmem:[#allocation3 + $0x408] sm:$0xff]
        %v2092 = vld [vmem:[#allocation3 + $0x410] sm:$0xff]
        %v2093 = vld [vmem:[#allocation3 + $0x418] sm:$0xff]
        %v2094 = vld [vmem:[#allocation3 + $0x420] sm:$0xff]
        %v2095 = vld [vmem:[#allocation3 + $0x428] sm:$0xff]
        %v2096 = vld [vmem:[#allocation3 + $0x430] sm:$0xff]
        %v2097 = vld [vmem:[#allocation3 + $0x438] sm:$0xff]
        %v2098 = vld [vmem:[#allocation3 + $0x440] sm:$0xff]
        %v2099 = vld [vmem:[#allocation3 + $0x448] sm:$0xff]
        %v2100 = vld [vmem:[#allocation3 + $0x450] sm:$0xff]
        %v2101 = vld [vmem:[#allocation3 + $0x458] sm:$0xff]
        %v2102 = vld [vmem:[#allocation3 + $0x460] sm:$0xff]
        %v2103 = vld [vmem:[#allocation3 + $0x468] sm:$0xff]
        %v2104 = vld [vmem:[#allocation3 + $0x470] sm:$0xff]
        %v2105 = vld [vmem:[#allocation3 + $0x478] sm:$0xff]
        %v2106 = vld [vmem:[#allocation3 + $0x480] sm:$0xff]
        %v2107 = vld [vmem:[#allocation3 + $0x488] sm:$0xff]
        %v2108 = vld [vmem:[#allocation3 + $0x490] sm:$0xff]
        %v2109 = vld [vmem:[#allocation3 + $0x498] sm:$0xff]
        %v2110 = vld [vmem:[#allocation3 + $0x4a0] sm:$0xff]
        %v2111 = vld [vmem:[#allocation3 + $0x4a8] sm:$0xff]
        %v2112 = vld [vmem:[#allocation3 + $0x4b0] sm:$0xff]
        %v2113 = vld [vmem:[#allocation3 + $0x4b8] sm:$0xff]
        %v2114 = vld [vmem:[#allocation3 + $0x4c0] sm:$0xff]
        %v2115 = vld [vmem:[#allocation3 + $0x4c8] sm:$0xff]
        %v2116 = vld [vmem:[#allocation3 + $0x4d0] sm:$0xff]
        %v2117 = vld [vmem:[#allocation3 + $0x4d8] sm:$0xff]
        %v2118 = vld [vmem:[#allocation3 + $0x4e0] sm:$0xff]
        %v2119 = vld [vmem:[#allocation3 + $0x4e8] sm:$0xff]
        %v2120 = vld [vmem:[#allocation3 + $0x4f0] sm:$0xff]
        %v2121 = vld [vmem:[#allocation3 + $0x4f8] sm:$0xff]
        %v2122 = vld [vmem:[#allocation3 + $0x500] sm:$0xff]
        %v2123 = vld [vmem:[#allocation3 + $0x508] sm:$0xff]
        %v2124 = vld [vmem:[#allocation3 + $0x510] sm:$0xff]
        %v2125 = vld [vmem:[#allocation3 + $0x518] sm:$0xff]
        %v2126 = vld [vmem:[#allocation3 + $0x520] sm:$0xff]
        %v2127 = vld [vmem:[#allocation3 + $0x528] sm:$0xff]
        %v2128 = vld [vmem:[#allocation3 + $0x530] sm:$0xff]
        %v2129 = vld [vmem:[#allocation3 + $0x538] sm:$0xff]
        %v2130 = vld [vmem:[#allocation3 + $0x540] sm:$0xff]
        %v2131 = vld [vmem:[#allocation3 + $0x548] sm:$0xff]
        %v2132 = vld [vmem:[#allocation3 + $0x550] sm:$0xff]
        %v2133 = vld [vmem:[#allocation3 + $0x558] sm:$0xff]
        %v2134 = vld [vmem:[#allocation3 + $0x560] sm:$0xff]
        %v2135 = vld [vmem:[#allocation3 + $0x568] sm:$0xff]
        %v2136 = vld [vmem:[#allocation3 + $0x570] sm:$0xff]
        %v2137 = vld [vmem:[#allocation3 + $0x578] sm:$0xff]
        %v2138 = vld [vmem:[#allocation3 + $0x580] sm:$0xff]
        %v2139 = vld [vmem:[#allocation3 + $0x588] sm:$0xff]
        %v2140 = vld [vmem:[#allocation3 + $0x590] sm:$0xff]
        %v2141 = vld [vmem:[#allocation3 + $0x598] sm:$0xff]
        %v2142 = vld [vmem:[%s4] sm:$0xff]
        %v2143 = vld [vmem:[%s4 + $0x8] sm:$0xff]
        %v2144 = vld [vmem:[%s4 + $0x10] sm:$0xf]
        %2146 = vset.pattern.permute.xlu0 0
        %2147 = vperm.xlu0 %2146, %v2142
        %v2148 = vpop.permute.xlu0 %2147
        %2151 = vset.pattern.permute.xlu0 0
        %2152 = vperm.xlu0 %2151, %v2143
        %v2153 = vpop.permute.xlu0 %2152
        %2156 = vset.pattern.permute.xlu0 0
        %2157 = vperm.xlu0 %2156, %v2144
        %v2158 = vpop.permute.xlu0 %2157
        %vm2160 = vcmask 261120
        %v2162 = vsel %vm2160, %v1955, 0
        %v2165 = vsel %vm2160, %v1958, 0
        %v2168 = vsel %vm2160, %v1961, 0
        %2170 = vmatpush.msra.mxu0 %v2037
        %2171 = vmatpush.msra.mxu0 %v2032
        %2172 = vmatpush.msra.mxu0 %v2027
        %2173 = vmatpush.msra.mxu0 %v2022
        %2174 = vmatpush.msra.mxu0 %v2017
        %2175 = vmatpush.msra.mxu0 %v2012
        %2176 = vmatpush.msra.mxu0 %v2007
        %2177 = vmatpush.msra.mxu0 %v2002
        %2178 = vmatpush.msra.mxu0 %v1997
        %2179 = vmatpush.msra.mxu0 %v1992
        %2180 = vmatpush.msra.mxu0 %v1987
        %2181 = vmatpush.msra.mxu0 %v1982
        %2182 = vmatpush.msra.mxu0 %v1977
        %2183 = vmatpush.msra.mxu0 %v1972
        %2184 = vmatpush.msra.mxu0 %v1967
        %2185 = vmatpush.msra.mxu0 %v1962
        %2186 = vmatmul.f32.gmra.mxu0 %v1953
        %v2187 = vpop.f32.mrf.mxu0
        %v2188 = vadd.f32 %v2148, %v2187
        %2189 = vmatmul.f32.gmra.mxu0 %v1956
        %v2190 = vpop.f32.mrf.mxu0
        %v2191 = vadd.f32 %v2153, %v2190
        %2192 = vmatmul.f32.gmra.mxu0 %v1959
        %v2193 = vpop.f32.mrf.mxu0
        %v2194 = vadd.f32 %v2158, %v2193
        %2195 = vdwg.mxu0
        %2196 = vmatpush.msra.mxu0 %v2117
        %2197 = vmatpush.msra.mxu0 %v2112
        %2198 = vmatpush.msra.mxu0 %v2107
        %2199 = vmatpush.msra.mxu0 %v2102
        %2200 = vmatpush.msra.mxu0 %v2097
        %2201 = vmatpush.msra.mxu0 %v2092
        %2202 = vmatpush.msra.mxu0 %v2087
        %2203 = vmatpush.msra.mxu0 %v2082
        %2204 = vmatpush.msra.mxu0 %v2077
        %2205 = vmatpush.msra.mxu0 %v2072
        %2206 = vmatpush.msra.mxu0 %v2067
        %2207 = vmatpush.msra.mxu0 %v2062
        %2208 = vmatpush.msra.mxu0 %v2057
        %2209 = vmatpush.msra.mxu0 %v2052
        %2210 = vmatpush.msra.mxu0 %v2047
        %2211 = vmatpush.msra.mxu0 %v2042
        %2212 = vmatmul.f32.gmra.mxu0 %v1954
        %v2213 = vpop.f32.mrf.mxu0
        %v2214 = vadd.f32 %v2188, %v2213
        %2215 = vmatmul.f32.gmra.mxu0 %v1957
        %v2216 = vpop.f32.mrf.mxu0
        %v2217 = vadd.f32 %v2191, %v2216
        %2218 = vmatmul.f32.gmra.mxu0 %v1960
        %v2219 = vpop.f32.mrf.mxu0
        %v2220 = vadd.f32 %v2194, %v2219
        %2221 = vdwg.mxu0
        %2222 = vmatpush.msra.mxu0 0.0
        %2223 = vmatpush.msra.mxu0 0.0
        %2224 = vmatpush.msra.mxu0 0.0
        %2225 = vmatpush.msra.mxu0 0.0
        %2226 = vmatpush.msra.mxu0 0.0
        %2227 = vmatpush.msra.mxu0 0.0
        %2228 = vmatpush.msra.mxu0 0.0
        %2229 = vmatpush.msra.mxu0 0.0
        %2230 = vmatpush.msra.mxu0 0.0
        %2231 = vmatpush.msra.mxu0 0.0
        %2232 = vmatpush.msra.mxu0 0.0
        %2233 = vmatpush.msra.mxu0 0.0
        %2234 = vmatpush.msra.mxu0 %v2137
        %2235 = vmatpush.msra.mxu0 %v2132
        %2236 = vmatpush.msra.mxu0 %v2127
        %2237 = vmatpush.msra.mxu0 %v2122
        %2238 = vmatmul.f32.gmra.mxu0 %v2162
        %v2239 = vpop.f32.mrf.mxu0
        %v2240 = vadd.f32 %v2214, %v2239
        %2241 = vmatmul.f32.gmra.mxu0 %v2165
        %v2242 = vpop.f32.mrf.mxu0
        %v2243 = vadd.f32 %v2217, %v2242
        %2244 = vmatmul.f32.gmra.mxu0 %v2168
        %v2245 = vpop.f32.mrf.mxu0
        %v2246 = vadd.f32 %v2220, %v2245
        %2247 = vdwg.mxu0
        %2248 = vmatpush.msra.mxu0 %v2038
        %2249 = vmatpush.msra.mxu0 %v2033
        %2250 = vmatpush.msra.mxu0 %v2028
        %2251 = vmatpush.msra.mxu0 %v2023
        %2252 = vmatpush.msra.mxu0 %v2018
        %2253 = vmatpush.msra.mxu0 %v2013
        %2254 = vmatpush.msra.mxu0 %v2008
        %2255 = vmatpush.msra.mxu0 %v2003
        %2256 = vmatpush.msra.mxu0 %v1998
        %2257 = vmatpush.msra.mxu0 %v1993
        %2258 = vmatpush.msra.mxu0 %v1988
        %2259 = vmatpush.msra.mxu0 %v1983
        %2260 = vmatpush.msra.mxu0 %v1978
        %2261 = vmatpush.msra.mxu0 %v1973
        %2262 = vmatpush.msra.mxu0 %v1968
        %2263 = vmatpush.msra.mxu0 %v1963
        %2264 = vmatmul.f32.gmra.mxu0 %v1953
        %v2265 = vpop.f32.mrf.mxu0
        %v2266 = vadd.f32 %v2148, %v2265
        %2267 = vmatmul.f32.gmra.mxu0 %v1956
        %v2268 = vpop.f32.mrf.mxu0
        %v2269 = vadd.f32 %v2153, %v2268
        %2270 = vmatmul.f32.gmra.mxu0 %v1959
        %v2271 = vpop.f32.mrf.mxu0
        %v2272 = vadd.f32 %v2158, %v2271
        %2273 = vdwg.mxu0
        %2274 = vmatpush.msra.mxu0 %v2118
        %2275 = vmatpush.msra.mxu0 %v2113
        %2276 = vmatpush.msra.mxu0 %v2108
        %2277 = vmatpush.msra.mxu0 %v2103
        %2278 = vmatpush.msra.mxu0 %v2098
        %2279 = vmatpush.msra.mxu0 %v2093
        %2280 = vmatpush.msra.mxu0 %v2088
        %2281 = vmatpush.msra.mxu0 %v2083
        %2282 = vmatpush.msra.mxu0 %v2078
        %2283 = vmatpush.msra.mxu0 %v2073
        %2284 = vmatpush.msra.mxu0 %v2068
        %2285 = vmatpush.msra.mxu0 %v2063
        %2286 = vmatpush.msra.mxu0 %v2058
        %2287 = vmatpush.msra.mxu0 %v2053
        %2288 = vmatpush.msra.mxu0 %v2048
        %2289 = vmatpush.msra.mxu0 %v2043
        %2290 = vmatmul.f32.gmra.mxu0 %v1954
        %v2291 = vpop.f32.mrf.mxu0
        %v2292 = vadd.f32 %v2266, %v2291
        %2293 = vmatmul.f32.gmra.mxu0 %v1957
        %v2294 = vpop.f32.mrf.mxu0
        %v2295 = vadd.f32 %v2269, %v2294
        %2296 = vmatmul.f32.gmra.mxu0 %v1960
        %v2297 = vpop.f32.mrf.mxu0
        %v2298 = vadd.f32 %v2272, %v2297
        %2299 = vdwg.mxu0
        %2300 = vmatpush.msra.mxu0 0.0
        %2301 = vmatpush.msra.mxu0 0.0
        %2302 = vmatpush.msra.mxu0 0.0
        %2303 = vmatpush.msra.mxu0 0.0
        %2304 = vmatpush.msra.mxu0 0.0
        %2305 = vmatpush.msra.mxu0 0.0
        %2306 = vmatpush.msra.mxu0 0.0
        %2307 = vmatpush.msra.mxu0 0.0
        %2308 = vmatpush.msra.mxu0 0.0
        %2309 = vmatpush.msra.mxu0 0.0
        %2310 = vmatpush.msra.mxu0 0.0
        %2311 = vmatpush.msra.mxu0 0.0
        %2312 = vmatpush.msra.mxu0 %v2138
        %2313 = vmatpush.msra.mxu0 %v2133
        %2314 = vmatpush.msra.mxu0 %v2128
        %2315 = vmatpush.msra.mxu0 %v2123
        %2316 = vmatmul.f32.gmra.mxu0 %v2162
        %v2317 = vpop.f32.mrf.mxu0
        %v2318 = vadd.f32 %v2292, %v2317
        %2319 = vmatmul.f32.gmra.mxu0 %v2165
        %v2320 = vpop.f32.mrf.mxu0
        %v2321 = vadd.f32 %v2295, %v2320
        %2322 = vmatmul.f32.gmra.mxu0 %v2168
        %v2323 = vpop.f32.mrf.mxu0
        %v2324 = vadd.f32 %v2298, %v2323
        %2325 = vdwg.mxu0
        %2326 = vmatpush.msra.mxu0 %v2039
        %2327 = vmatpush.msra.mxu0 %v2034
        %2328 = vmatpush.msra.mxu0 %v2029
        %2329 = vmatpush.msra.mxu0 %v2024
        %2330 = vmatpush.msra.mxu0 %v2019
        %2331 = vmatpush.msra.mxu0 %v2014
        %2332 = vmatpush.msra.mxu0 %v2009
        %2333 = vmatpush.msra.mxu0 %v2004
        %2334 = vmatpush.msra.mxu0 %v1999
        %2335 = vmatpush.msra.mxu0 %v1994
        %2336 = vmatpush.msra.mxu0 %v1989
        %2337 = vmatpush.msra.mxu0 %v1984
        %2338 = vmatpush.msra.mxu0 %v1979
        %2339 = vmatpush.msra.mxu0 %v1974
        %2340 = vmatpush.msra.mxu0 %v1969
        %2341 = vmatpush.msra.mxu0 %v1964
        %2342 = vmatmul.f32.gmra.mxu0 %v1953
        %v2343 = vpop.f32.mrf.mxu0
        %v2344 = vadd.f32 %v2148, %v2343
        %2345 = vmatmul.f32.gmra.mxu0 %v1956
        %v2346 = vpop.f32.mrf.mxu0
        %v2347 = vadd.f32 %v2153, %v2346
        %2348 = vmatmul.f32.gmra.mxu0 %v1959
        %v2349 = vpop.f32.mrf.mxu0
        %v2350 = vadd.f32 %v2158, %v2349
        %2351 = vdwg.mxu0
        %2352 = vmatpush.msra.mxu0 %v2119
        %2353 = vmatpush.msra.mxu0 %v2114
        %2354 = vmatpush.msra.mxu0 %v2109
        %2355 = vmatpush.msra.mxu0 %v2104
        %2356 = vmatpush.msra.mxu0 %v2099
        %2357 = vmatpush.msra.mxu0 %v2094
        %2358 = vmatpush.msra.mxu0 %v2089
        %2359 = vmatpush.msra.mxu0 %v2084
        %2360 = vmatpush.msra.mxu0 %v2079
        %2361 = vmatpush.msra.mxu0 %v2074
        %2362 = vmatpush.msra.mxu0 %v2069
        %2363 = vmatpush.msra.mxu0 %v2064
        %2364 = vmatpush.msra.mxu0 %v2059
        %2365 = vmatpush.msra.mxu0 %v2054
        %2366 = vmatpush.msra.mxu0 %v2049
        %2367 = vmatpush.msra.mxu0 %v2044
        %2368 = vmatmul.f32.gmra.mxu0 %v1954
        %v2369 = vpop.f32.mrf.mxu0
        %v2370 = vadd.f32 %v2344, %v2369
        %2371 = vmatmul.f32.gmra.mxu0 %v1957
        %v2372 = vpop.f32.mrf.mxu0
        %v2373 = vadd.f32 %v2347, %v2372
        %2374 = vmatmul.f32.gmra.mxu0 %v1960
        %v2375 = vpop.f32.mrf.mxu0
        %v2376 = vadd.f32 %v2350, %v2375
        %2377 = vdwg.mxu0
        %2378 = vmatpush.msra.mxu0 0.0
        %2379 = vmatpush.msra.mxu0 0.0
        %2380 = vmatpush.msra.mxu0 0.0
        %2381 = vmatpush.msra.mxu0 0.0
        %2382 = vmatpush.msra.mxu0 0.0
        %2383 = vmatpush.msra.mxu0 0.0
        %2384 = vmatpush.msra.mxu0 0.0
        %2385 = vmatpush.msra.mxu0 0.0
        %2386 = vmatpush.msra.mxu0 0.0
        %2387 = vmatpush.msra.mxu0 0.0
        %2388 = vmatpush.msra.mxu0 0.0
        %2389 = vmatpush.msra.mxu0 0.0
        %2390 = vmatpush.msra.mxu0 %v2139
        %2391 = vmatpush.msra.mxu0 %v2134
        %2392 = vmatpush.msra.mxu0 %v2129
        %2393 = vmatpush.msra.mxu0 %v2124
        %2394 = vmatmul.f32.gmra.mxu0 %v2162
        %v2395 = vpop.f32.mrf.mxu0
        %v2396 = vadd.f32 %v2370, %v2395
        %2397 = vmatmul.f32.gmra.mxu0 %v2165
        %v2398 = vpop.f32.mrf.mxu0
        %v2399 = vadd.f32 %v2373, %v2398
        %2400 = vmatmul.f32.gmra.mxu0 %v2168
        %v2401 = vpop.f32.mrf.mxu0
        %v2402 = vadd.f32 %v2376, %v2401
        %2403 = vdwg.mxu0
        %2404 = vmatpush.msra.mxu0 %v2040
        %2405 = vmatpush.msra.mxu0 %v2035
        %2406 = vmatpush.msra.mxu0 %v2030
        %2407 = vmatpush.msra.mxu0 %v2025
        %2408 = vmatpush.msra.mxu0 %v2020
        %2409 = vmatpush.msra.mxu0 %v2015
        %2410 = vmatpush.msra.mxu0 %v2010
        %2411 = vmatpush.msra.mxu0 %v2005
        %2412 = vmatpush.msra.mxu0 %v2000
        %2413 = vmatpush.msra.mxu0 %v1995
        %2414 = vmatpush.msra.mxu0 %v1990
        %2415 = vmatpush.msra.mxu0 %v1985
        %2416 = vmatpush.msra.mxu0 %v1980
        %2417 = vmatpush.msra.mxu0 %v1975
        %2418 = vmatpush.msra.mxu0 %v1970
        %2419 = vmatpush.msra.mxu0 %v1965
        %2420 = vmatmul.f32.gmra.mxu0 %v1953
        %v2421 = vpop.f32.mrf.mxu0
        %v2422 = vadd.f32 %v2148, %v2421
        %2423 = vmatmul.f32.gmra.mxu0 %v1956
        %v2424 = vpop.f32.mrf.mxu0
        %v2425 = vadd.f32 %v2153, %v2424
        %2426 = vmatmul.f32.gmra.mxu0 %v1959
        %v2427 = vpop.f32.mrf.mxu0
        %v2428 = vadd.f32 %v2158, %v2427
        %2429 = vdwg.mxu0
        %2430 = vmatpush.msra.mxu0 %v2120
        %2431 = vmatpush.msra.mxu0 %v2115
        %2432 = vmatpush.msra.mxu0 %v2110
        %2433 = vmatpush.msra.mxu0 %v2105
        %2434 = vmatpush.msra.mxu0 %v2100
        %2435 = vmatpush.msra.mxu0 %v2095
        %2436 = vmatpush.msra.mxu0 %v2090
        %2437 = vmatpush.msra.mxu0 %v2085
        %2438 = vmatpush.msra.mxu0 %v2080
        %2439 = vmatpush.msra.mxu0 %v2075
        %2440 = vmatpush.msra.mxu0 %v2070
        %2441 = vmatpush.msra.mxu0 %v2065
        %2442 = vmatpush.msra.mxu0 %v2060
        %2443 = vmatpush.msra.mxu0 %v2055
        %2444 = vmatpush.msra.mxu0 %v2050
        %2445 = vmatpush.msra.mxu0 %v2045
        %2446 = vmatmul.f32.gmra.mxu0 %v1954
        %v2447 = vpop.f32.mrf.mxu0
        %v2448 = vadd.f32 %v2422, %v2447
        %2449 = vmatmul.f32.gmra.mxu0 %v1957
        %v2450 = vpop.f32.mrf.mxu0
        %v2451 = vadd.f32 %v2425, %v2450
        %2452 = vmatmul.f32.gmra.mxu0 %v1960
        %v2453 = vpop.f32.mrf.mxu0
        %v2454 = vadd.f32 %v2428, %v2453
        %2455 = vdwg.mxu0
        %2456 = vmatpush.msra.mxu0 0.0
        %2457 = vmatpush.msra.mxu0 0.0
        %2458 = vmatpush.msra.mxu0 0.0
        %2459 = vmatpush.msra.mxu0 0.0
        %2460 = vmatpush.msra.mxu0 0.0
        %2461 = vmatpush.msra.mxu0 0.0
        %2462 = vmatpush.msra.mxu0 0.0
        %2463 = vmatpush.msra.mxu0 0.0
        %2464 = vmatpush.msra.mxu0 0.0
        %2465 = vmatpush.msra.mxu0 0.0
        %2466 = vmatpush.msra.mxu0 0.0
        %2467 = vmatpush.msra.mxu0 0.0
        %2468 = vmatpush.msra.mxu0 %v2140
        %2469 = vmatpush.msra.mxu0 %v2135
        %2470 = vmatpush.msra.mxu0 %v2130
        %2471 = vmatpush.msra.mxu0 %v2125
        %2472 = vmatmul.f32.gmra.mxu0 %v2162
        %v2473 = vpop.f32.mrf.mxu0
        %v2474 = vadd.f32 %v2448, %v2473
        %2475 = vmatmul.f32.gmra.mxu0 %v2165
        %v2476 = vpop.f32.mrf.mxu0
        %v2477 = vadd.f32 %v2451, %v2476
        %2478 = vmatmul.f32.gmra.mxu0 %v2168
        %v2479 = vpop.f32.mrf.mxu0
        %v2480 = vadd.f32 %v2454, %v2479
        %2481 = vdwg.mxu0
        %2482 = vmatpush.msra.mxu0 %v2041
        %2483 = vmatpush.msra.mxu0 %v2036
        %2484 = vmatpush.msra.mxu0 %v2031
        %2485 = vmatpush.msra.mxu0 %v2026
        %2486 = vmatpush.msra.mxu0 %v2021
        %2487 = vmatpush.msra.mxu0 %v2016
        %2488 = vmatpush.msra.mxu0 %v2011
        %2489 = vmatpush.msra.mxu0 %v2006
        %2490 = vmatpush.msra.mxu0 %v2001
        %2491 = vmatpush.msra.mxu0 %v1996
        %2492 = vmatpush.msra.mxu0 %v1991
        %2493 = vmatpush.msra.mxu0 %v1986
        %2494 = vmatpush.msra.mxu0 %v1981
        %2495 = vmatpush.msra.mxu0 %v1976
        %2496 = vmatpush.msra.mxu0 %v1971
        %2497 = vmatpush.msra.mxu0 %v1966
        %2498 = vmatmul.f32.gmra.mxu0 %v1953
        %v2499 = vpop.f32.mrf.mxu0
        %v2500 = vadd.f32 %v2148, %v2499
        %2501 = vmatmul.f32.gmra.mxu0 %v1956
        %v2502 = vpop.f32.mrf.mxu0
        %v2503 = vadd.f32 %v2153, %v2502
        %2504 = vmatmul.f32.gmra.mxu0 %v1959
        %v2505 = vpop.f32.mrf.mxu0
        %v2506 = vadd.f32 %v2158, %v2505
        %2507 = vdwg.mxu0
        %2508 = vmatpush.msra.mxu0 %v2121
        %2509 = vmatpush.msra.mxu0 %v2116
        %2510 = vmatpush.msra.mxu0 %v2111
        %2511 = vmatpush.msra.mxu0 %v2106
        %2512 = vmatpush.msra.mxu0 %v2101
        %2513 = vmatpush.msra.mxu0 %v2096
        %2514 = vmatpush.msra.mxu0 %v2091
        %2515 = vmatpush.msra.mxu0 %v2086
        %2516 = vmatpush.msra.mxu0 %v2081
        %2517 = vmatpush.msra.mxu0 %v2076
        %2518 = vmatpush.msra.mxu0 %v2071
        %2519 = vmatpush.msra.mxu0 %v2066
        %2520 = vmatpush.msra.mxu0 %v2061
        %2521 = vmatpush.msra.mxu0 %v2056
        %2522 = vmatpush.msra.mxu0 %v2051
        %2523 = vmatpush.msra.mxu0 %v2046
        %2524 = vmatmul.f32.gmra.mxu0 %v1954
        %v2525 = vpop.f32.mrf.mxu0
        %v2526 = vadd.f32 %v2500, %v2525
        %2527 = vmatmul.f32.gmra.mxu0 %v1957
        %v2528 = vpop.f32.mrf.mxu0
        %v2529 = vadd.f32 %v2503, %v2528
        %2530 = vmatmul.f32.gmra.mxu0 %v1960
        %v2531 = vpop.f32.mrf.mxu0
        %v2532 = vadd.f32 %v2506, %v2531
        %2533 = vdwg.mxu0
        %2534 = vmatpush.msra.mxu0 0.0
        %2535 = vmatpush.msra.mxu0 0.0
        %2536 = vmatpush.msra.mxu0 0.0
        %2537 = vmatpush.msra.mxu0 0.0
        %2538 = vmatpush.msra.mxu0 0.0
        %2539 = vmatpush.msra.mxu0 0.0
        %2540 = vmatpush.msra.mxu0 0.0
        %2541 = vmatpush.msra.mxu0 0.0
        %2542 = vmatpush.msra.mxu0 0.0
        %2543 = vmatpush.msra.mxu0 0.0
        %2544 = vmatpush.msra.mxu0 0.0
        %2545 = vmatpush.msra.mxu0 0.0
        %2546 = vmatpush.msra.mxu0 %v2141
        %2547 = vmatpush.msra.mxu0 %v2136
        %2548 = vmatpush.msra.mxu0 %v2131
        %2549 = vmatpush.msra.mxu0 %v2126
        %2550 = vmatmul.f32.gmra.mxu0 %v2162
        %v2551 = vpop.f32.mrf.mxu0
        %v2552 = vadd.f32 %v2526, %v2551
        %2553 = vmatmul.f32.gmra.mxu0 %v2165
        %v2554 = vpop.f32.mrf.mxu0
        %v2555 = vadd.f32 %v2529, %v2554
        %2556 = vmatmul.f32.gmra.mxu0 %v2168
        %v2557 = vpop.f32.mrf.mxu0
        %v2558 = vadd.f32 %v2532, %v2557
        %2559 = vdwg.mxu0
        %v2560 = vmul.f32 %v2240, %v2240
        %v2561 = vmul.f32 %v2318, %v2318
        %v2562 = vmul.f32 %v2396, %v2396
        %v2563 = vmul.f32 %v2474, %v2474
        %v2564 = vmul.f32 %v2552, %v2552
        %v2565 = vmul.f32 %v2243, %v2243
        %v2566 = vmul.f32 %v2321, %v2321
        %v2567 = vmul.f32 %v2399, %v2399
        %v2568 = vmul.f32 %v2477, %v2477
        %v2569 = vmul.f32 %v2555, %v2555
        %v2570 = vmul.f32 %v2246, %v2246
        %v2571 = vmul.f32 %v2324, %v2324
        %v2572 = vmul.f32 %v2402, %v2402
        %v2573 = vmul.f32 %v2480, %v2480
        %v2574 = vmul.f32 %v2558, %v2558
        %v2575 = vld [vmem:[%s5] sm:$0xff]
        %v2576 = vld [vmem:[%s5 + $0x8] sm:$0xff]
        %v2577 = vld [vmem:[%s5 + $0x10] sm:$0xff]
        %v2578 = vld [vmem:[%s5 + $0x18] sm:$0xff]
        %v2579 = vld [vmem:[%s5 + $0x20] sm:$0xff]
        %v2580 = vld [vmem:[%s5 + $0x28] sm:$0xff]
        %v2581 = vld [vmem:[%s5 + $0x30] sm:$0xff]
        %v2582 = vld [vmem:[%s5 + $0x38] sm:$0xff]
        %v2583 = vld [vmem:[%s5 + $0x40] sm:$0xff]
        %v2584 = vld [vmem:[%s5 + $0x48] sm:$0xff]
        %v2585 = vld [vmem:[%s5 + $0x50] sm:$0xff]
        %v2586 = vld [vmem:[%s5 + $0x58] sm:$0xff]
        %v2587 = vld [vmem:[%s5 + $0x60] sm:$0xff]
        %v2588 = vld [vmem:[%s5 + $0x68] sm:$0xff]
        %v2589 = vld [vmem:[%s5 + $0x70] sm:$0xff]
        %v2590 = vld [vmem:[%s5 + $0x78] sm:$0xff]
        %v2591 = vld [vmem:[%s5 + $0x80] sm:$0xff]
        %v2592 = vld [vmem:[%s5 + $0x88] sm:$0xff]
        %v2593 = vld [vmem:[%s5 + $0x90] sm:$0xff]
        %v2594 = vld [vmem:[%s5 + $0x98] sm:$0xff]
        %v2595 = vld [vmem:[%s5 + $0xa0] sm:$0xff]
        %v2596 = vld [vmem:[%s5 + $0xa8] sm:$0xff]
        %v2597 = vld [vmem:[%s5 + $0xb0] sm:$0xff]
        %v2598 = vld [vmem:[%s5 + $0xb8] sm:$0xff]
        %v2599 = vld [vmem:[%s5 + $0xc0] sm:$0xff]
        %v2600 = vld [vmem:[%s5 + $0xc8] sm:$0xff]
        %v2601 = vld [vmem:[%s5 + $0xd0] sm:$0xff]
        %v2602 = vld [vmem:[%s5 + $0xd8] sm:$0xff]
        %v2603 = vld [vmem:[%s5 + $0xe0] sm:$0xff]
        %v2604 = vld [vmem:[%s5 + $0xe8] sm:$0xff]
        %v2605 = vld [vmem:[%s5 + $0xf0] sm:$0xff]
        %v2606 = vld [vmem:[%s5 + $0xf8] sm:$0xff]
        %v2607 = vld [vmem:[%s5 + $0x100] sm:$0xff]
        %v2608 = vld [vmem:[%s5 + $0x108] sm:$0xff]
        %v2609 = vld [vmem:[%s5 + $0x110] sm:$0xff]
        %v2610 = vld [vmem:[%s5 + $0x118] sm:$0xff]
        %v2611 = vld [vmem:[%s5 + $0x120] sm:$0xff]
        %v2612 = vld [vmem:[%s5 + $0x128] sm:$0xff]
        %v2613 = vld [vmem:[%s5 + $0x130] sm:$0xff]
        %v2614 = vld [vmem:[%s5 + $0x138] sm:$0xff]
        %v2615 = vld [vmem:[%s5 + $0x140] sm:$0xff]
        %v2616 = vld [vmem:[%s5 + $0x148] sm:$0xff]
        %v2617 = vld [vmem:[%s5 + $0x150] sm:$0xff]
        %v2618 = vld [vmem:[%s5 + $0x158] sm:$0xff]
        %v2619 = vld [vmem:[%s5 + $0x160] sm:$0xff]
        %v2620 = vld [vmem:[%s5 + $0x168] sm:$0xff]
        %v2621 = vld [vmem:[%s5 + $0x170] sm:$0xff]
        %v2622 = vld [vmem:[%s5 + $0x178] sm:$0xff]
        %v2623 = vld [vmem:[%s5 + $0x180] sm:$0xff]
        %v2624 = vld [vmem:[%s5 + $0x188] sm:$0xff]
        %v2625 = vld [vmem:[%s5 + $0x190] sm:$0xff]
        %v2626 = vld [vmem:[%s5 + $0x198] sm:$0xff]
        %v2627 = vld [vmem:[%s5 + $0x1a0] sm:$0xff]
        %v2628 = vld [vmem:[%s5 + $0x1a8] sm:$0xff]
        %v2629 = vld [vmem:[%s5 + $0x1b0] sm:$0xff]
        %v2630 = vld [vmem:[%s5 + $0x1b8] sm:$0xff]
        %v2631 = vld [vmem:[%s5 + $0x1c0] sm:$0xff]
        %v2632 = vld [vmem:[%s5 + $0x1c8] sm:$0xff]
        %v2633 = vld [vmem:[%s5 + $0x1d0] sm:$0xff]
        %v2634 = vld [vmem:[%s5 + $0x1d8] sm:$0xff]
        %v2635 = vld [vmem:[%s5 + $0x1e0] sm:$0xff]
        %v2636 = vld [vmem:[%s5 + $0x1e8] sm:$0xff]
        %v2637 = vld [vmem:[%s5 + $0x1f0] sm:$0xff]
        %v2638 = vld [vmem:[%s5 + $0x1f8] sm:$0xff]
        %v2639 = vld [vmem:[%s5 + $0x200] sm:$0xff]
        %v2640 = vld [vmem:[%s5 + $0x208] sm:$0xff]
        %v2641 = vld [vmem:[%s5 + $0x210] sm:$0xff]
        %v2642 = vld [vmem:[%s5 + $0x218] sm:$0xff]
        %v2643 = vld [vmem:[%s5 + $0x220] sm:$0xff]
        %v2644 = vld [vmem:[%s5 + $0x228] sm:$0xff]
        %v2645 = vld [vmem:[%s5 + $0x230] sm:$0xff]
        %v2646 = vld [vmem:[%s5 + $0x238] sm:$0xff]
        %v2647 = vld [vmem:[%s5 + $0x240] sm:$0xff]
        %v2648 = vld [vmem:[%s5 + $0x248] sm:$0xff]
        %v2649 = vld [vmem:[%s5 + $0x250] sm:$0xff]
        %v2650 = vld [vmem:[%s5 + $0x258] sm:$0xff]
        %v2651 = vld [vmem:[%s5 + $0x260] sm:$0xff]
        %v2652 = vld [vmem:[%s5 + $0x268] sm:$0xff]
        %v2653 = vld [vmem:[%s5 + $0x270] sm:$0xff]
        %v2654 = vld [vmem:[%s5 + $0x278] sm:$0xff]
        %2655 = vmatpush.msra.mxu0 %v2590
        %2656 = vmatpush.msra.mxu0 %v2589
        %2657 = vmatpush.msra.mxu0 %v2588
        %2658 = vmatpush.msra.mxu0 %v2587
        %2659 = vmatpush.msra.mxu0 %v2586
        %2660 = vmatpush.msra.mxu0 %v2585
        %2661 = vmatpush.msra.mxu0 %v2584
        %2662 = vmatpush.msra.mxu0 %v2583
        %2663 = vmatpush.msra.mxu0 %v2582
        %2664 = vmatpush.msra.mxu0 %v2581
        %2665 = vmatpush.msra.mxu0 %v2580
        %2666 = vmatpush.msra.mxu0 %v2579
        %2667 = vmatpush.msra.mxu0 %v2578
        %2668 = vmatpush.msra.mxu0 %v2577
        %2669 = vmatpush.msra.mxu0 %v2576
        %2670 = vmatpush.msra.mxu0 %v2575
        %2671 = vmatmul.f32.gmra.mxu0 %v2560
        %v2672 = vpop.f32.mrf.mxu0
        %v2673 = vadd.f32 0.0, %v2672
        %2674 = vmatmul.f32.gmra.mxu0 %v2565
        %v2675 = vpop.f32.mrf.mxu0
        %v2676 = vadd.f32 0.0, %v2675
        %2677 = vmatmul.f32.gmra.mxu0 %v2570
        %v2678 = vpop.f32.mrf.mxu0
        %v2679 = vadd.f32 0.0, %v2678
        %2680 = vdwg.mxu0
        %2681 = vmatpush.msra.mxu0 %v2606
        %2682 = vmatpush.msra.mxu0 %v2605
        %2683 = vmatpush.msra.mxu0 %v2604
        %2684 = vmatpush.msra.mxu0 %v2603
        %2685 = vmatpush.msra.mxu0 %v2602
        %2686 = vmatpush.msra.mxu0 %v2601
        %2687 = vmatpush.msra.mxu0 %v2600
        %2688 = vmatpush.msra.mxu0 %v2599
        %2689 = vmatpush.msra.mxu0 %v2598
        %2690 = vmatpush.msra.mxu0 %v2597
        %2691 = vmatpush.msra.mxu0 %v2596
        %2692 = vmatpush.msra.mxu0 %v2595
        %2693 = vmatpush.msra.mxu0 %v2594
        %2694 = vmatpush.msra.mxu0 %v2593
        %2695 = vmatpush.msra.mxu0 %v2592
        %2696 = vmatpush.msra.mxu0 %v2591
        %2697 = vmatmul.f32.gmra.mxu0 %v2561
        %v2698 = vpop.f32.mrf.mxu0
        %v2699 = vadd.f32 %v2673, %v2698
        %2700 = vmatmul.f32.gmra.mxu0 %v2566
        %v2701 = vpop.f32.mrf.mxu0
        %v2702 = vadd.f32 %v2676, %v2701
        %2703 = vmatmul.f32.gmra.mxu0 %v2571
        %v2704 = vpop.f32.mrf.mxu0
        %v2705 = vadd.f32 %v2679, %v2704
        %2706 = vdwg.mxu0
        %2707 = vmatpush.msra.mxu0 %v2622
        %2708 = vmatpush.msra.mxu0 %v2621
        %2709 = vmatpush.msra.mxu0 %v2620
        %2710 = vmatpush.msra.mxu0 %v2619
        %2711 = vmatpush.msra.mxu0 %v2618
        %2712 = vmatpush.msra.mxu0 %v2617
        %2713 = vmatpush.msra.mxu0 %v2616
        %2714 = vmatpush.msra.mxu0 %v2615
        %2715 = vmatpush.msra.mxu0 %v2614
        %2716 = vmatpush.msra.mxu0 %v2613
        %2717 = vmatpush.msra.mxu0 %v2612
        %2718 = vmatpush.msra.mxu0 %v2611
        %2719 = vmatpush.msra.mxu0 %v2610
        %2720 = vmatpush.msra.mxu0 %v2609
        %2721 = vmatpush.msra.mxu0 %v2608
        %2722 = vmatpush.msra.mxu0 %v2607
        %2723 = vmatmul.f32.gmra.mxu0 %v2562
        %v2724 = vpop.f32.mrf.mxu0
        %v2725 = vadd.f32 %v2699, %v2724
        %2726 = vmatmul.f32.gmra.mxu0 %v2567
        %v2727 = vpop.f32.mrf.mxu0
        %v2728 = vadd.f32 %v2702, %v2727
        %2729 = vmatmul.f32.gmra.mxu0 %v2572
        %v2730 = vpop.f32.mrf.mxu0
        %v2731 = vadd.f32 %v2705, %v2730
        %2732 = vdwg.mxu0
        %2733 = vmatpush.msra.mxu0 %v2638
        %2734 = vmatpush.msra.mxu0 %v2637
        %2735 = vmatpush.msra.mxu0 %v2636
        %2736 = vmatpush.msra.mxu0 %v2635
        %2737 = vmatpush.msra.mxu0 %v2634
        %2738 = vmatpush.msra.mxu0 %v2633
        %2739 = vmatpush.msra.mxu0 %v2632
        %2740 = vmatpush.msra.mxu0 %v2631
        %2741 = vmatpush.msra.mxu0 %v2630
        %2742 = vmatpush.msra.mxu0 %v2629
        %2743 = vmatpush.msra.mxu0 %v2628
        %2744 = vmatpush.msra.mxu0 %v2627
        %2745 = vmatpush.msra.mxu0 %v2626
        %2746 = vmatpush.msra.mxu0 %v2625
        %2747 = vmatpush.msra.mxu0 %v2624
        %2748 = vmatpush.msra.mxu0 %v2623
        %2749 = vmatmul.f32.gmra.mxu0 %v2563
        %v2750 = vpop.f32.mrf.mxu0
        %v2751 = vadd.f32 %v2725, %v2750
        %2752 = vmatmul.f32.gmra.mxu0 %v2568
        %v2753 = vpop.f32.mrf.mxu0
        %v2754 = vadd.f32 %v2728, %v2753
        %2755 = vmatmul.f32.gmra.mxu0 %v2573
        %v2756 = vpop.f32.mrf.mxu0
        %v2757 = vadd.f32 %v2731, %v2756
        %2758 = vdwg.mxu0
        %2759 = vmatpush.msra.mxu0 %v2654
        %2760 = vmatpush.msra.mxu0 %v2653
        %2761 = vmatpush.msra.mxu0 %v2652
        %2762 = vmatpush.msra.mxu0 %v2651
        %2763 = vmatpush.msra.mxu0 %v2650
        %2764 = vmatpush.msra.mxu0 %v2649
        %2765 = vmatpush.msra.mxu0 %v2648
        %2766 = vmatpush.msra.mxu0 %v2647
        %2767 = vmatpush.msra.mxu0 %v2646
        %2768 = vmatpush.msra.mxu0 %v2645
        %2769 = vmatpush.msra.mxu0 %v2644
        %2770 = vmatpush.msra.mxu0 %v2643
        %2771 = vmatpush.msra.mxu0 %v2642
        %2772 = vmatpush.msra.mxu0 %v2641
        %2773 = vmatpush.msra.mxu0 %v2640
        %2774 = vmatpush.msra.mxu0 %v2639
        %2775 = vmatmul.f32.gmra.mxu0 %v2564
        %v2776 = vpop.f32.mrf.mxu0
        %v2777 = vadd.f32 %v2751, %v2776
        %2778 = vmatmul.f32.gmra.mxu0 %v2569
        %v2779 = vpop.f32.mrf.mxu0
        %v2780 = vadd.f32 %v2754, %v2779
        %2781 = vmatmul.f32.gmra.mxu0 %v2574
        %v2782 = vpop.f32.mrf.mxu0
        %v2783 = vadd.f32 %v2757, %v2782
        %2784 = vdwg.mxu0
        %v2785 = vlog2.pop %v2777
        %v2786 = vmul.f32 %v2785, 0.6931472
        %v2787 = vlog2.pop %v2780
        %v2788 = vmul.f32 %v2787, 0.6931472
        %v2789 = vlog2.pop %v2783
        %v2790 = vmul.f32 %v2789, 0.6931472
        %v2791 = vlaneseq
        %v2792 = vand.u32 %v2791, 127
        %v2793 = vld [vmem:[%s7] sm:$0x1]
        %v2794 = vld [vmem:[%s6] sm:$0xff]
        %v2795 = vld [vmem:[%s6 + $0x8] sm:$0xff]
        %v2796 = vld [vmem:[%s6 + $0x10] sm:$0xf]
        %v2797 = vmul.f32 %v2786, %v2794
        %v2798 = vmul.f32 %v2788, %v2795
        %v2799 = vmul.f32 %v2790, %v2796
        %vm2800 = vcmask 343040
        %v2801 = vsel %vm2800, %v2797, 0.0
        %2802 = vadd.xlane.f32.xlu0 %v2801
        %v2803 = vpop.xlane.xlu0 %2802
        %v2804 = vsel %vm2800, %v2798, 0.0
        %2805 = vadd.xlane.f32.xlu0 %v2804
        %v2806 = vpop.xlane.xlu0 %2805
        %vm2807 = vcmask 338944
        %v2808 = vsel %vm2807, %v2799, 0.0
        %2809 = vadd.xlane.f32.xlu0 %v2808
        %v2810 = vpop.xlane.xlu0 %2809
        %v2811 = vadd.f32 %v2803, %v2806
        %vm2812 = vcmask 1043456
        %v2813 = vsel %vm2812, %v2810, 0.0
        %v2814 = vadd.f32 %v2811, %v2813
        %v2815 = vrot.slane %v2814, 4
        %v2816 = vadd.f32 %v2814, %v2815
        %v2817 = vrot.slane %v2816, 2
        %v2818 = vadd.f32 %v2816, %v2817
        %v2819 = vrot.slane %v2818, 1
        %v2820 = vadd.f32 %v2818, %v2819
        %vm2821 = vcmp.eq.s32.totalorder %v2792, 0
        %v2822 = vsel %vm2821, 1, 0
        %v2823 = vcvt.s32.f32 %v2822
        %v2824 = vmul.f32 %v2820, %v2823
        %v2825 = vadd.f32 %v2793, %v2824
        %s2826 = scalar_lea.vmem %s6, 24
        %v2827 = vld [vmem:[%s2826] sm:$0xff]
        %v2828 = vld [vmem:[%s2826 + $0x8] sm:$0xff]
        %v2829 = vld [vmem:[%s2826 + $0x10] sm:$0xf]
        %v2830 = vmul.f32 %v2786, %v2827
        %v2831 = vmul.f32 %v2788, %v2828
        %v2832 = vmul.f32 %v2790, %v2829
        %v2833 = vsel %vm2800, %v2830, 0.0
        %2834 = vadd.xlane.f32.xlu0 %v2833
        %v2835 = vpop.xlane.xlu0 %2834
        %v2836 = vsel %vm2800, %v2831, 0.0
        %2837 = vadd.xlane.f32.xlu0 %v2836
        %v2838 = vpop.xlane.xlu0 %2837
        %v2839 = vsel %vm2807, %v2832, 0.0
        %2840 = vadd.xlane.f32.xlu0 %v2839
        %v2841 = vpop.xlane.xlu0 %2840
        %v2842 = vadd.f32 %v2835, %v2838
        %v2843 = vsel %vm2812, %v2841, 0.0
        %v2844 = vadd.f32 %v2842, %v2843
        %v2845 = vrot.slane %v2844, 4
        %v2846 = vadd.f32 %v2844, %v2845
        %v2847 = vrot.slane %v2846, 2
        %v2848 = vadd.f32 %v2846, %v2847
        %v2849 = vrot.slane %v2848, 1
        %v2850 = vadd.f32 %v2848, %v2849
        %vm2851 = vcmp.eq.s32.totalorder %v2792, 1
        %v2852 = vsel %vm2851, 1, 0
        %v2853 = vcvt.s32.f32 %v2852
        %v2854 = vmul.f32 %v2850, %v2853
        %v2855 = vadd.f32 %v2825, %v2854
        %s2856 = scalar_lea.vmem %s6, 48
        %v2857 = vld [vmem:[%s2856] sm:$0xff]
        %v2858 = vld [vmem:[%s2856 + $0x8] sm:$0xff]
        %v2859 = vld [vmem:[%s2856 + $0x10] sm:$0xf]
        %v2860 = vmul.f32 %v2786, %v2857
        %v2861 = vmul.f32 %v2788, %v2858
        %v2862 = vmul.f32 %v2790, %v2859
        %v2863 = vsel %vm2800, %v2860, 0.0
        %2864 = vadd.xlane.f32.xlu0 %v2863
        %v2865 = vpop.xlane.xlu0 %2864
        %v2866 = vsel %vm2800, %v2861, 0.0
        %2867 = vadd.xlane.f32.xlu0 %v2866
        %v2868 = vpop.xlane.xlu0 %2867
        %v2869 = vsel %vm2807, %v2862, 0.0
        %2870 = vadd.xlane.f32.xlu0 %v2869
        %v2871 = vpop.xlane.xlu0 %2870
        %v2872 = vadd.f32 %v2865, %v2868
        %v2873 = vsel %vm2812, %v2871, 0.0
        %v2874 = vadd.f32 %v2872, %v2873
        %v2875 = vrot.slane %v2874, 4
        %v2876 = vadd.f32 %v2874, %v2875
        %v2877 = vrot.slane %v2876, 2
        %v2878 = vadd.f32 %v2876, %v2877
        %v2879 = vrot.slane %v2878, 1
        %v2880 = vadd.f32 %v2878, %v2879
        %vm2881 = vcmp.eq.s32.totalorder %v2792, 2
        %v2882 = vsel %vm2881, 1, 0
        %v2883 = vcvt.s32.f32 %v2882
        %v2884 = vmul.f32 %v2880, %v2883
        %v2885 = vadd.f32 %v2855, %v2884
        %s2886 = scalar_lea.vmem %s6, 72
        %v2887 = vld [vmem:[%s2886] sm:$0xff]
        %v2888 = vld [vmem:[%s2886 + $0x8] sm:$0xff]
        %v2889 = vld [vmem:[%s2886 + $0x10] sm:$0xf]
        %v2890 = vmul.f32 %v2786, %v2887
        %v2891 = vmul.f32 %v2788, %v2888
        %v2892 = vmul.f32 %v2790, %v2889
        %v2893 = vsel %vm2800, %v2890, 0.0
        %2894 = vadd.xlane.f32.xlu0 %v2893
        %v2895 = vpop.xlane.xlu0 %2894
        %v2896 = vsel %vm2800, %v2891, 0.0
        %2897 = vadd.xlane.f32.xlu0 %v2896
        %v2898 = vpop.xlane.xlu0 %2897
        %v2899 = vsel %vm2807, %v2892, 0.0
        %2900 = vadd.xlane.f32.xlu0 %v2899
        %v2901 = vpop.xlane.xlu0 %2900
        %v2902 = vadd.f32 %v2895, %v2898
        %v2903 = vsel %vm2812, %v2901, 0.0
        %v2904 = vadd.f32 %v2902, %v2903
        %v2905 = vrot.slane %v2904, 4
        %v2906 = vadd.f32 %v2904, %v2905
        %v2907 = vrot.slane %v2906, 2
        %v2908 = vadd.f32 %v2906, %v2907
        %v2909 = vrot.slane %v2908, 1
        %v2910 = vadd.f32 %v2908, %v2909
        %vm2911 = vcmp.eq.s32.totalorder %v2792, 3
        %v2912 = vsel %vm2911, 1, 0
        %v2913 = vcvt.s32.f32 %v2912
        %v2914 = vmul.f32 %v2910, %v2913
        %v2915 = vadd.f32 %v2885, %v2914
        %vm2916 = vcmask 24576
        %2917 = vst.msk [vmem:[%s297] sm:$0x1] %vm2916, %v2915
        %s2918 = sand.u32 %s203, 1
        %s2919 = scalar_lea.sflag [#allocation5], %s2918
        %s2920 = sand.u32 %s203, 1
        %s2921 = scalar_lea.vmem [#allocation4], %s2920
        // Predicated region
        $region53: #{tpu_custom_call.1} parent=51 // pred_check
          %p2922 = pneg %p213
        $region54: #{tpu_custom_call.1} parent=51 // pred_check_branch
          %2924 = sbr.rel (%p2922) target = $region56
        $region55: #{tpu_custom_call.1} parent=51 // pred_region
          %2926 = vsyncadd %s2919, 0
          %s2927 = scalar_lea.hbm %s8, %s22
          %s2929 = sshll.u32 %s2921, 4
          %s2930 = int_to_ptr.vmem [resolvable:$true] %s2929
          %s2931 = sshll.u32 %s2927, 4
          %s2932 = int_to_ptr.hbm [resolvable:$true] %s2931
          %2934 = dma.vmem_to_hbm [thread:$0]  %s2930, 16, %s2932, %s2919
        $region56: #{tpu_custom_call.1} parent=51 // pred_fallthru
          _
      $region52: #{tpu_custom_call.1} parent=5 // pred_fallthru
        _
      %p2935 = scmp.le.s32.totalorder 2, %s17
      // Predicated region
      $region57: #{tpu_custom_call.1} parent=5 // pred_check
        %p2936 = pneg %p2935
      $region58: #{tpu_custom_call.1} parent=5 // pred_check_branch
        %2938 = sbr.rel (%p2936) target = $region60
      $region59: #{tpu_custom_call.1} parent=5 // pred_region
        %s2939 = ssub.s32 %s17, 2
        // Predicated region
        $region61: #{tpu_custom_call.1} parent=59 // pred_check
          %p2940 = pneg %p219
        $region62: #{tpu_custom_call.1} parent=59 // pred_check_branch
          %2942 = sbr.rel (%p2940) target = $region64
        $region63: #{tpu_custom_call.1} parent=59 // pred_region
          %s2943 = sand.u32 %s204, 1
          %s2944 = scalar_lea.sflag [#allocation5], %s2943
          %s2945 = sand.u32 %s204, 1
          %s2946 = scalar_lea.vmem [#allocation4], %s2945
          %2948 = dma.done %s2944, 16
        $region64: #{tpu_custom_call.1} parent=59 // pred_fallthru
          _
      $region60: #{tpu_custom_call.1} parent=5 // pred_fallthru
        _
    $region6: #{tpu_custom_call.1} parent=1 // loop_footer
      %s21 = sadd.s32 1, %s17
    $region7: #{tpu_custom_call.1} parent=1 // loop_footer_branch
      %16 = sbr.rel target = $region3
    $region8: #{tpu_custom_call.1} parent=1 // loop_exit
      _
    %2949 = vsyncpa [#allocation5], 1
    %s2950 = scalar_lea.sflag [#allocation5], 1
    %2951 = vsyncpa %s2950, 1

</llo_original>
